<compile_context>
chip_gen: v7x
topology: tpu7x:2x2x1
jax: 0.10.0
libtpu: 0.0.40
codegen_flags: <defaults>
</compile_context>

<pallas_src>
import jax
import jax.numpy as jnp
from jax import lax
from jax.experimental import pallas as pl
from jax.experimental.pallas import tpu as pltpu

EPS = 1e-5
LANE = 128


def basic_block_kernel(x_ref, w1_ref, b1_ref, w2_ref, b2_ref, o_ref,
                       col_ref, pad2_ref):
    # x_ref:    (H+2, W+2, Cp)  spatially pre-padded, channel-padded input
    # w*_ref:   (9*Cp, Cp)      im2col weight matrix, BN scale pre-folded
    # b*_ref:   (1, Cp)         folded BN bias
    # o_ref:    (H, W, Cp)
    # col_ref:  (H*W, 9*Cp)     im2col slab scratch (reused by both convs)
    # pad2_ref: (H+2, W+2, Cp)  padded staging buffer for conv2's input
    Hp, Wp, Cp = x_ref.shape
    H, W = Hp - 2, Wp - 2

    # ---- conv1: build im2col slab (9 shifted lane-dense copies), 1 MXU matmul.
    for ky in range(3):
        for kx in range(3):
            t = ky * 3 + kx
            col_ref[:, t * Cp:(t + 1) * Cp] = (
                x_ref[ky:ky + H, kx:kx + W, :].reshape(H * W, Cp))
    out1 = jnp.maximum(
        jnp.dot(col_ref[...], w1_ref[...], preferred_element_type=jnp.float32)
        + b1_ref[...],
        0.0)                                                 # (H*W, Cp)

    # ---- stage relu(bn1(conv1)) into the padded scratch for conv2.
    # Interior is overwritten every step; only the 1-px halo is re-zeroed
    # (2 row stores + 2 narrow column stores), never the full buffer.
    pad2_ref[1:H + 1, 1:W + 1, :] = out1.reshape(H, W, Cp)
    zrow = jnp.zeros((1, Wp, Cp), jnp.float32)
    pad2_ref[0:1, :, :] = zrow
    pad2_ref[H + 1:H + 2, :, :] = zrow
    zcol = jnp.zeros((H, 1, Cp), jnp.float32)
    pad2_ref[1:H + 1, 0:1, :] = zcol
    pad2_ref[1:H + 1, W + 1:W + 2, :] = zcol

    # ---- conv2: same im2col scheme, reusing the slab scratch.
    for ky in range(3):
        for kx in range(3):
            t = ky * 3 + kx
            col_ref[:, t * Cp:(t + 1) * Cp] = (
                pad2_ref[ky:ky + H, kx:kx + W, :].reshape(H * W, Cp))
    out2 = (jnp.dot(col_ref[...], w2_ref[...],
                    preferred_element_type=jnp.float32)
            + b2_ref[...])                                   # (H*W, Cp)

    # ---- identity shortcut + relu
    shortcut = x_ref[1:H + 1, 1:W + 1, :].reshape(H * W, Cp).astype(jnp.float32)
    res = jnp.maximum(out2 + shortcut, 0.0)
    o_ref[...] = res.reshape(H, W, Cp).astype(o_ref.dtype)


def fold_bn(gamma, beta, mean, var):
    scale = gamma / jnp.sqrt(var + EPS)
    bias = beta - mean * scale
    return scale, bias


def basic_block_pallas(x_nhwc, params):
    """x_nhwc: (N, H, W, C) float32.  params: dict of torch-layout params."""
    N, H, W, C = x_nhwc.shape
    Cout, Cin = params["w1"].shape[0], params["w1"].shape[1]
    assert Cin == C and Cout == C, (
        "identity-shortcut instantiation requires in_planes == planes, stride == 1")

    Cp = ((C + LANE - 1) // LANE) * LANE   # lane-dense channel count

    s1, b1 = fold_bn(params["g1"], params["b1"], params["m1"], params["v1"])
    s2, b2 = fold_bn(params["g2"], params["b2"], params["m2"], params["v2"])

    def prep_weight(w_torch, scale):
        # (Cout, Cin, 3, 3) -> (3, 3, Cin, Cout), fold BN scale per output
        # channel, zero-pad channels to Cp, reshape to im2col matrix.
        w = jnp.transpose(w_torch, (2, 3, 1, 0)) * scale[None, None, None, :]
        w = jnp.pad(w, ((0, 0), (0, 0),
                        (0, Cp - w.shape[2]), (0, Cp - w.shape[3])))
        return w.reshape(9 * Cp, Cp).astype(jnp.float32)

    w1m = prep_weight(params["w1"], s1)
    w2m = prep_weight(params["w2"], s2)
    b1p = jnp.pad(b1, (0, Cp - C)).reshape(1, Cp).astype(jnp.float32)
    b2p = jnp.pad(b2, (0, Cp - C)).reshape(1, Cp).astype(jnp.float32)

    # One-time wrapper pad: 1-px spatial halo for conv1 + channel pad to Cp.
    x_pad = jnp.pad(x_nhwc.astype(jnp.float32),
                    ((0, 0), (1, 1), (1, 1), (0, Cp - C)))

    # Working set (~6 MiB for this config) fits the default scoped-VMEM limit
    # on all of v5e/v6e/v7x; for large ResNet stages add an H-row tile axis.
    out_p = pl.pallas_call(
        basic_block_kernel,
        out_shape=jax.ShapeDtypeStruct((N, H, W, Cp), x_nhwc.dtype),
        grid_spec=pltpu.PrefetchScalarGridSpec(
            num_scalar_prefetch=0,
            grid=(N,),
            in_specs=[
                pl.BlockSpec((None, H + 2, W + 2, Cp), lambda n: (n, 0, 0, 0)),
                pl.BlockSpec((9 * Cp, Cp), lambda n: (0, 0)),
                pl.BlockSpec((1, Cp), lambda n: (0, 0)),
                pl.BlockSpec((9 * Cp, Cp), lambda n: (0, 0)),
                pl.BlockSpec((1, Cp), lambda n: (0, 0)),
            ],
            out_specs=pl.BlockSpec((None, H, W, Cp), lambda n: (n, 0, 0, 0)),
            scratch_shapes=[
                pltpu.VMEM((H * W, 9 * Cp), jnp.float32),      # im2col slab
                pltpu.VMEM((H + 2, W + 2, Cp), jnp.float32),   # conv2 staging
            ]),
        compiler_params=pltpu.CompilerParams(
            dimension_semantics=("parallel",)),
    )(x_pad, w1m, b1p, w2m, b2p)

    return out_p[..., :C]   # drop channel padding


def basic_block_ref(x_nhwc, params):
    """Pure-JAX reference (NHWC) for correctness checking."""
    def conv3x3(x, w_torch):
        w = jnp.transpose(w_torch, (2, 3, 1, 0))  # HWIO
        return lax.conv_general_dilated(
            x, w, window_strides=(1, 1), padding=((1, 1), (1, 1)),
            dimension_numbers=("NHWC", "HWIO", "NHWC"))

    def bn(x, g, b, m, v):
        return (x - m) / jnp.sqrt(v + EPS) * g + b

    out = jax.nn.relu(bn(conv3x3(x_nhwc, params["w1"]),
                         params["g1"], params["b1"], params["m1"], params["v1"]))
    out = bn(conv3x3(out, params["w2"]),
             params["g2"], params["b2"], params["m2"], params["v2"])
    return jax.nn.relu(out + x_nhwc)


if __name__ == "__main__":
    # BasicBlock(in_planes=4, planes=4, stride=1)  -> identity shortcut
    N, C, H, W = 2, 4, 16, 16
    key = jax.random.PRNGKey(0)
    ks = jax.random.split(key, 11)

    x_nchw = jax.random.normal(ks[0], (N, C, H, W), jnp.float32)

    params = {
        # conv weights in torch layout (Cout, Cin, kh, kw), no bias
        "w1": jax.random.normal(ks[1], (C, C, 3, 3), jnp.float32) * 0.1,
        "w2": jax.random.normal(ks[2], (C, C, 3, 3), jnp.float32) * 0.1,
        # bn1
        "g1": jax.random.uniform(ks[3], (C,), jnp.float32, 0.5, 1.5),
        "b1": jax.random.normal(ks[4], (C,), jnp.float32) * 0.1,
        "m1": jax.random.normal(ks[5], (C,), jnp.float32) * 0.1,
        "v1": jax.random.uniform(ks[6], (C,), jnp.float32, 0.5, 1.5),
        # bn2
        "g2": jax.random.uniform(ks[7], (C,), jnp.float32, 0.5, 1.5),
        "b2": jax.random.normal(ks[8], (C,), jnp.float32) * 0.1,
        "m2": jax.random.normal(ks[9], (C,), jnp.float32) * 0.1,
        "v2": jax.random.uniform(ks[10], (C,), jnp.float32, 0.5, 1.5),
    }

    # NCHW (torch convention) -> NHWC (kernel layout)
    x_nhwc = jnp.transpose(x_nchw, (0, 2, 3, 1))

    out = jax.block_until_ready(basic_block_pallas(x_nhwc, params))
    ref = jax.block_until_ready(basic_block_ref(x_nhwc, params))

    assert out.shape == (N, H, W, C), out.shape
    assert jnp.allclose(out, ref, atol=1e-3, rtol=1e-3), \
        f"max abs err {jnp.max(jnp.abs(out - ref))}"

    # Back to NCHW to match the PyTorch module's output convention.
    out_nchw = jnp.transpose(out, (0, 3, 1, 2))
    assert out_nchw.shape == (N, C, H, W)

    print("KERNEL_OK")
</pallas_src>

<mosaic_0001>
module attributes {stable_mosaic.version = 11 : i64} {
  func.func @basic_block_kernel(%arg0: i32, %arg1: memref<1x18x18x128xf32, #tpu.memory_space<vmem>>, %arg2: memref<1152x128xf32, #tpu.memory_space<vmem>>, %arg3: memref<1x128xf32, #tpu.memory_space<vmem>>, %arg4: memref<1152x128xf32, #tpu.memory_space<vmem>>, %arg5: memref<1x128xf32, #tpu.memory_space<vmem>>, %arg6: memref<1x16x16x128xf32, #tpu.memory_space<vmem>>, %arg7: memref<256x1152xf32, #tpu.memory_space<vmem>>, %arg8: memref<18x18x128xf32, #tpu.memory_space<vmem>>) attributes {dimension_semantics = [#tpu.dimension_semantics<parallel>], iteration_bounds = array<i64: 2>, scalar_prefetch = 0 : i64, scratch_operands = 2 : i64, tpu.core_type = #tpu.core_type<tc>, window_params = [{transform_indices = @transform_0, window_bounds = array<i64: 1, 18, 18, 128>}, {pipeline_mode = #tpu.pipeline_mode<synchronous>, transform_indices = @transform_1, window_bounds = array<i64: 1152, 128>}, {pipeline_mode = #tpu.pipeline_mode<synchronous>, transform_indices = @transform_2, window_bounds = array<i64: 1, 128>}, {pipeline_mode = #tpu.pipeline_mode<synchronous>, transform_indices = @transform_3, window_bounds = array<i64: 1152, 128>}, {pipeline_mode = #tpu.pipeline_mode<synchronous>, transform_indices = @transform_4, window_bounds = array<i64: 1, 128>}, {transform_indices = @transform_5, window_bounds = array<i64: 1, 16, 16, 128>}]} {
    %c0 = arith.constant 0 : index
    %c0_0 = arith.constant 0 : index
    %c0_1 = arith.constant 0 : index
    %c0_2 = arith.constant 0 : index
    %0 = vector.load %arg1[%c0, %c0_0, %c0_1, %c0_2] : memref<1x18x18x128xf32, #tpu.memory_space<vmem>>, vector<1x16x16x128xf32>
    %1 = vector.shape_cast %0 : vector<1x16x16x128xf32> to vector<16x16x128xf32>
    %2 = vector.shape_cast %1 : vector<16x16x128xf32> to vector<256x128xf32>
    %c0_3 = arith.constant 0 : index
    %c0_4 = arith.constant 0 : index
    %3 = vector.load %arg7[%c0_3, %c0_4] : memref<256x1152xf32, #tpu.memory_space<vmem>>, vector<256x128xf32>
    tpu.vector_store %arg7[%c0_3, %c0_4], %2 {strides = array<i32>} : memref<256x1152xf32, #tpu.memory_space<vmem>>, vector<256x128xf32>,
    %c0_5 = arith.constant 0 : index
    %c0_6 = arith.constant 0 : index
    %c1 = arith.constant 1 : index
    %c0_7 = arith.constant 0 : index
    %4 = vector.load %arg1[%c0_5, %c0_6, %c1, %c0_7] : memref<1x18x18x128xf32, #tpu.memory_space<vmem>>, vector<1x16x16x128xf32>
    %5 = vector.shape_cast %4 : vector<1x16x16x128xf32> to vector<16x16x128xf32>
    %6 = vector.shape_cast %5 : vector<16x16x128xf32> to vector<256x128xf32>
    %c0_8 = arith.constant 0 : index
    %c128 = arith.constant 128 : index
    %7 = vector.load %arg7[%c0_8, %c128] : memref<256x1152xf32, #tpu.memory_space<vmem>>, vector<256x128xf32>
    tpu.vector_store %arg7[%c0_8, %c128], %6 {strides = array<i32>} : memref<256x1152xf32, #tpu.memory_space<vmem>>, vector<256x128xf32>,
    %c0_9 = arith.constant 0 : index
    %c0_10 = arith.constant 0 : index
    %c2 = arith.constant 2 : index
    %c0_11 = arith.constant 0 : index
    %8 = vector.load %arg1[%c0_9, %c0_10, %c2, %c0_11] : memref<1x18x18x128xf32, #tpu.memory_space<vmem>>, vector<1x16x16x128xf32>
    %9 = vector.shape_cast %8 : vector<1x16x16x128xf32> to vector<16x16x128xf32>
    %10 = vector.shape_cast %9 : vector<16x16x128xf32> to vector<256x128xf32>
    %c0_12 = arith.constant 0 : index
    %c256 = arith.constant 256 : index
    %11 = vector.load %arg7[%c0_12, %c256] : memref<256x1152xf32, #tpu.memory_space<vmem>>, vector<256x128xf32>
    tpu.vector_store %arg7[%c0_12, %c256], %10 {strides = array<i32>} : memref<256x1152xf32, #tpu.memory_space<vmem>>, vector<256x128xf32>,
    %c0_13 = arith.constant 0 : index
    %c1_14 = arith.constant 1 : index
    %c0_15 = arith.constant 0 : index
    %c0_16 = arith.constant 0 : index
    %12 = vector.load %arg1[%c0_13, %c1_14, %c0_15, %c0_16] : memref<1x18x18x128xf32, #tpu.memory_space<vmem>>, vector<1x16x16x128xf32>
    %13 = vector.shape_cast %12 : vector<1x16x16x128xf32> to vector<16x16x128xf32>
    %14 = vector.shape_cast %13 : vector<16x16x128xf32> to vector<256x128xf32>
    %c0_17 = arith.constant 0 : index
    %c384 = arith.constant 384 : index
    %15 = vector.load %arg7[%c0_17, %c384] : memref<256x1152xf32, #tpu.memory_space<vmem>>, vector<256x128xf32>
    tpu.vector_store %arg7[%c0_17, %c384], %14 {strides = array<i32>} : memref<256x1152xf32, #tpu.memory_space<vmem>>, vector<256x128xf32>,
    %c0_18 = arith.constant 0 : index
    %c1_19 = arith.constant 1 : index
    %c1_20 = arith.constant 1 : index
    %c0_21 = arith.constant 0 : index
    %16 = vector.load %arg1[%c0_18, %c1_19, %c1_20, %c0_21] : memref<1x18x18x128xf32, #tpu.memory_space<vmem>>, vector<1x16x16x128xf32>
    %17 = vector.shape_cast %16 : vector<1x16x16x128xf32> to vector<16x16x128xf32>
    %18 = vector.shape_cast %17 : vector<16x16x128xf32> to vector<256x128xf32>
    %c0_22 = arith.constant 0 : index
    %c512 = arith.constant 512 : index
    %19 = vector.load %arg7[%c0_22, %c512] : memref<256x1152xf32, #tpu.memory_space<vmem>>, vector<256x128xf32>
    tpu.vector_store %arg7[%c0_22, %c512], %18 {strides = array<i32>} : memref<256x1152xf32, #tpu.memory_space<vmem>>, vector<256x128xf32>,
    %c0_23 = arith.constant 0 : index
    %c1_24 = arith.constant 1 : index
    %c2_25 = arith.constant 2 : index
    %c0_26 = arith.constant 0 : index
    %20 = vector.load %arg1[%c0_23, %c1_24, %c2_25, %c0_26] : memref<1x18x18x128xf32, #tpu.memory_space<vmem>>, vector<1x16x16x128xf32>
    %21 = vector.shape_cast %20 : vector<1x16x16x128xf32> to vector<16x16x128xf32>
    %22 = vector.shape_cast %21 : vector<16x16x128xf32> to vector<256x128xf32>
    %c0_27 = arith.constant 0 : index
    %c640 = arith.constant 640 : index
    %23 = vector.load %arg7[%c0_27, %c640] : memref<256x1152xf32, #tpu.memory_space<vmem>>, vector<256x128xf32>
    tpu.vector_store %arg7[%c0_27, %c640], %22 {strides = array<i32>} : memref<256x1152xf32, #tpu.memory_space<vmem>>, vector<256x128xf32>,
    %c0_28 = arith.constant 0 : index
    %c2_29 = arith.constant 2 : index
    %c0_30 = arith.constant 0 : index
    %c0_31 = arith.constant 0 : index
    %24 = vector.load %arg1[%c0_28, %c2_29, %c0_30, %c0_31] : memref<1x18x18x128xf32, #tpu.memory_space<vmem>>, vector<1x16x16x128xf32>
    %25 = vector.shape_cast %24 : vector<1x16x16x128xf32> to vector<16x16x128xf32>
    %26 = vector.shape_cast %25 : vector<16x16x128xf32> to vector<256x128xf32>
    %c0_32 = arith.constant 0 : index
    %c768 = arith.constant 768 : index
    %27 = vector.load %arg7[%c0_32, %c768] : memref<256x1152xf32, #tpu.memory_space<vmem>>, vector<256x128xf32>
    tpu.vector_store %arg7[%c0_32, %c768], %26 {strides = array<i32>} : memref<256x1152xf32, #tpu.memory_space<vmem>>, vector<256x128xf32>,
    %c0_33 = arith.constant 0 : index
    %c2_34 = arith.constant 2 : index
    %c1_35 = arith.constant 1 : index
    %c0_36 = arith.constant 0 : index
    %28 = vector.load %arg1[%c0_33, %c2_34, %c1_35, %c0_36] : memref<1x18x18x128xf32, #tpu.memory_space<vmem>>, vector<1x16x16x128xf32>
    %29 = vector.shape_cast %28 : vector<1x16x16x128xf32> to vector<16x16x128xf32>
    %30 = vector.shape_cast %29 : vector<16x16x128xf32> to vector<256x128xf32>
    %c0_37 = arith.constant 0 : index
    %c896 = arith.constant 896 : index
    %31 = vector.load %arg7[%c0_37, %c896] : memref<256x1152xf32, #tpu.memory_space<vmem>>, vector<256x128xf32>
    tpu.vector_store %arg7[%c0_37, %c896], %30 {strides = array<i32>} : memref<256x1152xf32, #tpu.memory_space<vmem>>, vector<256x128xf32>,
    %c0_38 = arith.constant 0 : index
    %c2_39 = arith.constant 2 : index
    %c2_40 = arith.constant 2 : index
    %c0_41 = arith.constant 0 : index
    %32 = vector.load %arg1[%c0_38, %c2_39, %c2_40, %c0_41] : memref<1x18x18x128xf32, #tpu.memory_space<vmem>>, vector<1x16x16x128xf32>
    %33 = vector.shape_cast %32 : vector<1x16x16x128xf32> to vector<16x16x128xf32>
    %34 = vector.shape_cast %33 : vector<16x16x128xf32> to vector<256x128xf32>
    %c0_42 = arith.constant 0 : index
    %c1024 = arith.constant 1024 : index
    %35 = vector.load %arg7[%c0_42, %c1024] : memref<256x1152xf32, #tpu.memory_space<vmem>>, vector<256x128xf32>
    tpu.vector_store %arg7[%c0_42, %c1024], %34 {strides = array<i32>} : memref<256x1152xf32, #tpu.memory_space<vmem>>, vector<256x128xf32>,
    %c0_43 = arith.constant 0 : index
    %c0_44 = arith.constant 0 : index
    %36 = vector.load %arg7[%c0_43, %c0_44] : memref<256x1152xf32, #tpu.memory_space<vmem>>, vector<256x1152xf32>
    %c0_45 = arith.constant 0 : index
    %c0_46 = arith.constant 0 : index
    %37 = vector.load %arg2[%c0_45, %c0_46] : memref<1152x128xf32, #tpu.memory_space<vmem>>, vector<1152x128xf32>
    %cst = arith.constant dense<0.000000e+00> : vector<256x128xf32>
    %38 = tpu.matmul %36, %37, %cst {dimension_numbers = #tpu.dot_dimension_numbers<[1], [0], [0], [1], [0, 0, 1, 1], [], []>} : vector<256x1152xf32>, vector<1152x128xf32>, vector<256x128xf32> -> vector<256x128xf32>
    %c0_47 = arith.constant 0 : index
    %c0_48 = arith.constant 0 : index
    %39 = vector.load %arg3[%c0_47, %c0_48] : memref<1x128xf32, #tpu.memory_space<vmem>>, vector<1x128xf32>
    %40 = vector.broadcast %39 : vector<1x128xf32> to vector<256x128xf32>
    %41 = arith.addf %38, %40 : vector<256x128xf32>
    %cst_49 = arith.constant 0.000000e+00 : f32
    %42 = vector.broadcast %cst_49 : f32 to vector<256x128xf32>
    %43 = arith.maximumf %41, %42 : vector<256x128xf32>
    %44 = vector.shape_cast %43 : vector<256x128xf32> to vector<16x16x128xf32>
    %c1_50 = arith.constant 1 : index
    %c1_51 = arith.constant 1 : index
    %c0_52 = arith.constant 0 : index
    %45 = vector.load %arg8[%c1_50, %c1_51, %c0_52] : memref<18x18x128xf32, #tpu.memory_space<vmem>>, vector<16x16x128xf32>
    tpu.vector_store %arg8[%c1_50, %c1_51, %c0_52], %44 {strides = array<i32>} : memref<18x18x128xf32, #tpu.memory_space<vmem>>, vector<16x16x128xf32>,
    %cst_53 = arith.constant 0.000000e+00 : f32
    %46 = vector.broadcast %cst_53 : f32 to vector<1x18x128xf32>
    %c0_54 = arith.constant 0 : index
    %c0_55 = arith.constant 0 : index
    %c0_56 = arith.constant 0 : index
    %47 = vector.load %arg8[%c0_54, %c0_55, %c0_56] : memref<18x18x128xf32, #tpu.memory_space<vmem>>, vector<1x18x128xf32>
    tpu.vector_store %arg8[%c0_54, %c0_55, %c0_56], %46 {strides = array<i32>} : memref<18x18x128xf32, #tpu.memory_space<vmem>>, vector<1x18x128xf32>,
    %c17 = arith.constant 17 : index
    %c0_57 = arith.constant 0 : index
    %c0_58 = arith.constant 0 : index
    %48 = vector.load %arg8[%c17, %c0_57, %c0_58] : memref<18x18x128xf32, #tpu.memory_space<vmem>>, vector<1x18x128xf32>
    tpu.vector_store %arg8[%c17, %c0_57, %c0_58], %46 {strides = array<i32>} : memref<18x18x128xf32, #tpu.memory_space<vmem>>, vector<1x18x128xf32>,
    %cst_59 = arith.constant 0.000000e+00 : f32
    %49 = vector.broadcast %cst_59 : f32 to vector<16x1x128xf32>
    %c1_60 = arith.constant 1 : index
    %c0_61 = arith.constant 0 : index
    %c0_62 = arith.constant 0 : index
    %50 = vector.load %arg8[%c1_60, %c0_61, %c0_62] : memref<18x18x128xf32, #tpu.memory_space<vmem>>, vector<16x1x128xf32>
    tpu.vector_store %arg8[%c1_60, %c0_61, %c0_62], %49 {strides = array<i32>} : memref<18x18x128xf32, #tpu.memory_space<vmem>>, vector<16x1x128xf32>,
    %c1_63 = arith.constant 1 : index
    %c17_64 = arith.constant 17 : index
    %c0_65 = arith.constant 0 : index
    %51 = vector.load %arg8[%c1_63, %c17_64, %c0_65] : memref<18x18x128xf32, #tpu.memory_space<vmem>>, vector<16x1x128xf32>
    tpu.vector_store %arg8[%c1_63, %c17_64, %c0_65], %49 {strides = array<i32>} : memref<18x18x128xf32, #tpu.memory_space<vmem>>, vector<16x1x128xf32>,
    %c0_66 = arith.constant 0 : index
    %c0_67 = arith.constant 0 : index
    %c0_68 = arith.constant 0 : index
    %52 = vector.load %arg8[%c0_66, %c0_67, %c0_68] : memref<18x18x128xf32, #tpu.memory_space<vmem>>, vector<16x16x128xf32>
    %53 = vector.shape_cast %52 : vector<16x16x128xf32> to vector<256x128xf32>
    %c0_69 = arith.constant 0 : index
    %c0_70 = arith.constant 0 : index
    %54 = vector.load %arg7[%c0_69, %c0_70] : memref<256x1152xf32, #tpu.memory_space<vmem>>, vector<256x128xf32>
    tpu.vector_store %arg7[%c0_69, %c0_70], %53 {strides = array<i32>} : memref<256x1152xf32, #tpu.memory_space<vmem>>, vector<256x128xf32>,
    %c0_71 = arith.constant 0 : index
    %c1_72 = arith.constant 1 : index
    %c0_73 = arith.constant 0 : index
    %55 = vector.load %arg8[%c0_71, %c1_72, %c0_73] : memref<18x18x128xf32, #tpu.memory_space<vmem>>, vector<16x16x128xf32>
    %56 = vector.shape_cast %55 : vector<16x16x128xf32> to vector<256x128xf32>
    %c0_74 = arith.constant 0 : index
    %c128_75 = arith.constant 128 : index
    %57 = vector.load %arg7[%c0_74, %c128_75] : memref<256x1152xf32, #tpu.memory_space<vmem>>, vector<256x128xf32>
    tpu.vector_store %arg7[%c0_74, %c128_75], %56 {strides = array<i32>} : memref<256x1152xf32, #tpu.memory_space<vmem>>, vector<256x128xf32>,
    %c0_76 = arith.constant 0 : index
    %c2_77 = arith.constant 2 : index
    %c0_78 = arith.constant 0 : index
    %58 = vector.load %arg8[%c0_76, %c2_77, %c0_78] : memref<18x18x128xf32, #tpu.memory_space<vmem>>, vector<16x16x128xf32>
    %59 = vector.shape_cast %58 : vector<16x16x128xf32> to vector<256x128xf32>
    %c0_79 = arith.constant 0 : index
    %c256_80 = arith.constant 256 : index
    %60 = vector.load %arg7[%c0_79, %c256_80] : memref<256x1152xf32, #tpu.memory_space<vmem>>, vector<256x128xf32>
    tpu.vector_store %arg7[%c0_79, %c256_80], %59 {strides = array<i32>} : memref<256x1152xf32, #tpu.memory_space<vmem>>, vector<256x128xf32>,
    %c1_81 = arith.constant 1 : index
    %c0_82 = arith.constant 0 : index
    %c0_83 = arith.constant 0 : index
    %61 = vector.load %arg8[%c1_81, %c0_82, %c0_83] : memref<18x18x128xf32, #tpu.memory_space<vmem>>, vector<16x16x128xf32>
    %62 = vector.shape_cast %61 : vector<16x16x128xf32> to vector<256x128xf32>
    %c0_84 = arith.constant 0 : index
    %c384_85 = arith.constant 384 : index
    %63 = vector.load %arg7[%c0_84, %c384_85] : memref<256x1152xf32, #tpu.memory_space<vmem>>, vector<256x128xf32>
    tpu.vector_store %arg7[%c0_84, %c384_85], %62 {strides = array<i32>} : memref<256x1152xf32, #tpu.memory_space<vmem>>, vector<256x128xf32>,
    %c1_86 = arith.constant 1 : index
    %c1_87 = arith.constant 1 : index
    %c0_88 = arith.constant 0 : index
    %64 = vector.load %arg8[%c1_86, %c1_87, %c0_88] : memref<18x18x128xf32, #tpu.memory_space<vmem>>, vector<16x16x128xf32>
    %65 = vector.shape_cast %64 : vector<16x16x128xf32> to vector<256x128xf32>
    %c0_89 = arith.constant 0 : index
    %c512_90 = arith.constant 512 : index
    %66 = vector.load %arg7[%c0_89, %c512_90] : memref<256x1152xf32, #tpu.memory_space<vmem>>, vector<256x128xf32>
    tpu.vector_store %arg7[%c0_89, %c512_90], %65 {strides = array<i32>} : memref<256x1152xf32, #tpu.memory_space<vmem>>, vector<256x128xf32>,
    %c1_91 = arith.constant 1 : index
    %c2_92 = arith.constant 2 : index
    %c0_93 = arith.constant 0 : index
    %67 = vector.load %arg8[%c1_91, %c2_92, %c0_93] : memref<18x18x128xf32, #tpu.memory_space<vmem>>, vector<16x16x128xf32>
    %68 = vector.shape_cast %67 : vector<16x16x128xf32> to vector<256x128xf32>
    %c0_94 = arith.constant 0 : index
    %c640_95 = arith.constant 640 : index
    %69 = vector.load %arg7[%c0_94, %c640_95] : memref<256x1152xf32, #tpu.memory_space<vmem>>, vector<256x128xf32>
    tpu.vector_store %arg7[%c0_94, %c640_95], %68 {strides = array<i32>} : memref<256x1152xf32, #tpu.memory_space<vmem>>, vector<256x128xf32>,
    %c2_96 = arith.constant 2 : index
    %c0_97 = arith.constant 0 : index
    %c0_98 = arith.constant 0 : index
    %70 = vector.load %arg8[%c2_96, %c0_97, %c0_98] : memref<18x18x128xf32, #tpu.memory_space<vmem>>, vector<16x16x128xf32>
    %71 = vector.shape_cast %70 : vector<16x16x128xf32> to vector<256x128xf32>
    %c0_99 = arith.constant 0 : index
    %c768_100 = arith.constant 768 : index
    %72 = vector.load %arg7[%c0_99, %c768_100] : memref<256x1152xf32, #tpu.memory_space<vmem>>, vector<256x128xf32>
    tpu.vector_store %arg7[%c0_99, %c768_100], %71 {strides = array<i32>} : memref<256x1152xf32, #tpu.memory_space<vmem>>, vector<256x128xf32>,
    %c2_101 = arith.constant 2 : index
    %c1_102 = arith.constant 1 : index
    %c0_103 = arith.constant 0 : index
    %73 = vector.load %arg8[%c2_101, %c1_102, %c0_103] : memref<18x18x128xf32, #tpu.memory_space<vmem>>, vector<16x16x128xf32>
    %74 = vector.shape_cast %73 : vector<16x16x128xf32> to vector<256x128xf32>
    %c0_104 = arith.constant 0 : index
    %c896_105 = arith.constant 896 : index
    %75 = vector.load %arg7[%c0_104, %c896_105] : memref<256x1152xf32, #tpu.memory_space<vmem>>, vector<256x128xf32>
    tpu.vector_store %arg7[%c0_104, %c896_105], %74 {strides = array<i32>} : memref<256x1152xf32, #tpu.memory_space<vmem>>, vector<256x128xf32>,
    %c2_106 = arith.constant 2 : index
    %c2_107 = arith.constant 2 : index
    %c0_108 = arith.constant 0 : index
    %76 = vector.load %arg8[%c2_106, %c2_107, %c0_108] : memref<18x18x128xf32, #tpu.memory_space<vmem>>, vector<16x16x128xf32>
    %77 = vector.shape_cast %76 : vector<16x16x128xf32> to vector<256x128xf32>
    %c0_109 = arith.constant 0 : index
    %c1024_110 = arith.constant 1024 : index
    %78 = vector.load %arg7[%c0_109, %c1024_110] : memref<256x1152xf32, #tpu.memory_space<vmem>>, vector<256x128xf32>
    tpu.vector_store %arg7[%c0_109, %c1024_110], %77 {strides = array<i32>} : memref<256x1152xf32, #tpu.memory_space<vmem>>, vector<256x128xf32>,
    %c0_111 = arith.constant 0 : index
    %c0_112 = arith.constant 0 : index
    %79 = vector.load %arg7[%c0_111, %c0_112] : memref<256x1152xf32, #tpu.memory_space<vmem>>, vector<256x1152xf32>
    %c0_113 = arith.constant 0 : index
    %c0_114 = arith.constant 0 : index
    %80 = vector.load %arg4[%c0_113, %c0_114] : memref<1152x128xf32, #tpu.memory_space<vmem>>, vector<1152x128xf32>
    %cst_115 = arith.constant dense<0.000000e+00> : vector<256x128xf32>
    %81 = tpu.matmul %79, %80, %cst_115 {dimension_numbers = #tpu.dot_dimension_numbers<[1], [0], [0], [1], [0, 0, 1, 1], [], []>} : vector<256x1152xf32>, vector<1152x128xf32>, vector<256x128xf32> -> vector<256x128xf32>
    %c0_116 = arith.constant 0 : index
    %c0_117 = arith.constant 0 : index
    %82 = vector.load %arg5[%c0_116, %c0_117] : memref<1x128xf32, #tpu.memory_space<vmem>>, vector<1x128xf32>
    %83 = vector.broadcast %82 : vector<1x128xf32> to vector<256x128xf32>
    %84 = arith.addf %81, %83 : vector<256x128xf32>
    %c0_118 = arith.constant 0 : index
    %c1_119 = arith.constant 1 : index
    %c1_120 = arith.constant 1 : index
    %c0_121 = arith.constant 0 : index
    %85 = vector.load %arg1[%c0_118, %c1_119, %c1_120, %c0_121] : memref<1x18x18x128xf32, #tpu.memory_space<vmem>>, vector<1x16x16x128xf32>
    %86 = vector.shape_cast %85 : vector<1x16x16x128xf32> to vector<16x16x128xf32>
    %87 = vector.shape_cast %86 : vector<16x16x128xf32> to vector<256x128xf32>
    %88 = arith.addf %84, %87 : vector<256x128xf32>
    %cst_122 = arith.constant 0.000000e+00 : f32
    %89 = vector.broadcast %cst_122 : f32 to vector<256x128xf32>
    %90 = arith.maximumf %88, %89 : vector<256x128xf32>
    %91 = vector.shape_cast %90 : vector<256x128xf32> to vector<16x16x128xf32>
    %c0_123 = arith.constant 0 : index
    %c0_124 = arith.constant 0 : index
    %c0_125 = arith.constant 0 : index
    %c0_126 = arith.constant 0 : index
    %92 = vector.load %arg6[%c0_123, %c0_124, %c0_125, %c0_126] : memref<1x16x16x128xf32, #tpu.memory_space<vmem>>, vector<1x16x16x128xf32>
    %93 = vector.shape_cast %92 : vector<1x16x16x128xf32> to vector<16x16x128xf32>
    %94 = vector.shape_cast %91 : vector<16x16x128xf32> to vector<1x16x16x128xf32>
    tpu.vector_store %arg6[%c0_123, %c0_124, %c0_125, %c0_126], %94 {strides = array<i32>} : memref<1x16x16x128xf32, #tpu.memory_space<vmem>>, vector<1x16x16x128xf32>,
    return
  }
  func.func @transform_0(%arg0: i32) -> (i32, i32, i32, i32) {
    %c0_i32 = arith.constant 0 : i32
    %c0_i32_0 = arith.constant 0 : i32
    %c0_i32_1 = arith.constant 0 : i32
    %c0_i32_2 = arith.constant 0 : i32
    return %arg0, %c0_i32, %c0_i32_0, %c0_i32_1 : i32, i32, i32, i32
  }
  func.func @transform_1(%arg0: i32) -> (i32, i32) {
    %c0_i32 = arith.constant 0 : i32
    %c0_i32_0 = arith.constant 0 : i32
    %c0_i32_1 = arith.constant 0 : i32
    return %c0_i32, %c0_i32_0 : i32, i32
  }
  func.func @transform_2(%arg0: i32) -> (i32, i32) {
    %c0_i32 = arith.constant 0 : i32
    %c0_i32_0 = arith.constant 0 : i32
    %c0_i32_1 = arith.constant 0 : i32
    return %c0_i32, %c0_i32_0 : i32, i32
  }
  func.func @transform_3(%arg0: i32) -> (i32, i32) {
    %c0_i32 = arith.constant 0 : i32
    %c0_i32_0 = arith.constant 0 : i32
    %c0_i32_1 = arith.constant 0 : i32
    return %c0_i32, %c0_i32_0 : i32, i32
  }
  func.func @transform_4(%arg0: i32) -> (i32, i32) {
    %c0_i32 = arith.constant 0 : i32
    %c0_i32_0 = arith.constant 0 : i32
    %c0_i32_1 = arith.constant 0 : i32
    return %c0_i32, %c0_i32_0 : i32, i32
  }
  func.func @transform_5(%arg0: i32) -> (i32, i32, i32, i32) {
    %c0_i32 = arith.constant 0 : i32
    %c0_i32_0 = arith.constant 0 : i32
    %c0_i32_1 = arith.constant 0 : i32
    %c0_i32_2 = arith.constant 0 : i32
    return %arg0, %c0_i32, %c0_i32_0, %c0_i32_1 : i32, i32, i32, i32
  }
}

</mosaic_0001>

<llo_original>
// kernel: tpu_custom_call.1
$region0: #{tpu_custom_call.1}
  #allocation0 [shape = 'u32[]', space=smem, size = 0x4, offset = 0x4, fixed_abs, tag = 'smem constant byte address 0x4 - core index']
  #allocation1 [shape = 'u32[144,128]{1,0:T(1,128)}', space=vmem, size = 0x12000, scoped, tag = 'internal scratch']
  #allocation2 [shape = 'f32[256,1152]{1,0:T(8,128)}', space=vmem, size = 0x120000, scoped, tag = 'scratch operand']
  #allocation3 [shape = 'f32[18,18,128]{2,1,0:T(8,128)}', space=vmem, size = 0x36000, scoped, tag = 'scratch operand']
  %s0 = inlined_call_operand.vmem [shape: f32[2,18,18,128], index: 0, kind: input, shape index: {}]
  %s1 = inlined_call_operand.vmem [shape: f32[1152,128], index: 1, kind: input, shape index: {}]
  %s2 = inlined_call_operand.vmem [shape: f32[1,128], index: 2, kind: input, shape index: {}]
  %s3 = inlined_call_operand.hbm [shape: f32[1152,128], index: 3, kind: input, shape index: {}]
  %s4 = inlined_call_operand.vmem [shape: f32[1,128], index: 4, kind: input, shape index: {}]
  %s5 = inlined_call_operand.hbm [shape: f32[2,16,16,128], index: 5, kind: output, shape index: {}]
  %s6 = sld [smem:[#allocation0]]
  $region57: #{tpu_custom_call.1} parent=0
    _
  %s8 = ssub.s32 1, %s6
  %s9 = scalar_select 0, %s8, %s6
  $region1: #{tpu_custom_call.1} parent=0
    #allocation4 [shape = 'u8[589824]{0}', space=vmem, size = 0x90000, scoped, tag = 'input window, operand 3, single buffered']
    #allocation5 [shape = 's32[2]{0}', space=sflag, size = 0x8, scoped, tag = 'scoped memory for tpu_custom_call.1']
    #allocation6 [shape = 's32[2]{0}', space=sflag, size = 0x8, scoped, tag = 'scoped memory for tpu_custom_call.1']
    #allocation7 [shape = 'u8[262144]{0}', space=vmem, size = 0x40000, scoped, tag = 'output window, operand 0']
    %10 = vsyncpa [#allocation5], 0
    %11 = vsyncpa [#allocation6], 0
    %s12 = scalar_lea.sflag [#allocation6], 1
    %13 = vsyncpa %s12, 0
    loop: start=0, step=1, limit=4
    $region2: #{tpu_custom_call.1} parent=1 // loop_pre_header
      _
    $region3: #{tpu_custom_call.1} parent=1 // loop_header
      %s15 = sphi 0, %s19
      %p16 = scmp.ge.s32.totalorder %s15, 4
      %s25 = sphi 0, %s27
      %s28 = sphi 0, %s25
      %s29 = sphi 0, %s28
      %s45 = sphi 0, %s29
      %s49 = sphi 0, %s49
      %s51 = sphi 0, %s49
      %s52 = sphi 0, %s51
      %s66 = sphi 0, %s52
      %s70 = sphi 0, %s70
      %s72 = sphi 0, %s70
      %s73 = sphi 0, %s72
      %s87 = sphi 0, %s73
      %s91 = sphi 0, %s91
      %s93 = sphi 0, %s91
      %s94 = sphi 0, %s93
      %s108 = sphi 0, %s94
      %s112 = sphi 0, %s112
      %s114 = sphi 0, %s112
      %s115 = sphi 0, %s114
      %s129 = sphi 0, %s115
      %s135 = sphi 0, %s137
      %s138 = sphi 0, %s135
      %s139 = sphi 0, %s138
      %s155 = sphi 0, %s139
    $region4: #{tpu_custom_call.1} parent=1 // loop_header_branch
      %18 = sbr.rel (%p16) target = $region8
    $region5: #{tpu_custom_call.1} parent=1 // loop_body
      %s20 = ssub.s32 %s15, 1
      %s21 = ssub.s32 %s15, 2
      %s22 = sadd.s32 %s15, 1
      %s23 = ssub.s32 %s15, %s22
      %p24 = scmp.eq.s32.totalorder %s23, 0
      %s26 = sadd.s32 %s25, 1
      %s27 = scalar_select %p24, %s25, %s26
      %p30 = pneg %p24
      %p31 = scmp.eq.s32.totalorder %s15, 1
      %p32 = por %p30, %p31
      %p33 = scmp.ne.s32.totalorder %s25, %s28
      %p34 = scmp.eq.s32.totalorder %s15, 0
      %p35 = por %p33, %p34
      %p36 = scmp.ne.s32.totalorder %s25, %s28
      %p37 = scmp.eq.s32.totalorder %s20, 1
      %p38 = por %p36, %p37
      %p39 = scmp.ne.s32.totalorder %s28, %s29
      %p40 = scmp.eq.s32.totalorder %s20, 0
      %p41 = por %p39, %p40
      %p42 = scmp.ne.s32.totalorder %s28, %s29
      %p43 = scmp.eq.s32.totalorder %s21, 1
      %p44 = por %p42, %p43
      %p46 = scmp.ne.s32.totalorder %s29, %s45
      %p47 = scmp.eq.s32.totalorder %s21, 0
      %p48 = por %p46, %p47
      %s50 = sadd.s32 %s49, 1
      %p53 = scmp.eq.s32.totalorder %s15, 1
      %p54 = scmp.ne.s32.totalorder %s49, %s51
      %p55 = scmp.eq.s32.totalorder %s15, 0
      %p56 = por %p54, %p55
      %p57 = scmp.ne.s32.totalorder %s49, %s51
      %p58 = scmp.eq.s32.totalorder %s20, 1
      %p59 = por %p57, %p58
      %p60 = scmp.ne.s32.totalorder %s51, %s52
      %p61 = scmp.eq.s32.totalorder %s20, 0
      %p62 = por %p60, %p61
      %p63 = scmp.ne.s32.totalorder %s51, %s52
      %p64 = scmp.eq.s32.totalorder %s21, 1
      %p65 = por %p63, %p64
      %p67 = scmp.ne.s32.totalorder %s52, %s66
      %p68 = scmp.eq.s32.totalorder %s21, 0
      %p69 = por %p67, %p68
      %s71 = sadd.s32 %s70, 1
      %p74 = scmp.eq.s32.totalorder %s15, 1
      %p75 = scmp.ne.s32.totalorder %s70, %s72
      %p76 = scmp.eq.s32.totalorder %s15, 0
      %p77 = por %p75, %p76
      %p78 = scmp.ne.s32.totalorder %s70, %s72
      %p79 = scmp.eq.s32.totalorder %s20, 1
      %p80 = por %p78, %p79
      %p81 = scmp.ne.s32.totalorder %s72, %s73
      %p82 = scmp.eq.s32.totalorder %s20, 0
      %p83 = por %p81, %p82
      %p84 = scmp.ne.s32.totalorder %s72, %s73
      %p85 = scmp.eq.s32.totalorder %s21, 1
      %p86 = por %p84, %p85
      %p88 = scmp.ne.s32.totalorder %s73, %s87
      %p89 = scmp.eq.s32.totalorder %s21, 0
      %p90 = por %p88, %p89
      %s92 = sadd.s32 %s91, 1
      %p95 = scmp.eq.s32.totalorder %s15, 1
      %p96 = scmp.ne.s32.totalorder %s91, %s93
      %p97 = scmp.eq.s32.totalorder %s15, 0
      %p98 = por %p96, %p97
      %p99 = scmp.ne.s32.totalorder %s91, %s93
      %p100 = scmp.eq.s32.totalorder %s20, 1
      %p101 = por %p99, %p100
      %p102 = scmp.ne.s32.totalorder %s93, %s94
      %p103 = scmp.eq.s32.totalorder %s20, 0
      %p104 = por %p102, %p103
      %p105 = scmp.ne.s32.totalorder %s93, %s94
      %p106 = scmp.eq.s32.totalorder %s21, 1
      %p107 = por %p105, %p106
      %p109 = scmp.ne.s32.totalorder %s94, %s108
      %p110 = scmp.eq.s32.totalorder %s21, 0
      %p111 = por %p109, %p110
      %s113 = sadd.s32 %s112, 1
      %p116 = scmp.eq.s32.totalorder %s15, 1
      %p117 = scmp.ne.s32.totalorder %s112, %s114
      %p118 = scmp.eq.s32.totalorder %s15, 0
      %p119 = por %p117, %p118
      %p120 = scmp.ne.s32.totalorder %s112, %s114
      %p121 = scmp.eq.s32.totalorder %s20, 1
      %p122 = por %p120, %p121
      %p123 = scmp.ne.s32.totalorder %s114, %s115
      %p124 = scmp.eq.s32.totalorder %s20, 0
      %p125 = por %p123, %p124
      %p126 = scmp.ne.s32.totalorder %s114, %s115
      %p127 = scmp.eq.s32.totalorder %s21, 1
      %p128 = por %p126, %p127
      %p130 = scmp.ne.s32.totalorder %s115, %s129
      %p131 = scmp.eq.s32.totalorder %s21, 0
      %p132 = por %p130, %p131
      %s133 = ssub.s32 %s15, %s22
      %p134 = scmp.eq.s32.totalorder %s133, 0
      %s136 = sadd.s32 %s135, 1
      %s137 = scalar_select %p134, %s135, %s136
      %p140 = pneg %p134
      %p141 = scmp.eq.s32.totalorder %s15, 1
      %p142 = por %p140, %p141
      %p143 = scmp.ne.s32.totalorder %s135, %s138
      %p144 = scmp.eq.s32.totalorder %s15, 0
      %p145 = por %p143, %p144
      %p146 = scmp.ne.s32.totalorder %s135, %s138
      %p147 = scmp.eq.s32.totalorder %s20, 1
      %p148 = por %p146, %p147
      %p149 = scmp.ne.s32.totalorder %s138, %s139
      %p150 = scmp.eq.s32.totalorder %s20, 0
      %p151 = por %p149, %p150
      %p152 = scmp.ne.s32.totalorder %s138, %s139
      %p153 = scmp.eq.s32.totalorder %s21, 1
      %p154 = por %p152, %p153
      %p156 = scmp.ne.s32.totalorder %s139, %s155
      %p157 = scmp.eq.s32.totalorder %s21, 0
      %p158 = por %p156, %p157
      %p159 = scmp.le.s32.totalorder 1, %s15
      %p160 = scmp.lt.s32.totalorder %s15, 3
      %p161 = pnand %p159, %p160
      %p162 = pneg %p161
      // Predicated region
      $region9: #{tpu_custom_call.1} parent=5 // pred_check
        _
      $region10: #{tpu_custom_call.1} parent=5 // pred_check_branch
        %164 = sbr.rel (%p161) target = $region12
      $region11: #{tpu_custom_call.1} parent=5 // pred_region
        %s165 = ssub.s32 %s15, 1
        // Predicated region
        $region13: #{tpu_custom_call.1} parent=11 // pred_check
          %p166 = pneg %p62
        $region14: #{tpu_custom_call.1} parent=11 // pred_check_branch
          %168 = sbr.rel (%p166) target = $region16
        $region15: #{tpu_custom_call.1} parent=11 // pred_region
          _
        $region16: #{tpu_custom_call.1} parent=11 // pred_fallthru
          _
        // Predicated region
        $region17: #{tpu_custom_call.1} parent=11 // pred_check
          %p169 = pneg %p83
        $region18: #{tpu_custom_call.1} parent=11 // pred_check_branch
          %171 = sbr.rel (%p169) target = $region20
        $region19: #{tpu_custom_call.1} parent=11 // pred_region
          _
        $region20: #{tpu_custom_call.1} parent=11 // pred_fallthru
          _
        // Predicated region
        $region21: #{tpu_custom_call.1} parent=11 // pred_check
          %p172 = pneg %p104
        $region22: #{tpu_custom_call.1} parent=11 // pred_check_branch
          %174 = sbr.rel (%p172) target = $region24
        $region23: #{tpu_custom_call.1} parent=11 // pred_region
          %s176 = ssub.s32 18432, 18432
          %177 = vsyncadd [#allocation5], %s176
          %s178 = sshll.u32 [#allocation4], 4
          %s179 = int_to_ptr.vmem [resolvable:$true] %s178
          %184 = dma.hbm_to_vmem [thread:$0]  %s3, 18432, %s179, [#allocation5], 128, 128, 8
        $region24: #{tpu_custom_call.1} parent=11 // pred_fallthru
          _
        // Predicated region
        $region25: #{tpu_custom_call.1} parent=11 // pred_check
          %p185 = pneg %p125
        $region26: #{tpu_custom_call.1} parent=11 // pred_check_branch
          %187 = sbr.rel (%p185) target = $region28
        $region27: #{tpu_custom_call.1} parent=11 // pred_region
          _
        $region28: #{tpu_custom_call.1} parent=11 // pred_fallthru
          _
      $region12: #{tpu_custom_call.1} parent=5 // pred_fallthru
        _
      %p188 = scmp.lt.s32.totalorder %s15, 2
      // Predicated region
      $region29: #{tpu_custom_call.1} parent=5 // pred_check
        %p189 = pneg %p188
      $region30: #{tpu_custom_call.1} parent=5 // pred_check_branch
        %191 = sbr.rel (%p189) target = $region32
      $region31: #{tpu_custom_call.1} parent=5 // pred_region
        // Predicated region
        $region33: #{tpu_custom_call.1} parent=31 // pred_check
          %p192 = pneg %p35
        $region34: #{tpu_custom_call.1} parent=31 // pred_check_branch
          %194 = sbr.rel (%p192) target = $region36
        $region35: #{tpu_custom_call.1} parent=31 // pred_region
          %p195 = scmp.lt.s32.totalorder %s15, 1
          %s196 = scalar_select %p195, %s15, 1
          %s197 = smul.addr %s196, 54
          %s198 = smul.addr %s197, 8
          %s199 = scalar_lea.vmem %s0, %s198
        $region36: #{tpu_custom_call.1} parent=31 // pred_fallthru
          _
      $region32: #{tpu_custom_call.1} parent=5 // pred_fallthru
        _
      %p200 = scmp.le.s32.totalorder 1, %s15
      %p201 = scmp.lt.s32.totalorder %s15, 3
      %p202 = pnand %p200, %p201
      %p203 = pneg %p202
      // Predicated region
      $region37: #{tpu_custom_call.1} parent=5 // pred_check
        _
      $region38: #{tpu_custom_call.1} parent=5 // pred_check_branch
        %205 = sbr.rel (%p202) target = $region40
      $region39: #{tpu_custom_call.1} parent=5 // pred_region
        %s206 = ssub.s32 %s15, 1
        // Predicated region
        $region41: #{tpu_custom_call.1} parent=39 // pred_check
          %p207 = pneg %p104
        $region42: #{tpu_custom_call.1} parent=39 // pred_check_branch
          %209 = sbr.rel (%p207) target = $region44
        $region43: #{tpu_custom_call.1} parent=39 // pred_region
          %210 = dma.done [#allocation5], 18432
        $region44: #{tpu_custom_call.1} parent=39 // pred_fallthru
          _
        %p211 = scmp.lt.s32.totalorder %s20, 1
        %s212 = scalar_select %p211, %s20, 1
        %s213 = smul.addr %s212, 54
        %s214 = smul.addr %s213, 8
        %s215 = scalar_lea.vmem %s0, %s214
        %p216 = pneg %p41
        %p217 = pneg %p38
        %p218 = pneg %p62
        %p219 = pneg %p59
        %p220 = pneg %p83
        %p221 = pneg %p80
        %p222 = pneg %p104
        %p223 = pneg %p101
        %p224 = pneg %p125
        %p225 = pneg %p122
        %p226 = pneg %p151
        %p227 = pneg %p148
        %s228 = sand.u32 %s138, 1
        %s229 = scalar_lea.sflag [#allocation6], %s228
        %s230 = sand.u32 %s138, 1
        %s231 = smul.addr %s230, 256
        %s232 = scalar_lea.vmem [#allocation7], %s231
        %p233 = scmp.lt.s32.totalorder %s20, 1
        %s234 = scalar_select %p233, %s20, 1
        %s235 = smul.addr %s234, 54
        %s236 = smul.addr %s235, 8
        %s237 = scalar_lea.vmem %s0, %s236
        %v238 = vld [vmem:[%s237] sm:$0xff]
        %v239 = vld [vmem:[%s237 + $0x8] sm:$0xff]
        %v240 = vld [vmem:[%s237 + $0x18] sm:$0xff]
        %v241 = vld [vmem:[%s237 + $0x20] sm:$0xff]
        %v242 = vld [vmem:[%s237 + $0x30] sm:$0xff]
        %v243 = vld [vmem:[%s237 + $0x38] sm:$0xff]
        %v244 = vld [vmem:[%s237 + $0x48] sm:$0xff]
        %v245 = vld [vmem:[%s237 + $0x50] sm:$0xff]
        %v246 = vld [vmem:[%s237 + $0x60] sm:$0xff]
        %v247 = vld [vmem:[%s237 + $0x68] sm:$0xff]
        %v248 = vld [vmem:[%s237 + $0x78] sm:$0xff]
        %v249 = vld [vmem:[%s237 + $0x80] sm:$0xff]
        %v250 = vld [vmem:[%s237 + $0x90] sm:$0xff]
        %v251 = vld [vmem:[%s237 + $0x98] sm:$0xff]
        %v252 = vld [vmem:[%s237 + $0xa8] sm:$0xff]
        %v253 = vld [vmem:[%s237 + $0xb0] sm:$0xff]
        %v254 = vld [vmem:[%s237 + $0xc0] sm:$0xff]
        %v255 = vld [vmem:[%s237 + $0xc8] sm:$0xff]
        %v256 = vld [vmem:[%s237 + $0xd8] sm:$0xff]
        %v257 = vld [vmem:[%s237 + $0xe0] sm:$0xff]
        %v258 = vld [vmem:[%s237 + $0xf0] sm:$0xff]
        %v259 = vld [vmem:[%s237 + $0xf8] sm:$0xff]
        %v260 = vld [vmem:[%s237 + $0x108] sm:$0xff]
        %v261 = vld [vmem:[%s237 + $0x110] sm:$0xff]
        %v262 = vld [vmem:[%s237 + $0x120] sm:$0xff]
        %v263 = vld [vmem:[%s237 + $0x128] sm:$0xff]
        %v264 = vld [vmem:[%s237 + $0x138] sm:$0xff]
        %v265 = vld [vmem:[%s237 + $0x140] sm:$0xff]
        %v266 = vld [vmem:[%s237 + $0x150] sm:$0xff]
        %v267 = vld [vmem:[%s237 + $0x158] sm:$0xff]
        %v268 = vld [vmem:[%s237 + $0x168] sm:$0xff]
        %v269 = vld [vmem:[%s237 + $0x170] sm:$0xff]
        %270 = vst [vmem:[#allocation2] sm:$0xff] %v238
        %271 = vst [vmem:[#allocation2 + $0x48] sm:$0xff] %v239
        %272 = vst [vmem:[#allocation2 + $0x90] sm:$0xff] %v240
        %273 = vst [vmem:[#allocation2 + $0xd8] sm:$0xff] %v241
        %274 = vst [vmem:[#allocation2 + $0x120] sm:$0xff] %v242
        %275 = vst [vmem:[#allocation2 + $0x168] sm:$0xff] %v243
        %276 = vst [vmem:[#allocation2 + $0x1b0] sm:$0xff] %v244
        %277 = vst [vmem:[#allocation2 + $0x1f8] sm:$0xff] %v245
        %278 = vst [vmem:[#allocation2 + $0x240] sm:$0xff] %v246
        %279 = vst [vmem:[#allocation2 + $0x288] sm:$0xff] %v247
        %280 = vst [vmem:[#allocation2 + $0x2d0] sm:$0xff] %v248
        %281 = vst [vmem:[#allocation2 + $0x318] sm:$0xff] %v249
        %282 = vst [vmem:[#allocation2 + $0x360] sm:$0xff] %v250
        %283 = vst [vmem:[#allocation2 + $0x3a8] sm:$0xff] %v251
        %284 = vst [vmem:[#allocation2 + $0x3f0] sm:$0xff] %v252
        %285 = vst [vmem:[#allocation2 + $0x438] sm:$0xff] %v253
        %286 = vst [vmem:[#allocation2 + $0x480] sm:$0xff] %v254
        %287 = vst [vmem:[#allocation2 + $0x4c8] sm:$0xff] %v255
        %288 = vst [vmem:[#allocation2 + $0x510] sm:$0xff] %v256
        %289 = vst [vmem:[#allocation2 + $0x558] sm:$0xff] %v257
        %290 = vst [vmem:[#allocation2 + $0x5a0] sm:$0xff] %v258
        %291 = vst [vmem:[#allocation2 + $0x5e8] sm:$0xff] %v259
        %292 = vst [vmem:[#allocation2 + $0x630] sm:$0xff] %v260
        %293 = vst [vmem:[#allocation2 + $0x678] sm:$0xff] %v261
        %294 = vst [vmem:[#allocation2 + $0x6c0] sm:$0xff] %v262
        %295 = vst [vmem:[#allocation2 + $0x708] sm:$0xff] %v263
        %296 = vst [vmem:[#allocation2 + $0x750] sm:$0xff] %v264
        %297 = vst [vmem:[#allocation2 + $0x798] sm:$0xff] %v265
        %298 = vst [vmem:[#allocation2 + $0x7e0] sm:$0xff] %v266
        %299 = vst [vmem:[#allocation2 + $0x828] sm:$0xff] %v267
        %300 = vst [vmem:[#allocation2 + $0x870] sm:$0xff] %v268
        %301 = vst [vmem:[#allocation2 + $0x8b8] sm:$0xff] %v269
        %v302 = vld [vmem:[%s237 + $0x1] sm:$0xff]
        %v303 = vld [vmem:[%s237 + $0x9] sm:$0xff]
        %v304 = vld [vmem:[%s237 + $0x19] sm:$0xff]
        %v305 = vld [vmem:[%s237 + $0x21] sm:$0xff]
        %v306 = vld [vmem:[%s237 + $0x31] sm:$0xff]
        %v307 = vld [vmem:[%s237 + $0x39] sm:$0xff]
        %v308 = vld [vmem:[%s237 + $0x49] sm:$0xff]
        %v309 = vld [vmem:[%s237 + $0x51] sm:$0xff]
        %v310 = vld [vmem:[%s237 + $0x61] sm:$0xff]
        %v311 = vld [vmem:[%s237 + $0x69] sm:$0xff]
        %v312 = vld [vmem:[%s237 + $0x79] sm:$0xff]
        %v313 = vld [vmem:[%s237 + $0x81] sm:$0xff]
        %v314 = vld [vmem:[%s237 + $0x91] sm:$0xff]
        %v315 = vld [vmem:[%s237 + $0x99] sm:$0xff]
        %v316 = vld [vmem:[%s237 + $0xa9] sm:$0xff]
        %v317 = vld [vmem:[%s237 + $0xb1] sm:$0xff]
        %v318 = vld [vmem:[%s237 + $0xc1] sm:$0xff]
        %v319 = vld [vmem:[%s237 + $0xc9] sm:$0xff]
        %v320 = vld [vmem:[%s237 + $0xd9] sm:$0xff]
        %v321 = vld [vmem:[%s237 + $0xe1] sm:$0xff]
        %v322 = vld [vmem:[%s237 + $0xf1] sm:$0xff]
        %v323 = vld [vmem:[%s237 + $0xf9] sm:$0xff]
        %v324 = vld [vmem:[%s237 + $0x109] sm:$0xff]
        %v325 = vld [vmem:[%s237 + $0x111] sm:$0xff]
        %v326 = vld [vmem:[%s237 + $0x121] sm:$0xff]
        %v327 = vld [vmem:[%s237 + $0x129] sm:$0xff]
        %v328 = vld [vmem:[%s237 + $0x139] sm:$0xff]
        %v329 = vld [vmem:[%s237 + $0x141] sm:$0xff]
        %v330 = vld [vmem:[%s237 + $0x151] sm:$0xff]
        %v331 = vld [vmem:[%s237 + $0x159] sm:$0xff]
        %v332 = vld [vmem:[%s237 + $0x169] sm:$0xff]
        %v333 = vld [vmem:[%s237 + $0x171] sm:$0xff]
        %334 = vst [vmem:[#allocation2 + $0x8] sm:$0xff] %v302
        %335 = vst [vmem:[#allocation2 + $0x50] sm:$0xff] %v303
        %336 = vst [vmem:[#allocation2 + $0x98] sm:$0xff] %v304
        %337 = vst [vmem:[#allocation2 + $0xe0] sm:$0xff] %v305
        %338 = vst [vmem:[#allocation2 + $0x128] sm:$0xff] %v306
        %339 = vst [vmem:[#allocation2 + $0x170] sm:$0xff] %v307
        %340 = vst [vmem:[#allocation2 + $0x1b8] sm:$0xff] %v308
        %341 = vst [vmem:[#allocation2 + $0x200] sm:$0xff] %v309
        %342 = vst [vmem:[#allocation2 + $0x248] sm:$0xff] %v310
        %343 = vst [vmem:[#allocation2 + $0x290] sm:$0xff] %v311
        %344 = vst [vmem:[#allocation2 + $0x2d8] sm:$0xff] %v312
        %345 = vst [vmem:[#allocation2 + $0x320] sm:$0xff] %v313
        %346 = vst [vmem:[#allocation2 + $0x368] sm:$0xff] %v314
        %347 = vst [vmem:[#allocation2 + $0x3b0] sm:$0xff] %v315
        %348 = vst [vmem:[#allocation2 + $0x3f8] sm:$0xff] %v316
        %349 = vst [vmem:[#allocation2 + $0x440] sm:$0xff] %v317
        %350 = vst [vmem:[#allocation2 + $0x488] sm:$0xff] %v318
        %351 = vst [vmem:[#allocation2 + $0x4d0] sm:$0xff] %v319
        %352 = vst [vmem:[#allocation2 + $0x518] sm:$0xff] %v320
        %353 = vst [vmem:[#allocation2 + $0x560] sm:$0xff] %v321
        %354 = vst [vmem:[#allocation2 + $0x5a8] sm:$0xff] %v322
        %355 = vst [vmem:[#allocation2 + $0x5f0] sm:$0xff] %v323
        %356 = vst [vmem:[#allocation2 + $0x638] sm:$0xff] %v324
        %357 = vst [vmem:[#allocation2 + $0x680] sm:$0xff] %v325
        %358 = vst [vmem:[#allocation2 + $0x6c8] sm:$0xff] %v326
        %359 = vst [vmem:[#allocation2 + $0x710] sm:$0xff] %v327
        %360 = vst [vmem:[#allocation2 + $0x758] sm:$0xff] %v328
        %361 = vst [vmem:[#allocation2 + $0x7a0] sm:$0xff] %v329
        %362 = vst [vmem:[#allocation2 + $0x7e8] sm:$0xff] %v330
        %363 = vst [vmem:[#allocation2 + $0x830] sm:$0xff] %v331
        %364 = vst [vmem:[#allocation2 + $0x878] sm:$0xff] %v332
        %365 = vst [vmem:[#allocation2 + $0x8c0] sm:$0xff] %v333
        %v366 = vld [vmem:[%s237 + $0x2] sm:$0xff]
        %v367 = vld [vmem:[%s237 + $0xa] sm:$0xff]
        %v368 = vld [vmem:[%s237 + $0x1a] sm:$0xff]
        %v369 = vld [vmem:[%s237 + $0x22] sm:$0xff]
        %v370 = vld [vmem:[%s237 + $0x32] sm:$0xff]
        %v371 = vld [vmem:[%s237 + $0x3a] sm:$0xff]
        %v372 = vld [vmem:[%s237 + $0x4a] sm:$0xff]
        %v373 = vld [vmem:[%s237 + $0x52] sm:$0xff]
        %v374 = vld [vmem:[%s237 + $0x62] sm:$0xff]
        %v375 = vld [vmem:[%s237 + $0x6a] sm:$0xff]
        %v376 = vld [vmem:[%s237 + $0x7a] sm:$0xff]
        %v377 = vld [vmem:[%s237 + $0x82] sm:$0xff]
        %v378 = vld [vmem:[%s237 + $0x92] sm:$0xff]
        %v379 = vld [vmem:[%s237 + $0x9a] sm:$0xff]
        %v380 = vld [vmem:[%s237 + $0xaa] sm:$0xff]
        %v381 = vld [vmem:[%s237 + $0xb2] sm:$0xff]
        %v382 = vld [vmem:[%s237 + $0xc2] sm:$0xff]
        %v383 = vld [vmem:[%s237 + $0xca] sm:$0xff]
        %v384 = vld [vmem:[%s237 + $0xda] sm:$0xff]
        %v385 = vld [vmem:[%s237 + $0xe2] sm:$0xff]
        %v386 = vld [vmem:[%s237 + $0xf2] sm:$0xff]
        %v387 = vld [vmem:[%s237 + $0xfa] sm:$0xff]
        %v388 = vld [vmem:[%s237 + $0x10a] sm:$0xff]
        %v389 = vld [vmem:[%s237 + $0x112] sm:$0xff]
        %v390 = vld [vmem:[%s237 + $0x122] sm:$0xff]
        %v391 = vld [vmem:[%s237 + $0x12a] sm:$0xff]
        %v392 = vld [vmem:[%s237 + $0x13a] sm:$0xff]
        %v393 = vld [vmem:[%s237 + $0x142] sm:$0xff]
        %v394 = vld [vmem:[%s237 + $0x152] sm:$0xff]
        %v395 = vld [vmem:[%s237 + $0x15a] sm:$0xff]
        %v396 = vld [vmem:[%s237 + $0x16a] sm:$0xff]
        %v397 = vld [vmem:[%s237 + $0x172] sm:$0xff]
        %398 = vst [vmem:[#allocation2 + $0x10] sm:$0xff] %v366
        %399 = vst [vmem:[#allocation2 + $0x58] sm:$0xff] %v367
        %400 = vst [vmem:[#allocation2 + $0xa0] sm:$0xff] %v368
        %401 = vst [vmem:[#allocation2 + $0xe8] sm:$0xff] %v369
        %402 = vst [vmem:[#allocation2 + $0x130] sm:$0xff] %v370
        %403 = vst [vmem:[#allocation2 + $0x178] sm:$0xff] %v371
        %404 = vst [vmem:[#allocation2 + $0x1c0] sm:$0xff] %v372
        %405 = vst [vmem:[#allocation2 + $0x208] sm:$0xff] %v373
        %406 = vst [vmem:[#allocation2 + $0x250] sm:$0xff] %v374
        %407 = vst [vmem:[#allocation2 + $0x298] sm:$0xff] %v375
        %408 = vst [vmem:[#allocation2 + $0x2e0] sm:$0xff] %v376
        %409 = vst [vmem:[#allocation2 + $0x328] sm:$0xff] %v377
        %410 = vst [vmem:[#allocation2 + $0x370] sm:$0xff] %v378
        %411 = vst [vmem:[#allocation2 + $0x3b8] sm:$0xff] %v379
        %412 = vst [vmem:[#allocation2 + $0x400] sm:$0xff] %v380
        %413 = vst [vmem:[#allocation2 + $0x448] sm:$0xff] %v381
        %414 = vst [vmem:[#allocation2 + $0x490] sm:$0xff] %v382
        %415 = vst [vmem:[#allocation2 + $0x4d8] sm:$0xff] %v383
        %416 = vst [vmem:[#allocation2 + $0x520] sm:$0xff] %v384
        %417 = vst [vmem:[#allocation2 + $0x568] sm:$0xff] %v385
        %418 = vst [vmem:[#allocation2 + $0x5b0] sm:$0xff] %v386
        %419 = vst [vmem:[#allocation2 + $0x5f8] sm:$0xff] %v387
        %420 = vst [vmem:[#allocation2 + $0x640] sm:$0xff] %v388
        %421 = vst [vmem:[#allocation2 + $0x688] sm:$0xff] %v389
        %422 = vst [vmem:[#allocation2 + $0x6d0] sm:$0xff] %v390
        %423 = vst [vmem:[#allocation2 + $0x718] sm:$0xff] %v391
        %424 = vst [vmem:[#allocation2 + $0x760] sm:$0xff] %v392
        %425 = vst [vmem:[#allocation2 + $0x7a8] sm:$0xff] %v393
        %426 = vst [vmem:[#allocation2 + $0x7f0] sm:$0xff] %v394
        %427 = vst [vmem:[#allocation2 + $0x838] sm:$0xff] %v395
        %428 = vst [vmem:[#allocation2 + $0x880] sm:$0xff] %v396
        %429 = vst [vmem:[#allocation2 + $0x8c8] sm:$0xff] %v397
        %s430 = scalar_lea.vmem %s237, 24
        %v431 = vld [vmem:[%s430] sm:$0xff]
        %v432 = vld [vmem:[%s430 + $0x8] sm:$0xff]
        %v433 = vld [vmem:[%s430 + $0x18] sm:$0xff]
        %v434 = vld [vmem:[%s430 + $0x20] sm:$0xff]
        %v435 = vld [vmem:[%s430 + $0x30] sm:$0xff]
        %v436 = vld [vmem:[%s430 + $0x38] sm:$0xff]
        %v437 = vld [vmem:[%s430 + $0x48] sm:$0xff]
        %v438 = vld [vmem:[%s430 + $0x50] sm:$0xff]
        %v439 = vld [vmem:[%s430 + $0x60] sm:$0xff]
        %v440 = vld [vmem:[%s430 + $0x68] sm:$0xff]
        %v441 = vld [vmem:[%s430 + $0x78] sm:$0xff]
        %v442 = vld [vmem:[%s430 + $0x80] sm:$0xff]
        %v443 = vld [vmem:[%s430 + $0x90] sm:$0xff]
        %v444 = vld [vmem:[%s430 + $0x98] sm:$0xff]
        %v445 = vld [vmem:[%s430 + $0xa8] sm:$0xff]
        %v446 = vld [vmem:[%s430 + $0xb0] sm:$0xff]
        %v447 = vld [vmem:[%s430 + $0xc0] sm:$0xff]
        %v448 = vld [vmem:[%s430 + $0xc8] sm:$0xff]
        %v449 = vld [vmem:[%s430 + $0xd8] sm:$0xff]
        %v450 = vld [vmem:[%s430 + $0xe0] sm:$0xff]
        %v451 = vld [vmem:[%s430 + $0xf0] sm:$0xff]
        %v452 = vld [vmem:[%s430 + $0xf8] sm:$0xff]
        %v453 = vld [vmem:[%s430 + $0x108] sm:$0xff]
        %v454 = vld [vmem:[%s430 + $0x110] sm:$0xff]
        %v455 = vld [vmem:[%s430 + $0x120] sm:$0xff]
        %v456 = vld [vmem:[%s430 + $0x128] sm:$0xff]
        %v457 = vld [vmem:[%s430 + $0x138] sm:$0xff]
        %v458 = vld [vmem:[%s430 + $0x140] sm:$0xff]
        %v459 = vld [vmem:[%s430 + $0x150] sm:$0xff]
        %v460 = vld [vmem:[%s430 + $0x158] sm:$0xff]
        %v461 = vld [vmem:[%s430 + $0x168] sm:$0xff]
        %v462 = vld [vmem:[%s430 + $0x170] sm:$0xff]
        %463 = vst [vmem:[#allocation2 + $0x18] sm:$0xff] %v431
        %464 = vst [vmem:[#allocation2 + $0x60] sm:$0xff] %v432
        %465 = vst [vmem:[#allocation2 + $0xa8] sm:$0xff] %v433
        %466 = vst [vmem:[#allocation2 + $0xf0] sm:$0xff] %v434
        %467 = vst [vmem:[#allocation2 + $0x138] sm:$0xff] %v435
        %468 = vst [vmem:[#allocation2 + $0x180] sm:$0xff] %v436
        %469 = vst [vmem:[#allocation2 + $0x1c8] sm:$0xff] %v437
        %470 = vst [vmem:[#allocation2 + $0x210] sm:$0xff] %v438
        %471 = vst [vmem:[#allocation2 + $0x258] sm:$0xff] %v439
        %472 = vst [vmem:[#allocation2 + $0x2a0] sm:$0xff] %v440
        %473 = vst [vmem:[#allocation2 + $0x2e8] sm:$0xff] %v441
        %474 = vst [vmem:[#allocation2 + $0x330] sm:$0xff] %v442
        %475 = vst [vmem:[#allocation2 + $0x378] sm:$0xff] %v443
        %476 = vst [vmem:[#allocation2 + $0x3c0] sm:$0xff] %v444
        %477 = vst [vmem:[#allocation2 + $0x408] sm:$0xff] %v445
        %478 = vst [vmem:[#allocation2 + $0x450] sm:$0xff] %v446
        %479 = vst [vmem:[#allocation2 + $0x498] sm:$0xff] %v447
        %480 = vst [vmem:[#allocation2 + $0x4e0] sm:$0xff] %v448
        %481 = vst [vmem:[#allocation2 + $0x528] sm:$0xff] %v449
        %482 = vst [vmem:[#allocation2 + $0x570] sm:$0xff] %v450
        %483 = vst [vmem:[#allocation2 + $0x5b8] sm:$0xff] %v451
        %484 = vst [vmem:[#allocation2 + $0x600] sm:$0xff] %v452
        %485 = vst [vmem:[#allocation2 + $0x648] sm:$0xff] %v453
        %486 = vst [vmem:[#allocation2 + $0x690] sm:$0xff] %v454
        %487 = vst [vmem:[#allocation2 + $0x6d8] sm:$0xff] %v455
        %488 = vst [vmem:[#allocation2 + $0x720] sm:$0xff] %v456
        %489 = vst [vmem:[#allocation2 + $0x768] sm:$0xff] %v457
        %490 = vst [vmem:[#allocation2 + $0x7b0] sm:$0xff] %v458
        %491 = vst [vmem:[#allocation2 + $0x7f8] sm:$0xff] %v459
        %492 = vst [vmem:[#allocation2 + $0x840] sm:$0xff] %v460
        %493 = vst [vmem:[#allocation2 + $0x888] sm:$0xff] %v461
        %494 = vst [vmem:[#allocation2 + $0x8d0] sm:$0xff] %v462
        %v495 = vld [vmem:[%s430 + $0x1] sm:$0xff]
        %v496 = vld [vmem:[%s430 + $0x9] sm:$0xff]
        %v497 = vld [vmem:[%s430 + $0x19] sm:$0xff]
        %v498 = vld [vmem:[%s430 + $0x21] sm:$0xff]
        %v499 = vld [vmem:[%s430 + $0x31] sm:$0xff]
        %v500 = vld [vmem:[%s430 + $0x39] sm:$0xff]
        %v501 = vld [vmem:[%s430 + $0x49] sm:$0xff]
        %v502 = vld [vmem:[%s430 + $0x51] sm:$0xff]
        %v503 = vld [vmem:[%s430 + $0x61] sm:$0xff]
        %v504 = vld [vmem:[%s430 + $0x69] sm:$0xff]
        %v505 = vld [vmem:[%s430 + $0x79] sm:$0xff]
        %v506 = vld [vmem:[%s430 + $0x81] sm:$0xff]
        %v507 = vld [vmem:[%s430 + $0x91] sm:$0xff]
        %v508 = vld [vmem:[%s430 + $0x99] sm:$0xff]
        %v509 = vld [vmem:[%s430 + $0xa9] sm:$0xff]
        %v510 = vld [vmem:[%s430 + $0xb1] sm:$0xff]
        %v511 = vld [vmem:[%s430 + $0xc1] sm:$0xff]
        %v512 = vld [vmem:[%s430 + $0xc9] sm:$0xff]
        %v513 = vld [vmem:[%s430 + $0xd9] sm:$0xff]
        %v514 = vld [vmem:[%s430 + $0xe1] sm:$0xff]
        %v515 = vld [vmem:[%s430 + $0xf1] sm:$0xff]
        %v516 = vld [vmem:[%s430 + $0xf9] sm:$0xff]
        %v517 = vld [vmem:[%s430 + $0x109] sm:$0xff]
        %v518 = vld [vmem:[%s430 + $0x111] sm:$0xff]
        %v519 = vld [vmem:[%s430 + $0x121] sm:$0xff]
        %v520 = vld [vmem:[%s430 + $0x129] sm:$0xff]
        %v521 = vld [vmem:[%s430 + $0x139] sm:$0xff]
        %v522 = vld [vmem:[%s430 + $0x141] sm:$0xff]
        %v523 = vld [vmem:[%s430 + $0x151] sm:$0xff]
        %v524 = vld [vmem:[%s430 + $0x159] sm:$0xff]
        %v525 = vld [vmem:[%s430 + $0x169] sm:$0xff]
        %v526 = vld [vmem:[%s430 + $0x171] sm:$0xff]
        %527 = vst [vmem:[#allocation2 + $0x20] sm:$0xff] %v495
        %528 = vst [vmem:[#allocation2 + $0x68] sm:$0xff] %v496
        %529 = vst [vmem:[#allocation2 + $0xb0] sm:$0xff] %v497
        %530 = vst [vmem:[#allocation2 + $0xf8] sm:$0xff] %v498
        %531 = vst [vmem:[#allocation2 + $0x140] sm:$0xff] %v499
        %532 = vst [vmem:[#allocation2 + $0x188] sm:$0xff] %v500
        %533 = vst [vmem:[#allocation2 + $0x1d0] sm:$0xff] %v501
        %534 = vst [vmem:[#allocation2 + $0x218] sm:$0xff] %v502
        %535 = vst [vmem:[#allocation2 + $0x260] sm:$0xff] %v503
        %536 = vst [vmem:[#allocation2 + $0x2a8] sm:$0xff] %v504
        %537 = vst [vmem:[#allocation2 + $0x2f0] sm:$0xff] %v505
        %538 = vst [vmem:[#allocation2 + $0x338] sm:$0xff] %v506
        %539 = vst [vmem:[#allocation2 + $0x380] sm:$0xff] %v507
        %540 = vst [vmem:[#allocation2 + $0x3c8] sm:$0xff] %v508
        %541 = vst [vmem:[#allocation2 + $0x410] sm:$0xff] %v509
        %542 = vst [vmem:[#allocation2 + $0x458] sm:$0xff] %v510
        %543 = vst [vmem:[#allocation2 + $0x4a0] sm:$0xff] %v511
        %544 = vst [vmem:[#allocation2 + $0x4e8] sm:$0xff] %v512
        %545 = vst [vmem:[#allocation2 + $0x530] sm:$0xff] %v513
        %546 = vst [vmem:[#allocation2 + $0x578] sm:$0xff] %v514
        %547 = vst [vmem:[#allocation2 + $0x5c0] sm:$0xff] %v515
        %548 = vst [vmem:[#allocation2 + $0x608] sm:$0xff] %v516
        %549 = vst [vmem:[#allocation2 + $0x650] sm:$0xff] %v517
        %550 = vst [vmem:[#allocation2 + $0x698] sm:$0xff] %v518
        %551 = vst [vmem:[#allocation2 + $0x6e0] sm:$0xff] %v519
        %552 = vst [vmem:[#allocation2 + $0x728] sm:$0xff] %v520
        %553 = vst [vmem:[#allocation2 + $0x770] sm:$0xff] %v521
        %554 = vst [vmem:[#allocation2 + $0x7b8] sm:$0xff] %v522
        %555 = vst [vmem:[#allocation2 + $0x800] sm:$0xff] %v523
        %556 = vst [vmem:[#allocation2 + $0x848] sm:$0xff] %v524
        %557 = vst [vmem:[#allocation2 + $0x890] sm:$0xff] %v525
        %558 = vst [vmem:[#allocation2 + $0x8d8] sm:$0xff] %v526
        %v559 = vld [vmem:[%s430 + $0x2] sm:$0xff]
        %v560 = vld [vmem:[%s430 + $0xa] sm:$0xff]
        %v561 = vld [vmem:[%s430 + $0x1a] sm:$0xff]
        %v562 = vld [vmem:[%s430 + $0x22] sm:$0xff]
        %v563 = vld [vmem:[%s430 + $0x32] sm:$0xff]
        %v564 = vld [vmem:[%s430 + $0x3a] sm:$0xff]
        %v565 = vld [vmem:[%s430 + $0x4a] sm:$0xff]
        %v566 = vld [vmem:[%s430 + $0x52] sm:$0xff]
        %v567 = vld [vmem:[%s430 + $0x62] sm:$0xff]
        %v568 = vld [vmem:[%s430 + $0x6a] sm:$0xff]
        %v569 = vld [vmem:[%s430 + $0x7a] sm:$0xff]
        %v570 = vld [vmem:[%s430 + $0x82] sm:$0xff]
        %v571 = vld [vmem:[%s430 + $0x92] sm:$0xff]
        %v572 = vld [vmem:[%s430 + $0x9a] sm:$0xff]
        %v573 = vld [vmem:[%s430 + $0xaa] sm:$0xff]
        %v574 = vld [vmem:[%s430 + $0xb2] sm:$0xff]
        %v575 = vld [vmem:[%s430 + $0xc2] sm:$0xff]
        %v576 = vld [vmem:[%s430 + $0xca] sm:$0xff]
        %v577 = vld [vmem:[%s430 + $0xda] sm:$0xff]
        %v578 = vld [vmem:[%s430 + $0xe2] sm:$0xff]
        %v579 = vld [vmem:[%s430 + $0xf2] sm:$0xff]
        %v580 = vld [vmem:[%s430 + $0xfa] sm:$0xff]
        %v581 = vld [vmem:[%s430 + $0x10a] sm:$0xff]
        %v582 = vld [vmem:[%s430 + $0x112] sm:$0xff]
        %v583 = vld [vmem:[%s430 + $0x122] sm:$0xff]
        %v584 = vld [vmem:[%s430 + $0x12a] sm:$0xff]
        %v585 = vld [vmem:[%s430 + $0x13a] sm:$0xff]
        %v586 = vld [vmem:[%s430 + $0x142] sm:$0xff]
        %v587 = vld [vmem:[%s430 + $0x152] sm:$0xff]
        %v588 = vld [vmem:[%s430 + $0x15a] sm:$0xff]
        %v589 = vld [vmem:[%s430 + $0x16a] sm:$0xff]
        %v590 = vld [vmem:[%s430 + $0x172] sm:$0xff]
        %591 = vst [vmem:[#allocation2 + $0x28] sm:$0xff] %v559
        %592 = vst [vmem:[#allocation2 + $0x70] sm:$0xff] %v560
        %593 = vst [vmem:[#allocation2 + $0xb8] sm:$0xff] %v561
        %594 = vst [vmem:[#allocation2 + $0x100] sm:$0xff] %v562
        %595 = vst [vmem:[#allocation2 + $0x148] sm:$0xff] %v563
        %596 = vst [vmem:[#allocation2 + $0x190] sm:$0xff] %v564
        %597 = vst [vmem:[#allocation2 + $0x1d8] sm:$0xff] %v565
        %598 = vst [vmem:[#allocation2 + $0x220] sm:$0xff] %v566
        %599 = vst [vmem:[#allocation2 + $0x268] sm:$0xff] %v567
        %600 = vst [vmem:[#allocation2 + $0x2b0] sm:$0xff] %v568
        %601 = vst [vmem:[#allocation2 + $0x2f8] sm:$0xff] %v569
        %602 = vst [vmem:[#allocation2 + $0x340] sm:$0xff] %v570
        %603 = vst [vmem:[#allocation2 + $0x388] sm:$0xff] %v571
        %604 = vst [vmem:[#allocation2 + $0x3d0] sm:$0xff] %v572
        %605 = vst [vmem:[#allocation2 + $0x418] sm:$0xff] %v573
        %606 = vst [vmem:[#allocation2 + $0x460] sm:$0xff] %v574
        %607 = vst [vmem:[#allocation2 + $0x4a8] sm:$0xff] %v575
        %608 = vst [vmem:[#allocation2 + $0x4f0] sm:$0xff] %v576
        %609 = vst [vmem:[#allocation2 + $0x538] sm:$0xff] %v577
        %610 = vst [vmem:[#allocation2 + $0x580] sm:$0xff] %v578
        %611 = vst [vmem:[#allocation2 + $0x5c8] sm:$0xff] %v579
        %612 = vst [vmem:[#allocation2 + $0x610] sm:$0xff] %v580
        %613 = vst [vmem:[#allocation2 + $0x658] sm:$0xff] %v581
        %614 = vst [vmem:[#allocation2 + $0x6a0] sm:$0xff] %v582
        %615 = vst [vmem:[#allocation2 + $0x6e8] sm:$0xff] %v583
        %616 = vst [vmem:[#allocation2 + $0x730] sm:$0xff] %v584
        %617 = vst [vmem:[#allocation2 + $0x778] sm:$0xff] %v585
        %618 = vst [vmem:[#allocation2 + $0x7c0] sm:$0xff] %v586
        %619 = vst [vmem:[#allocation2 + $0x808] sm:$0xff] %v587
        %620 = vst [vmem:[#allocation2 + $0x850] sm:$0xff] %v588
        %621 = vst [vmem:[#allocation2 + $0x898] sm:$0xff] %v589
        %622 = vst [vmem:[#allocation2 + $0x8e0] sm:$0xff] %v590
        %s623 = scalar_lea.vmem %s237, 48
        %v624 = vld [vmem:[%s623] sm:$0xff]
        %v625 = vld [vmem:[%s623 + $0x8] sm:$0xff]
        %v626 = vld [vmem:[%s623 + $0x18] sm:$0xff]
        %v627 = vld [vmem:[%s623 + $0x20] sm:$0xff]
        %v628 = vld [vmem:[%s623 + $0x30] sm:$0xff]
        %v629 = vld [vmem:[%s623 + $0x38] sm:$0xff]
        %v630 = vld [vmem:[%s623 + $0x48] sm:$0xff]
        %v631 = vld [vmem:[%s623 + $0x50] sm:$0xff]
        %v632 = vld [vmem:[%s623 + $0x60] sm:$0xff]
        %v633 = vld [vmem:[%s623 + $0x68] sm:$0xff]
        %v634 = vld [vmem:[%s623 + $0x78] sm:$0xff]
        %v635 = vld [vmem:[%s623 + $0x80] sm:$0xff]
        %v636 = vld [vmem:[%s623 + $0x90] sm:$0xff]
        %v637 = vld [vmem:[%s623 + $0x98] sm:$0xff]
        %v638 = vld [vmem:[%s623 + $0xa8] sm:$0xff]
        %v639 = vld [vmem:[%s623 + $0xb0] sm:$0xff]
        %v640 = vld [vmem:[%s623 + $0xc0] sm:$0xff]
        %v641 = vld [vmem:[%s623 + $0xc8] sm:$0xff]
        %v642 = vld [vmem:[%s623 + $0xd8] sm:$0xff]
        %v643 = vld [vmem:[%s623 + $0xe0] sm:$0xff]
        %v644 = vld [vmem:[%s623 + $0xf0] sm:$0xff]
        %v645 = vld [vmem:[%s623 + $0xf8] sm:$0xff]
        %v646 = vld [vmem:[%s623 + $0x108] sm:$0xff]
        %v647 = vld [vmem:[%s623 + $0x110] sm:$0xff]
        %v648 = vld [vmem:[%s623 + $0x120] sm:$0xff]
        %v649 = vld [vmem:[%s623 + $0x128] sm:$0xff]
        %v650 = vld [vmem:[%s623 + $0x138] sm:$0xff]
        %v651 = vld [vmem:[%s623 + $0x140] sm:$0xff]
        %v652 = vld [vmem:[%s623 + $0x150] sm:$0xff]
        %v653 = vld [vmem:[%s623 + $0x158] sm:$0xff]
        %v654 = vld [vmem:[%s623 + $0x168] sm:$0xff]
        %v655 = vld [vmem:[%s623 + $0x170] sm:$0xff]
        %656 = vst [vmem:[#allocation2 + $0x30] sm:$0xff] %v624
        %657 = vst [vmem:[#allocation2 + $0x78] sm:$0xff] %v625
        %658 = vst [vmem:[#allocation2 + $0xc0] sm:$0xff] %v626
        %659 = vst [vmem:[#allocation2 + $0x108] sm:$0xff] %v627
        %660 = vst [vmem:[#allocation2 + $0x150] sm:$0xff] %v628
        %661 = vst [vmem:[#allocation2 + $0x198] sm:$0xff] %v629
        %662 = vst [vmem:[#allocation2 + $0x1e0] sm:$0xff] %v630
        %663 = vst [vmem:[#allocation2 + $0x228] sm:$0xff] %v631
        %664 = vst [vmem:[#allocation2 + $0x270] sm:$0xff] %v632
        %665 = vst [vmem:[#allocation2 + $0x2b8] sm:$0xff] %v633
        %666 = vst [vmem:[#allocation2 + $0x300] sm:$0xff] %v634
        %667 = vst [vmem:[#allocation2 + $0x348] sm:$0xff] %v635
        %668 = vst [vmem:[#allocation2 + $0x390] sm:$0xff] %v636
        %669 = vst [vmem:[#allocation2 + $0x3d8] sm:$0xff] %v637
        %670 = vst [vmem:[#allocation2 + $0x420] sm:$0xff] %v638
        %671 = vst [vmem:[#allocation2 + $0x468] sm:$0xff] %v639
        %672 = vst [vmem:[#allocation2 + $0x4b0] sm:$0xff] %v640
        %673 = vst [vmem:[#allocation2 + $0x4f8] sm:$0xff] %v641
        %674 = vst [vmem:[#allocation2 + $0x540] sm:$0xff] %v642
        %675 = vst [vmem:[#allocation2 + $0x588] sm:$0xff] %v643
        %676 = vst [vmem:[#allocation2 + $0x5d0] sm:$0xff] %v644
        %677 = vst [vmem:[#allocation2 + $0x618] sm:$0xff] %v645
        %678 = vst [vmem:[#allocation2 + $0x660] sm:$0xff] %v646
        %679 = vst [vmem:[#allocation2 + $0x6a8] sm:$0xff] %v647
        %680 = vst [vmem:[#allocation2 + $0x6f0] sm:$0xff] %v648
        %681 = vst [vmem:[#allocation2 + $0x738] sm:$0xff] %v649
        %682 = vst [vmem:[#allocation2 + $0x780] sm:$0xff] %v650
        %683 = vst [vmem:[#allocation2 + $0x7c8] sm:$0xff] %v651
        %684 = vst [vmem:[#allocation2 + $0x810] sm:$0xff] %v652
        %685 = vst [vmem:[#allocation2 + $0x858] sm:$0xff] %v653
        %686 = vst [vmem:[#allocation2 + $0x8a0] sm:$0xff] %v654
        %687 = vst [vmem:[#allocation2 + $0x8e8] sm:$0xff] %v655
        %v688 = vld [vmem:[%s623 + $0x1] sm:$0xff]
        %v689 = vld [vmem:[%s623 + $0x9] sm:$0xff]
        %v690 = vld [vmem:[%s623 + $0x19] sm:$0xff]
        %v691 = vld [vmem:[%s623 + $0x21] sm:$0xff]
        %v692 = vld [vmem:[%s623 + $0x31] sm:$0xff]
        %v693 = vld [vmem:[%s623 + $0x39] sm:$0xff]
        %v694 = vld [vmem:[%s623 + $0x49] sm:$0xff]
        %v695 = vld [vmem:[%s623 + $0x51] sm:$0xff]
        %v696 = vld [vmem:[%s623 + $0x61] sm:$0xff]
        %v697 = vld [vmem:[%s623 + $0x69] sm:$0xff]
        %v698 = vld [vmem:[%s623 + $0x79] sm:$0xff]
        %v699 = vld [vmem:[%s623 + $0x81] sm:$0xff]
        %v700 = vld [vmem:[%s623 + $0x91] sm:$0xff]
        %v701 = vld [vmem:[%s623 + $0x99] sm:$0xff]
        %v702 = vld [vmem:[%s623 + $0xa9] sm:$0xff]
        %v703 = vld [vmem:[%s623 + $0xb1] sm:$0xff]
        %v704 = vld [vmem:[%s623 + $0xc1] sm:$0xff]
        %v705 = vld [vmem:[%s623 + $0xc9] sm:$0xff]
        %v706 = vld [vmem:[%s623 + $0xd9] sm:$0xff]
        %v707 = vld [vmem:[%s623 + $0xe1] sm:$0xff]
        %v708 = vld [vmem:[%s623 + $0xf1] sm:$0xff]
        %v709 = vld [vmem:[%s623 + $0xf9] sm:$0xff]
        %v710 = vld [vmem:[%s623 + $0x109] sm:$0xff]
        %v711 = vld [vmem:[%s623 + $0x111] sm:$0xff]
        %v712 = vld [vmem:[%s623 + $0x121] sm:$0xff]
        %v713 = vld [vmem:[%s623 + $0x129] sm:$0xff]
        %v714 = vld [vmem:[%s623 + $0x139] sm:$0xff]
        %v715 = vld [vmem:[%s623 + $0x141] sm:$0xff]
        %v716 = vld [vmem:[%s623 + $0x151] sm:$0xff]
        %v717 = vld [vmem:[%s623 + $0x159] sm:$0xff]
        %v718 = vld [vmem:[%s623 + $0x169] sm:$0xff]
        %v719 = vld [vmem:[%s623 + $0x171] sm:$0xff]
        %720 = vst [vmem:[#allocation2 + $0x38] sm:$0xff] %v688
        %721 = vst [vmem:[#allocation2 + $0x80] sm:$0xff] %v689
        %722 = vst [vmem:[#allocation2 + $0xc8] sm:$0xff] %v690
        %723 = vst [vmem:[#allocation2 + $0x110] sm:$0xff] %v691
        %724 = vst [vmem:[#allocation2 + $0x158] sm:$0xff] %v692
        %725 = vst [vmem:[#allocation2 + $0x1a0] sm:$0xff] %v693
        %726 = vst [vmem:[#allocation2 + $0x1e8] sm:$0xff] %v694
        %727 = vst [vmem:[#allocation2 + $0x230] sm:$0xff] %v695
        %728 = vst [vmem:[#allocation2 + $0x278] sm:$0xff] %v696
        %729 = vst [vmem:[#allocation2 + $0x2c0] sm:$0xff] %v697
        %730 = vst [vmem:[#allocation2 + $0x308] sm:$0xff] %v698
        %731 = vst [vmem:[#allocation2 + $0x350] sm:$0xff] %v699
        %732 = vst [vmem:[#allocation2 + $0x398] sm:$0xff] %v700
        %733 = vst [vmem:[#allocation2 + $0x3e0] sm:$0xff] %v701
        %734 = vst [vmem:[#allocation2 + $0x428] sm:$0xff] %v702
        %735 = vst [vmem:[#allocation2 + $0x470] sm:$0xff] %v703
        %736 = vst [vmem:[#allocation2 + $0x4b8] sm:$0xff] %v704
        %737 = vst [vmem:[#allocation2 + $0x500] sm:$0xff] %v705
        %738 = vst [vmem:[#allocation2 + $0x548] sm:$0xff] %v706
        %739 = vst [vmem:[#allocation2 + $0x590] sm:$0xff] %v707
        %740 = vst [vmem:[#allocation2 + $0x5d8] sm:$0xff] %v708
        %741 = vst [vmem:[#allocation2 + $0x620] sm:$0xff] %v709
        %742 = vst [vmem:[#allocation2 + $0x668] sm:$0xff] %v710
        %743 = vst [vmem:[#allocation2 + $0x6b0] sm:$0xff] %v711
        %744 = vst [vmem:[#allocation2 + $0x6f8] sm:$0xff] %v712
        %745 = vst [vmem:[#allocation2 + $0x740] sm:$0xff] %v713
        %746 = vst [vmem:[#allocation2 + $0x788] sm:$0xff] %v714
        %747 = vst [vmem:[#allocation2 + $0x7d0] sm:$0xff] %v715
        %748 = vst [vmem:[#allocation2 + $0x818] sm:$0xff] %v716
        %749 = vst [vmem:[#allocation2 + $0x860] sm:$0xff] %v717
        %750 = vst [vmem:[#allocation2 + $0x8a8] sm:$0xff] %v718
        %751 = vst [vmem:[#allocation2 + $0x8f0] sm:$0xff] %v719
        %v752 = vld [vmem:[%s623 + $0x2] sm:$0xff]
        %v753 = vld [vmem:[%s623 + $0xa] sm:$0xff]
        %v754 = vld [vmem:[%s623 + $0x1a] sm:$0xff]
        %v755 = vld [vmem:[%s623 + $0x22] sm:$0xff]
        %v756 = vld [vmem:[%s623 + $0x32] sm:$0xff]
        %v757 = vld [vmem:[%s623 + $0x3a] sm:$0xff]
        %v758 = vld [vmem:[%s623 + $0x4a] sm:$0xff]
        %v759 = vld [vmem:[%s623 + $0x52] sm:$0xff]
        %v760 = vld [vmem:[%s623 + $0x62] sm:$0xff]
        %v761 = vld [vmem:[%s623 + $0x6a] sm:$0xff]
        %v762 = vld [vmem:[%s623 + $0x7a] sm:$0xff]
        %v763 = vld [vmem:[%s623 + $0x82] sm:$0xff]
        %v764 = vld [vmem:[%s623 + $0x92] sm:$0xff]
        %v765 = vld [vmem:[%s623 + $0x9a] sm:$0xff]
        %v766 = vld [vmem:[%s623 + $0xaa] sm:$0xff]
        %v767 = vld [vmem:[%s623 + $0xb2] sm:$0xff]
        %v768 = vld [vmem:[%s623 + $0xc2] sm:$0xff]
        %v769 = vld [vmem:[%s623 + $0xca] sm:$0xff]
        %v770 = vld [vmem:[%s623 + $0xda] sm:$0xff]
        %v771 = vld [vmem:[%s623 + $0xe2] sm:$0xff]
        %v772 = vld [vmem:[%s623 + $0xf2] sm:$0xff]
        %v773 = vld [vmem:[%s623 + $0xfa] sm:$0xff]
        %v774 = vld [vmem:[%s623 + $0x10a] sm:$0xff]
        %v775 = vld [vmem:[%s623 + $0x112] sm:$0xff]
        %v776 = vld [vmem:[%s623 + $0x122] sm:$0xff]
        %v777 = vld [vmem:[%s623 + $0x12a] sm:$0xff]
        %v778 = vld [vmem:[%s623 + $0x13a] sm:$0xff]
        %v779 = vld [vmem:[%s623 + $0x142] sm:$0xff]
        %v780 = vld [vmem:[%s623 + $0x152] sm:$0xff]
        %v781 = vld [vmem:[%s623 + $0x15a] sm:$0xff]
        %v782 = vld [vmem:[%s623 + $0x16a] sm:$0xff]
        %v783 = vld [vmem:[%s623 + $0x172] sm:$0xff]
        %784 = vst [vmem:[#allocation2 + $0x40] sm:$0xff] %v752
        %785 = vst [vmem:[#allocation2 + $0x88] sm:$0xff] %v753
        %786 = vst [vmem:[#allocation2 + $0xd0] sm:$0xff] %v754
        %787 = vst [vmem:[#allocation2 + $0x118] sm:$0xff] %v755
        %788 = vst [vmem:[#allocation2 + $0x160] sm:$0xff] %v756
        %789 = vst [vmem:[#allocation2 + $0x1a8] sm:$0xff] %v757
        %790 = vst [vmem:[#allocation2 + $0x1f0] sm:$0xff] %v758
        %791 = vst [vmem:[#allocation2 + $0x238] sm:$0xff] %v759
        %792 = vst [vmem:[#allocation2 + $0x280] sm:$0xff] %v760
        %793 = vst [vmem:[#allocation2 + $0x2c8] sm:$0xff] %v761
        %794 = vst [vmem:[#allocation2 + $0x310] sm:$0xff] %v762
        %795 = vst [vmem:[#allocation2 + $0x358] sm:$0xff] %v763
        %796 = vst [vmem:[#allocation2 + $0x3a0] sm:$0xff] %v764
        %797 = vst [vmem:[#allocation2 + $0x3e8] sm:$0xff] %v765
        %798 = vst [vmem:[#allocation2 + $0x430] sm:$0xff] %v766
        %799 = vst [vmem:[#allocation2 + $0x478] sm:$0xff] %v767
        %800 = vst [vmem:[#allocation2 + $0x4c0] sm:$0xff] %v768
        %801 = vst [vmem:[#allocation2 + $0x508] sm:$0xff] %v769
        %802 = vst [vmem:[#allocation2 + $0x550] sm:$0xff] %v770
        %803 = vst [vmem:[#allocation2 + $0x598] sm:$0xff] %v771
        %804 = vst [vmem:[#allocation2 + $0x5e0] sm:$0xff] %v772
        %805 = vst [vmem:[#allocation2 + $0x628] sm:$0xff] %v773
        %806 = vst [vmem:[#allocation2 + $0x670] sm:$0xff] %v774
        %807 = vst [vmem:[#allocation2 + $0x6b8] sm:$0xff] %v775
        %808 = vst [vmem:[#allocation2 + $0x700] sm:$0xff] %v776
        %809 = vst [vmem:[#allocation2 + $0x748] sm:$0xff] %v777
        %810 = vst [vmem:[#allocation2 + $0x790] sm:$0xff] %v778
        %811 = vst [vmem:[#allocation2 + $0x7d8] sm:$0xff] %v779
        %812 = vst [vmem:[#allocation2 + $0x820] sm:$0xff] %v780
        %813 = vst [vmem:[#allocation2 + $0x868] sm:$0xff] %v781
        %814 = vst [vmem:[#allocation2 + $0x8b0] sm:$0xff] %v782
        %815 = vst [vmem:[#allocation2 + $0x8f8] sm:$0xff] %v783
        %v816 = vld [vmem:[#allocation2] sm:$0xff]
        %v817 = vld [vmem:[#allocation2 + $0x8] sm:$0xff]
        %v818 = vld [vmem:[#allocation2 + $0x10] sm:$0xff]
        %v819 = vld [vmem:[#allocation2 + $0x18] sm:$0xff]
        %v820 = vld [vmem:[#allocation2 + $0x20] sm:$0xff]
        %v821 = vld [vmem:[#allocation2 + $0x28] sm:$0xff]
        %v822 = vld [vmem:[#allocation2 + $0x30] sm:$0xff]
        %v823 = vld [vmem:[#allocation2 + $0x38] sm:$0xff]
        %v824 = vld [vmem:[#allocation2 + $0x40] sm:$0xff]
        %v825 = vld [vmem:[#allocation2 + $0x48] sm:$0xff]
        %v826 = vld [vmem:[#allocation2 + $0x50] sm:$0xff]
        %v827 = vld [vmem:[#allocation2 + $0x58] sm:$0xff]
        %v828 = vld [vmem:[#allocation2 + $0x60] sm:$0xff]
        %v829 = vld [vmem:[#allocation2 + $0x68] sm:$0xff]
        %v830 = vld [vmem:[#allocation2 + $0x70] sm:$0xff]
        %v831 = vld [vmem:[#allocation2 + $0x78] sm:$0xff]
        %v832 = vld [vmem:[#allocation2 + $0x80] sm:$0xff]
        %v833 = vld [vmem:[#allocation2 + $0x88] sm:$0xff]
        %v834 = vld [vmem:[#allocation2 + $0x90] sm:$0xff]
        %v835 = vld [vmem:[#allocation2 + $0x98] sm:$0xff]
        %v836 = vld [vmem:[#allocation2 + $0xa0] sm:$0xff]
        %v837 = vld [vmem:[#allocation2 + $0xa8] sm:$0xff]
        %v838 = vld [vmem:[#allocation2 + $0xb0] sm:$0xff]
        %v839 = vld [vmem:[#allocation2 + $0xb8] sm:$0xff]
        %v840 = vld [vmem:[#allocation2 + $0xc0] sm:$0xff]
        %v841 = vld [vmem:[#allocation2 + $0xc8] sm:$0xff]
        %v842 = vld [vmem:[#allocation2 + $0xd0] sm:$0xff]
        %v843 = vld [vmem:[#allocation2 + $0xd8] sm:$0xff]
        %v844 = vld [vmem:[#allocation2 + $0xe0] sm:$0xff]
        %v845 = vld [vmem:[#allocation2 + $0xe8] sm:$0xff]
        %v846 = vld [vmem:[#allocation2 + $0xf0] sm:$0xff]
        %v847 = vld [vmem:[#allocation2 + $0xf8] sm:$0xff]
        %v848 = vld [vmem:[#allocation2 + $0x100] sm:$0xff]
        %v849 = vld [vmem:[#allocation2 + $0x108] sm:$0xff]
        %v850 = vld [vmem:[#allocation2 + $0x110] sm:$0xff]
        %v851 = vld [vmem:[#allocation2 + $0x118] sm:$0xff]
        %v852 = vld [vmem:[#allocation2 + $0x120] sm:$0xff]
        %v853 = vld [vmem:[#allocation2 + $0x128] sm:$0xff]
        %v854 = vld [vmem:[#allocation2 + $0x130] sm:$0xff]
        %v855 = vld [vmem:[#allocation2 + $0x138] sm:$0xff]
        %v856 = vld [vmem:[#allocation2 + $0x140] sm:$0xff]
        %v857 = vld [vmem:[#allocation2 + $0x148] sm:$0xff]
        %v858 = vld [vmem:[#allocation2 + $0x150] sm:$0xff]
        %v859 = vld [vmem:[#allocation2 + $0x158] sm:$0xff]
        %v860 = vld [vmem:[#allocation2 + $0x160] sm:$0xff]
        %v861 = vld [vmem:[#allocation2 + $0x168] sm:$0xff]
        %v862 = vld [vmem:[#allocation2 + $0x170] sm:$0xff]
        %v863 = vld [vmem:[#allocation2 + $0x178] sm:$0xff]
        %v864 = vld [vmem:[#allocation2 + $0x180] sm:$0xff]
        %v865 = vld [vmem:[#allocation2 + $0x188] sm:$0xff]
        %v866 = vld [vmem:[#allocation2 + $0x190] sm:$0xff]
        %v867 = vld [vmem:[#allocation2 + $0x198] sm:$0xff]
        %v868 = vld [vmem:[#allocation2 + $0x1a0] sm:$0xff]
        %v869 = vld [vmem:[#allocation2 + $0x1a8] sm:$0xff]
        %v870 = vld [vmem:[#allocation2 + $0x1b0] sm:$0xff]
        %v871 = vld [vmem:[#allocation2 + $0x1b8] sm:$0xff]
        %v872 = vld [vmem:[#allocation2 + $0x1c0] sm:$0xff]
        %v873 = vld [vmem:[#allocation2 + $0x1c8] sm:$0xff]
        %v874 = vld [vmem:[#allocation2 + $0x1d0] sm:$0xff]
        %v875 = vld [vmem:[#allocation2 + $0x1d8] sm:$0xff]
        %v876 = vld [vmem:[#allocation2 + $0x1e0] sm:$0xff]
        %v877 = vld [vmem:[#allocation2 + $0x1e8] sm:$0xff]
        %v878 = vld [vmem:[#allocation2 + $0x1f0] sm:$0xff]
        %v879 = vld [vmem:[#allocation2 + $0x1f8] sm:$0xff]
        %v880 = vld [vmem:[#allocation2 + $0x200] sm:$0xff]
        %v881 = vld [vmem:[#allocation2 + $0x208] sm:$0xff]
        %v882 = vld [vmem:[#allocation2 + $0x210] sm:$0xff]
        %v883 = vld [vmem:[#allocation2 + $0x218] sm:$0xff]
        %v884 = vld [vmem:[#allocation2 + $0x220] sm:$0xff]
        %v885 = vld [vmem:[#allocation2 + $0x228] sm:$0xff]
        %v886 = vld [vmem:[#allocation2 + $0x230] sm:$0xff]
        %v887 = vld [vmem:[#allocation2 + $0x238] sm:$0xff]
        %v888 = vld [vmem:[#allocation2 + $0x240] sm:$0xff]
        %v889 = vld [vmem:[#allocation2 + $0x248] sm:$0xff]
        %v890 = vld [vmem:[#allocation2 + $0x250] sm:$0xff]
        %v891 = vld [vmem:[#allocation2 + $0x258] sm:$0xff]
        %v892 = vld [vmem:[#allocation2 + $0x260] sm:$0xff]
        %v893 = vld [vmem:[#allocation2 + $0x268] sm:$0xff]
        %v894 = vld [vmem:[#allocation2 + $0x270] sm:$0xff]
        %v895 = vld [vmem:[#allocation2 + $0x278] sm:$0xff]
        %v896 = vld [vmem:[#allocation2 + $0x280] sm:$0xff]
        %v897 = vld [vmem:[#allocation2 + $0x288] sm:$0xff]
        %v898 = vld [vmem:[#allocation2 + $0x290] sm:$0xff]
        %v899 = vld [vmem:[#allocation2 + $0x298] sm:$0xff]
        %v900 = vld [vmem:[#allocation2 + $0x2a0] sm:$0xff]
        %v901 = vld [vmem:[#allocation2 + $0x2a8] sm:$0xff]
        %v902 = vld [vmem:[#allocation2 + $0x2b0] sm:$0xff]
        %v903 = vld [vmem:[#allocation2 + $0x2b8] sm:$0xff]
        %v904 = vld [vmem:[#allocation2 + $0x2c0] sm:$0xff]
        %v905 = vld [vmem:[#allocation2 + $0x2c8] sm:$0xff]
        %v906 = vld [vmem:[#allocation2 + $0x2d0] sm:$0xff]
        %v907 = vld [vmem:[#allocation2 + $0x2d8] sm:$0xff]
        %v908 = vld [vmem:[#allocation2 + $0x2e0] sm:$0xff]
        %v909 = vld [vmem:[#allocation2 + $0x2e8] sm:$0xff]
        %v910 = vld [vmem:[#allocation2 + $0x2f0] sm:$0xff]
        %v911 = vld [vmem:[#allocation2 + $0x2f8] sm:$0xff]
        %v912 = vld [vmem:[#allocation2 + $0x300] sm:$0xff]
        %v913 = vld [vmem:[#allocation2 + $0x308] sm:$0xff]
        %v914 = vld [vmem:[#allocation2 + $0x310] sm:$0xff]
        %v915 = vld [vmem:[#allocation2 + $0x318] sm:$0xff]
        %v916 = vld [vmem:[#allocation2 + $0x320] sm:$0xff]
        %v917 = vld [vmem:[#allocation2 + $0x328] sm:$0xff]
        %v918 = vld [vmem:[#allocation2 + $0x330] sm:$0xff]
        %v919 = vld [vmem:[#allocation2 + $0x338] sm:$0xff]
        %v920 = vld [vmem:[#allocation2 + $0x340] sm:$0xff]
        %v921 = vld [vmem:[#allocation2 + $0x348] sm:$0xff]
        %v922 = vld [vmem:[#allocation2 + $0x350] sm:$0xff]
        %v923 = vld [vmem:[#allocation2 + $0x358] sm:$0xff]
        %v924 = vld [vmem:[#allocation2 + $0x360] sm:$0xff]
        %v925 = vld [vmem:[#allocation2 + $0x368] sm:$0xff]
        %v926 = vld [vmem:[#allocation2 + $0x370] sm:$0xff]
        %v927 = vld [vmem:[#allocation2 + $0x378] sm:$0xff]
        %v928 = vld [vmem:[#allocation2 + $0x380] sm:$0xff]
        %v929 = vld [vmem:[#allocation2 + $0x388] sm:$0xff]
        %v930 = vld [vmem:[#allocation2 + $0x390] sm:$0xff]
        %v931 = vld [vmem:[#allocation2 + $0x398] sm:$0xff]
        %v932 = vld [vmem:[#allocation2 + $0x3a0] sm:$0xff]
        %v933 = vld [vmem:[#allocation2 + $0x3a8] sm:$0xff]
        %v934 = vld [vmem:[#allocation2 + $0x3b0] sm:$0xff]
        %v935 = vld [vmem:[#allocation2 + $0x3b8] sm:$0xff]
        %v936 = vld [vmem:[#allocation2 + $0x3c0] sm:$0xff]
        %v937 = vld [vmem:[#allocation2 + $0x3c8] sm:$0xff]
        %v938 = vld [vmem:[#allocation2 + $0x3d0] sm:$0xff]
        %v939 = vld [vmem:[#allocation2 + $0x3d8] sm:$0xff]
        %v940 = vld [vmem:[#allocation2 + $0x3e0] sm:$0xff]
        %v941 = vld [vmem:[#allocation2 + $0x3e8] sm:$0xff]
        %v942 = vld [vmem:[#allocation2 + $0x3f0] sm:$0xff]
        %v943 = vld [vmem:[#allocation2 + $0x3f8] sm:$0xff]
        %v944 = vld [vmem:[#allocation2 + $0x400] sm:$0xff]
        %v945 = vld [vmem:[#allocation2 + $0x408] sm:$0xff]
        %v946 = vld [vmem:[#allocation2 + $0x410] sm:$0xff]
        %v947 = vld [vmem:[#allocation2 + $0x418] sm:$0xff]
        %v948 = vld [vmem:[#allocation2 + $0x420] sm:$0xff]
        %v949 = vld [vmem:[#allocation2 + $0x428] sm:$0xff]
        %v950 = vld [vmem:[#allocation2 + $0x430] sm:$0xff]
        %v951 = vld [vmem:[#allocation2 + $0x438] sm:$0xff]
        %v952 = vld [vmem:[#allocation2 + $0x440] sm:$0xff]
        %v953 = vld [vmem:[#allocation2 + $0x448] sm:$0xff]
        %v954 = vld [vmem:[#allocation2 + $0x450] sm:$0xff]
        %v955 = vld [vmem:[#allocation2 + $0x458] sm:$0xff]
        %v956 = vld [vmem:[#allocation2 + $0x460] sm:$0xff]
        %v957 = vld [vmem:[#allocation2 + $0x468] sm:$0xff]
        %v958 = vld [vmem:[#allocation2 + $0x470] sm:$0xff]
        %v959 = vld [vmem:[#allocation2 + $0x478] sm:$0xff]
        %v960 = vld [vmem:[#allocation2 + $0x480] sm:$0xff]
        %v961 = vld [vmem:[#allocation2 + $0x488] sm:$0xff]
        %v962 = vld [vmem:[#allocation2 + $0x490] sm:$0xff]
        %v963 = vld [vmem:[#allocation2 + $0x498] sm:$0xff]
        %v964 = vld [vmem:[#allocation2 + $0x4a0] sm:$0xff]
        %v965 = vld [vmem:[#allocation2 + $0x4a8] sm:$0xff]
        %v966 = vld [vmem:[#allocation2 + $0x4b0] sm:$0xff]
        %v967 = vld [vmem:[#allocation2 + $0x4b8] sm:$0xff]
        %v968 = vld [vmem:[#allocation2 + $0x4c0] sm:$0xff]
        %v969 = vld [vmem:[#allocation2 + $0x4c8] sm:$0xff]
        %v970 = vld [vmem:[#allocation2 + $0x4d0] sm:$0xff]
        %v971 = vld [vmem:[#allocation2 + $0x4d8] sm:$0xff]
        %v972 = vld [vmem:[#allocation2 + $0x4e0] sm:$0xff]
        %v973 = vld [vmem:[#allocation2 + $0x4e8] sm:$0xff]
        %v974 = vld [vmem:[#allocation2 + $0x4f0] sm:$0xff]
        %v975 = vld [vmem:[#allocation2 + $0x4f8] sm:$0xff]
        %v976 = vld [vmem:[#allocation2 + $0x500] sm:$0xff]
        %v977 = vld [vmem:[#allocation2 + $0x508] sm:$0xff]
        %v978 = vld [vmem:[#allocation2 + $0x510] sm:$0xff]
        %v979 = vld [vmem:[#allocation2 + $0x518] sm:$0xff]
        %v980 = vld [vmem:[#allocation2 + $0x520] sm:$0xff]
        %v981 = vld [vmem:[#allocation2 + $0x528] sm:$0xff]
        %v982 = vld [vmem:[#allocation2 + $0x530] sm:$0xff]
        %v983 = vld [vmem:[#allocation2 + $0x538] sm:$0xff]
        %v984 = vld [vmem:[#allocation2 + $0x540] sm:$0xff]
        %v985 = vld [vmem:[#allocation2 + $0x548] sm:$0xff]
        %v986 = vld [vmem:[#allocation2 + $0x550] sm:$0xff]
        %v987 = vld [vmem:[#allocation2 + $0x558] sm:$0xff]
        %v988 = vld [vmem:[#allocation2 + $0x560] sm:$0xff]
        %v989 = vld [vmem:[#allocation2 + $0x568] sm:$0xff]
        %v990 = vld [vmem:[#allocation2 + $0x570] sm:$0xff]
        %v991 = vld [vmem:[#allocation2 + $0x578] sm:$0xff]
        %v992 = vld [vmem:[#allocation2 + $0x580] sm:$0xff]
        %v993 = vld [vmem:[#allocation2 + $0x588] sm:$0xff]
        %v994 = vld [vmem:[#allocation2 + $0x590] sm:$0xff]
        %v995 = vld [vmem:[#allocation2 + $0x598] sm:$0xff]
        %v996 = vld [vmem:[#allocation2 + $0x5a0] sm:$0xff]
        %v997 = vld [vmem:[#allocation2 + $0x5a8] sm:$0xff]
        %v998 = vld [vmem:[#allocation2 + $0x5b0] sm:$0xff]
        %v999 = vld [vmem:[#allocation2 + $0x5b8] sm:$0xff]
        %v1000 = vld [vmem:[#allocation2 + $0x5c0] sm:$0xff]
        %v1001 = vld [vmem:[#allocation2 + $0x5c8] sm:$0xff]
        %v1002 = vld [vmem:[#allocation2 + $0x5d0] sm:$0xff]
        %v1003 = vld [vmem:[#allocation2 + $0x5d8] sm:$0xff]
        %v1004 = vld [vmem:[#allocation2 + $0x5e0] sm:$0xff]
        %v1005 = vld [vmem:[#allocation2 + $0x5e8] sm:$0xff]
        %v1006 = vld [vmem:[#allocation2 + $0x5f0] sm:$0xff]
        %v1007 = vld [vmem:[#allocation2 + $0x5f8] sm:$0xff]
        %v1008 = vld [vmem:[#allocation2 + $0x600] sm:$0xff]
        %v1009 = vld [vmem:[#allocation2 + $0x608] sm:$0xff]
        %v1010 = vld [vmem:[#allocation2 + $0x610] sm:$0xff]
        %v1011 = vld [vmem:[#allocation2 + $0x618] sm:$0xff]
        %v1012 = vld [vmem:[#allocation2 + $0x620] sm:$0xff]
        %v1013 = vld [vmem:[#allocation2 + $0x628] sm:$0xff]
        %v1014 = vld [vmem:[#allocation2 + $0x630] sm:$0xff]
        %v1015 = vld [vmem:[#allocation2 + $0x638] sm:$0xff]
        %v1016 = vld [vmem:[#allocation2 + $0x640] sm:$0xff]
        %v1017 = vld [vmem:[#allocation2 + $0x648] sm:$0xff]
        %v1018 = vld [vmem:[#allocation2 + $0x650] sm:$0xff]
        %v1019 = vld [vmem:[#allocation2 + $0x658] sm:$0xff]
        %v1020 = vld [vmem:[#allocation2 + $0x660] sm:$0xff]
        %v1021 = vld [vmem:[#allocation2 + $0x668] sm:$0xff]
        %v1022 = vld [vmem:[#allocation2 + $0x670] sm:$0xff]
        %v1023 = vld [vmem:[#allocation2 + $0x678] sm:$0xff]
        %v1024 = vld [vmem:[#allocation2 + $0x680] sm:$0xff]
        %v1025 = vld [vmem:[#allocation2 + $0x688] sm:$0xff]
        %v1026 = vld [vmem:[#allocation2 + $0x690] sm:$0xff]
        %v1027 = vld [vmem:[#allocation2 + $0x698] sm:$0xff]
        %v1028 = vld [vmem:[#allocation2 + $0x6a0] sm:$0xff]
        %v1029 = vld [vmem:[#allocation2 + $0x6a8] sm:$0xff]
        %v1030 = vld [vmem:[#allocation2 + $0x6b0] sm:$0xff]
        %v1031 = vld [vmem:[#allocation2 + $0x6b8] sm:$0xff]
        %v1032 = vld [vmem:[#allocation2 + $0x6c0] sm:$0xff]
        %v1033 = vld [vmem:[#allocation2 + $0x6c8] sm:$0xff]
        %v1034 = vld [vmem:[#allocation2 + $0x6d0] sm:$0xff]
        %v1035 = vld [vmem:[#allocation2 + $0x6d8] sm:$0xff]
        %v1036 = vld [vmem:[#allocation2 + $0x6e0] sm:$0xff]
        %v1037 = vld [vmem:[#allocation2 + $0x6e8] sm:$0xff]
        %v1038 = vld [vmem:[#allocation2 + $0x6f0] sm:$0xff]
        %v1039 = vld [vmem:[#allocation2 + $0x6f8] sm:$0xff]
        %v1040 = vld [vmem:[#allocation2 + $0x700] sm:$0xff]
        %v1041 = vld [vmem:[#allocation2 + $0x708] sm:$0xff]
        %v1042 = vld [vmem:[#allocation2 + $0x710] sm:$0xff]
        %v1043 = vld [vmem:[#allocation2 + $0x718] sm:$0xff]
        %v1044 = vld [vmem:[#allocation2 + $0x720] sm:$0xff]
        %v1045 = vld [vmem:[#allocation2 + $0x728] sm:$0xff]
        %v1046 = vld [vmem:[#allocation2 + $0x730] sm:$0xff]
        %v1047 = vld [vmem:[#allocation2 + $0x738] sm:$0xff]
        %v1048 = vld [vmem:[#allocation2 + $0x740] sm:$0xff]
        %v1049 = vld [vmem:[#allocation2 + $0x748] sm:$0xff]
        %v1050 = vld [vmem:[#allocation2 + $0x750] sm:$0xff]
        %v1051 = vld [vmem:[#allocation2 + $0x758] sm:$0xff]
        %v1052 = vld [vmem:[#allocation2 + $0x760] sm:$0xff]
        %v1053 = vld [vmem:[#allocation2 + $0x768] sm:$0xff]
        %v1054 = vld [vmem:[#allocation2 + $0x770] sm:$0xff]
        %v1055 = vld [vmem:[#allocation2 + $0x778] sm:$0xff]
        %v1056 = vld [vmem:[#allocation2 + $0x780] sm:$0xff]
        %v1057 = vld [vmem:[#allocation2 + $0x788] sm:$0xff]
        %v1058 = vld [vmem:[#allocation2 + $0x790] sm:$0xff]
        %v1059 = vld [vmem:[#allocation2 + $0x798] sm:$0xff]
        %v1060 = vld [vmem:[#allocation2 + $0x7a0] sm:$0xff]
        %v1061 = vld [vmem:[#allocation2 + $0x7a8] sm:$0xff]
        %v1062 = vld [vmem:[#allocation2 + $0x7b0] sm:$0xff]
        %v1063 = vld [vmem:[#allocation2 + $0x7b8] sm:$0xff]
        %v1064 = vld [vmem:[#allocation2 + $0x7c0] sm:$0xff]
        %v1065 = vld [vmem:[#allocation2 + $0x7c8] sm:$0xff]
        %v1066 = vld [vmem:[#allocation2 + $0x7d0] sm:$0xff]
        %v1067 = vld [vmem:[#allocation2 + $0x7d8] sm:$0xff]
        %v1068 = vld [vmem:[#allocation2 + $0x7e0] sm:$0xff]
        %v1069 = vld [vmem:[#allocation2 + $0x7e8] sm:$0xff]
        %v1070 = vld [vmem:[#allocation2 + $0x7f0] sm:$0xff]
        %v1071 = vld [vmem:[#allocation2 + $0x7f8] sm:$0xff]
        %v1072 = vld [vmem:[#allocation2 + $0x800] sm:$0xff]
        %v1073 = vld [vmem:[#allocation2 + $0x808] sm:$0xff]
        %v1074 = vld [vmem:[#allocation2 + $0x810] sm:$0xff]
        %v1075 = vld [vmem:[#allocation2 + $0x818] sm:$0xff]
        %v1076 = vld [vmem:[#allocation2 + $0x820] sm:$0xff]
        %v1077 = vld [vmem:[#allocation2 + $0x828] sm:$0xff]
        %v1078 = vld [vmem:[#allocation2 + $0x830] sm:$0xff]
        %v1079 = vld [vmem:[#allocation2 + $0x838] sm:$0xff]
        %v1080 = vld [vmem:[#allocation2 + $0x840] sm:$0xff]
        %v1081 = vld [vmem:[#allocation2 + $0x848] sm:$0xff]
        %v1082 = vld [vmem:[#allocation2 + $0x850] sm:$0xff]
        %v1083 = vld [vmem:[#allocation2 + $0x858] sm:$0xff]
        %v1084 = vld [vmem:[#allocation2 + $0x860] sm:$0xff]
        %v1085 = vld [vmem:[#allocation2 + $0x868] sm:$0xff]
        %v1086 = vld [vmem:[#allocation2 + $0x870] sm:$0xff]
        %v1087 = vld [vmem:[#allocation2 + $0x878] sm:$0xff]
        %v1088 = vld [vmem:[#allocation2 + $0x880] sm:$0xff]
        %v1089 = vld [vmem:[#allocation2 + $0x888] sm:$0xff]
        %v1090 = vld [vmem:[#allocation2 + $0x890] sm:$0xff]
        %v1091 = vld [vmem:[#allocation2 + $0x898] sm:$0xff]
        %v1092 = vld [vmem:[#allocation2 + $0x8a0] sm:$0xff]
        %v1093 = vld [vmem:[#allocation2 + $0x8a8] sm:$0xff]
        %v1094 = vld [vmem:[#allocation2 + $0x8b0] sm:$0xff]
        %v1095 = vld [vmem:[#allocation2 + $0x8b8] sm:$0xff]
        %v1096 = vld [vmem:[#allocation2 + $0x8c0] sm:$0xff]
        %v1097 = vld [vmem:[#allocation2 + $0x8c8] sm:$0xff]
        %v1098 = vld [vmem:[#allocation2 + $0x8d0] sm:$0xff]
        %v1099 = vld [vmem:[#allocation2 + $0x8d8] sm:$0xff]
        %v1100 = vld [vmem:[#allocation2 + $0x8e0] sm:$0xff]
        %v1101 = vld [vmem:[#allocation2 + $0x8e8] sm:$0xff]
        %v1102 = vld [vmem:[#allocation2 + $0x8f0] sm:$0xff]
        %v1103 = vld [vmem:[#allocation2 + $0x8f8] sm:$0xff]
        %v1104 = vld [vmem:[%s1] sm:$0xff]
        %v1105 = vld [vmem:[%s1 + $0x8] sm:$0xff]
        %v1106 = vld [vmem:[%s1 + $0x10] sm:$0xff]
        %v1107 = vld [vmem:[%s1 + $0x18] sm:$0xff]
        %v1108 = vld [vmem:[%s1 + $0x20] sm:$0xff]
        %v1109 = vld [vmem:[%s1 + $0x28] sm:$0xff]
        %v1110 = vld [vmem:[%s1 + $0x30] sm:$0xff]
        %v1111 = vld [vmem:[%s1 + $0x38] sm:$0xff]
        %v1112 = vld [vmem:[%s1 + $0x40] sm:$0xff]
        %v1113 = vld [vmem:[%s1 + $0x48] sm:$0xff]
        %v1114 = vld [vmem:[%s1 + $0x50] sm:$0xff]
        %v1115 = vld [vmem:[%s1 + $0x58] sm:$0xff]
        %v1116 = vld [vmem:[%s1 + $0x60] sm:$0xff]
        %v1117 = vld [vmem:[%s1 + $0x68] sm:$0xff]
        %v1118 = vld [vmem:[%s1 + $0x70] sm:$0xff]
        %v1119 = vld [vmem:[%s1 + $0x78] sm:$0xff]
        %v1120 = vld [vmem:[%s1 + $0x80] sm:$0xff]
        %v1121 = vld [vmem:[%s1 + $0x88] sm:$0xff]
        %v1122 = vld [vmem:[%s1 + $0x90] sm:$0xff]
        %v1123 = vld [vmem:[%s1 + $0x98] sm:$0xff]
        %v1124 = vld [vmem:[%s1 + $0xa0] sm:$0xff]
        %v1125 = vld [vmem:[%s1 + $0xa8] sm:$0xff]
        %v1126 = vld [vmem:[%s1 + $0xb0] sm:$0xff]
        %v1127 = vld [vmem:[%s1 + $0xb8] sm:$0xff]
        %v1128 = vld [vmem:[%s1 + $0xc0] sm:$0xff]
        %v1129 = vld [vmem:[%s1 + $0xc8] sm:$0xff]
        %v1130 = vld [vmem:[%s1 + $0xd0] sm:$0xff]
        %v1131 = vld [vmem:[%s1 + $0xd8] sm:$0xff]
        %v1132 = vld [vmem:[%s1 + $0xe0] sm:$0xff]
        %v1133 = vld [vmem:[%s1 + $0xe8] sm:$0xff]
        %v1134 = vld [vmem:[%s1 + $0xf0] sm:$0xff]
        %v1135 = vld [vmem:[%s1 + $0xf8] sm:$0xff]
        %v1136 = vld [vmem:[%s1 + $0x100] sm:$0xff]
        %v1137 = vld [vmem:[%s1 + $0x108] sm:$0xff]
        %v1138 = vld [vmem:[%s1 + $0x110] sm:$0xff]
        %v1139 = vld [vmem:[%s1 + $0x118] sm:$0xff]
        %v1140 = vld [vmem:[%s1 + $0x120] sm:$0xff]
        %v1141 = vld [vmem:[%s1 + $0x128] sm:$0xff]
        %v1142 = vld [vmem:[%s1 + $0x130] sm:$0xff]
        %v1143 = vld [vmem:[%s1 + $0x138] sm:$0xff]
        %v1144 = vld [vmem:[%s1 + $0x140] sm:$0xff]
        %v1145 = vld [vmem:[%s1 + $0x148] sm:$0xff]
        %v1146 = vld [vmem:[%s1 + $0x150] sm:$0xff]
        %v1147 = vld [vmem:[%s1 + $0x158] sm:$0xff]
        %v1148 = vld [vmem:[%s1 + $0x160] sm:$0xff]
        %v1149 = vld [vmem:[%s1 + $0x168] sm:$0xff]
        %v1150 = vld [vmem:[%s1 + $0x170] sm:$0xff]
        %v1151 = vld [vmem:[%s1 + $0x178] sm:$0xff]
        %v1152 = vld [vmem:[%s1 + $0x180] sm:$0xff]
        %v1153 = vld [vmem:[%s1 + $0x188] sm:$0xff]
        %v1154 = vld [vmem:[%s1 + $0x190] sm:$0xff]
        %v1155 = vld [vmem:[%s1 + $0x198] sm:$0xff]
        %v1156 = vld [vmem:[%s1 + $0x1a0] sm:$0xff]
        %v1157 = vld [vmem:[%s1 + $0x1a8] sm:$0xff]
        %v1158 = vld [vmem:[%s1 + $0x1b0] sm:$0xff]
        %v1159 = vld [vmem:[%s1 + $0x1b8] sm:$0xff]
        %v1160 = vld [vmem:[%s1 + $0x1c0] sm:$0xff]
        %v1161 = vld [vmem:[%s1 + $0x1c8] sm:$0xff]
        %v1162 = vld [vmem:[%s1 + $0x1d0] sm:$0xff]
        %v1163 = vld [vmem:[%s1 + $0x1d8] sm:$0xff]
        %v1164 = vld [vmem:[%s1 + $0x1e0] sm:$0xff]
        %v1165 = vld [vmem:[%s1 + $0x1e8] sm:$0xff]
        %v1166 = vld [vmem:[%s1 + $0x1f0] sm:$0xff]
        %v1167 = vld [vmem:[%s1 + $0x1f8] sm:$0xff]
        %v1168 = vld [vmem:[%s1 + $0x200] sm:$0xff]
        %v1169 = vld [vmem:[%s1 + $0x208] sm:$0xff]
        %v1170 = vld [vmem:[%s1 + $0x210] sm:$0xff]
        %v1171 = vld [vmem:[%s1 + $0x218] sm:$0xff]
        %v1172 = vld [vmem:[%s1 + $0x220] sm:$0xff]
        %v1173 = vld [vmem:[%s1 + $0x228] sm:$0xff]
        %v1174 = vld [vmem:[%s1 + $0x230] sm:$0xff]
        %v1175 = vld [vmem:[%s1 + $0x238] sm:$0xff]
        %v1176 = vld [vmem:[%s1 + $0x240] sm:$0xff]
        %v1177 = vld [vmem:[%s1 + $0x248] sm:$0xff]
        %v1178 = vld [vmem:[%s1 + $0x250] sm:$0xff]
        %v1179 = vld [vmem:[%s1 + $0x258] sm:$0xff]
        %v1180 = vld [vmem:[%s1 + $0x260] sm:$0xff]
        %v1181 = vld [vmem:[%s1 + $0x268] sm:$0xff]
        %v1182 = vld [vmem:[%s1 + $0x270] sm:$0xff]
        %v1183 = vld [vmem:[%s1 + $0x278] sm:$0xff]
        %v1184 = vld [vmem:[%s1 + $0x280] sm:$0xff]
        %v1185 = vld [vmem:[%s1 + $0x288] sm:$0xff]
        %v1186 = vld [vmem:[%s1 + $0x290] sm:$0xff]
        %v1187 = vld [vmem:[%s1 + $0x298] sm:$0xff]
        %v1188 = vld [vmem:[%s1 + $0x2a0] sm:$0xff]
        %v1189 = vld [vmem:[%s1 + $0x2a8] sm:$0xff]
        %v1190 = vld [vmem:[%s1 + $0x2b0] sm:$0xff]
        %v1191 = vld [vmem:[%s1 + $0x2b8] sm:$0xff]
        %v1192 = vld [vmem:[%s1 + $0x2c0] sm:$0xff]
        %v1193 = vld [vmem:[%s1 + $0x2c8] sm:$0xff]
        %v1194 = vld [vmem:[%s1 + $0x2d0] sm:$0xff]
        %v1195 = vld [vmem:[%s1 + $0x2d8] sm:$0xff]
        %v1196 = vld [vmem:[%s1 + $0x2e0] sm:$0xff]
        %v1197 = vld [vmem:[%s1 + $0x2e8] sm:$0xff]
        %v1198 = vld [vmem:[%s1 + $0x2f0] sm:$0xff]
        %v1199 = vld [vmem:[%s1 + $0x2f8] sm:$0xff]
        %v1200 = vld [vmem:[%s1 + $0x300] sm:$0xff]
        %v1201 = vld [vmem:[%s1 + $0x308] sm:$0xff]
        %v1202 = vld [vmem:[%s1 + $0x310] sm:$0xff]
        %v1203 = vld [vmem:[%s1 + $0x318] sm:$0xff]
        %v1204 = vld [vmem:[%s1 + $0x320] sm:$0xff]
        %v1205 = vld [vmem:[%s1 + $0x328] sm:$0xff]
        %v1206 = vld [vmem:[%s1 + $0x330] sm:$0xff]
        %v1207 = vld [vmem:[%s1 + $0x338] sm:$0xff]
        %v1208 = vld [vmem:[%s1 + $0x340] sm:$0xff]
        %v1209 = vld [vmem:[%s1 + $0x348] sm:$0xff]
        %v1210 = vld [vmem:[%s1 + $0x350] sm:$0xff]
        %v1211 = vld [vmem:[%s1 + $0x358] sm:$0xff]
        %v1212 = vld [vmem:[%s1 + $0x360] sm:$0xff]
        %v1213 = vld [vmem:[%s1 + $0x368] sm:$0xff]
        %v1214 = vld [vmem:[%s1 + $0x370] sm:$0xff]
        %v1215 = vld [vmem:[%s1 + $0x378] sm:$0xff]
        %v1216 = vld [vmem:[%s1 + $0x380] sm:$0xff]
        %v1217 = vld [vmem:[%s1 + $0x388] sm:$0xff]
        %v1218 = vld [vmem:[%s1 + $0x390] sm:$0xff]
        %v1219 = vld [vmem:[%s1 + $0x398] sm:$0xff]
        %v1220 = vld [vmem:[%s1 + $0x3a0] sm:$0xff]
        %v1221 = vld [vmem:[%s1 + $0x3a8] sm:$0xff]
        %v1222 = vld [vmem:[%s1 + $0x3b0] sm:$0xff]
        %v1223 = vld [vmem:[%s1 + $0x3b8] sm:$0xff]
        %v1224 = vld [vmem:[%s1 + $0x3c0] sm:$0xff]
        %v1225 = vld [vmem:[%s1 + $0x3c8] sm:$0xff]
        %v1226 = vld [vmem:[%s1 + $0x3d0] sm:$0xff]
        %v1227 = vld [vmem:[%s1 + $0x3d8] sm:$0xff]
        %v1228 = vld [vmem:[%s1 + $0x3e0] sm:$0xff]
        %v1229 = vld [vmem:[%s1 + $0x3e8] sm:$0xff]
        %v1230 = vld [vmem:[%s1 + $0x3f0] sm:$0xff]
        %v1231 = vld [vmem:[%s1 + $0x3f8] sm:$0xff]
        %v1232 = vld [vmem:[%s1 + $0x400] sm:$0xff]
        %v1233 = vld [vmem:[%s1 + $0x408] sm:$0xff]
        %v1234 = vld [vmem:[%s1 + $0x410] sm:$0xff]
        %v1235 = vld [vmem:[%s1 + $0x418] sm:$0xff]
        %v1236 = vld [vmem:[%s1 + $0x420] sm:$0xff]
        %v1237 = vld [vmem:[%s1 + $0x428] sm:$0xff]
        %v1238 = vld [vmem:[%s1 + $0x430] sm:$0xff]
        %v1239 = vld [vmem:[%s1 + $0x438] sm:$0xff]
        %v1240 = vld [vmem:[%s1 + $0x440] sm:$0xff]
        %v1241 = vld [vmem:[%s1 + $0x448] sm:$0xff]
        %v1242 = vld [vmem:[%s1 + $0x450] sm:$0xff]
        %v1243 = vld [vmem:[%s1 + $0x458] sm:$0xff]
        %v1244 = vld [vmem:[%s1 + $0x460] sm:$0xff]
        %v1245 = vld [vmem:[%s1 + $0x468] sm:$0xff]
        %v1246 = vld [vmem:[%s1 + $0x470] sm:$0xff]
        %v1247 = vld [vmem:[%s1 + $0x478] sm:$0xff]
        %v1248 = vld [vmem:[%s2] sm:$0x1]
        %v1250 = vlaneseq
        %v1251 = vshrl.u32 %v1250, 7
        %v1252 = vsub.s32 0, %v1251
        %v1253 = vrot.slane %v1248, %v1252
        %1255 = vmatprep.subr.mxu0 0.0
        %1256 = vmatpush1.msra.mxu0 %v1104
        %1257 = vmatprep.subr.mxu0 0.0
        %1258 = vmatpush1.msra.mxu0 %v1105
        %1259 = vmatprep.subr.mxu0 0.0
        %1260 = vmatpush1.msra.mxu0 %v1106
        %1261 = vmatprep.subr.mxu0 0.0
        %1262 = vmatpush1.msra.mxu0 %v1107
        %1263 = vmatprep.subr.mxu0 0.0
        %1264 = vmatpush1.msra.mxu0 %v1108
        %1265 = vmatprep.subr.mxu0 0.0
        %1266 = vmatpush1.msra.mxu0 %v1109
        %1267 = vmatprep.subr.mxu0 0.0
        %1268 = vmatpush1.msra.mxu0 %v1110
        %1269 = vmatprep.subr.mxu0 0.0
        %1270 = vmatpush1.msra.mxu0 %v1111
        %1271 = vmatprep.subr.mxu0 0.0
        %1272 = vmatpush1.msra.mxu0 %v1112
        %1273 = vmatprep.subr.mxu0 0.0
        %1274 = vmatpush1.msra.mxu0 %v1113
        %1275 = vmatprep.subr.mxu0 0.0
        %1276 = vmatpush1.msra.mxu0 %v1114
        %1277 = vmatprep.subr.mxu0 0.0
        %1278 = vmatpush1.msra.mxu0 %v1115
        %1279 = vmatprep.subr.mxu0 0.0
        %1280 = vmatpush1.msra.mxu0 %v1116
        %1281 = vmatprep.subr.mxu0 0.0
        %1282 = vmatpush1.msra.mxu0 %v1117
        %1283 = vmatprep.subr.mxu0 0.0
        %1284 = vmatpush1.msra.mxu0 %v1118
        %1285 = vmatprep.subr.mxu0 0.0
        %1286 = vmatpush1.msra.mxu0 %v1119
        %1287 = vmatprep.subr.mxu0 0.0
        %1288 = vmatpush1.msra.mxu0 %v1120
        %1289 = vmatprep.subr.mxu0 0.0
        %1290 = vmatpush1.msra.mxu0 %v1121
        %1291 = vmatprep.subr.mxu0 0.0
        %1292 = vmatpush1.msra.mxu0 %v1122
        %1293 = vmatprep.subr.mxu0 0.0
        %1294 = vmatpush1.msra.mxu0 %v1123
        %1295 = vmatprep.subr.mxu0 0.0
        %1296 = vmatpush1.msra.mxu0 %v1124
        %1297 = vmatprep.subr.mxu0 0.0
        %1298 = vmatpush1.msra.mxu0 %v1125
        %1299 = vmatprep.subr.mxu0 0.0
        %1300 = vmatpush1.msra.mxu0 %v1126
        %1301 = vmatprep.subr.mxu0 0.0
        %1302 = vmatpush1.msra.mxu0 %v1127
        %1303 = vmatprep.subr.mxu0 0.0
        %1304 = vmatpush1.msra.mxu0 %v1128
        %1305 = vmatprep.subr.mxu0 0.0
        %1306 = vmatpush1.msra.mxu0 %v1129
        %1307 = vmatprep.subr.mxu0 0.0
        %1308 = vmatpush1.msra.mxu0 %v1130
        %1309 = vmatprep.subr.mxu0 0.0
        %1310 = vmatpush1.msra.mxu0 %v1131
        %1311 = vmatprep.subr.mxu0 0.0
        %1312 = vmatpush1.msra.mxu0 %v1132
        %1313 = vmatprep.subr.mxu0 0.0
        %1314 = vmatpush1.msra.mxu0 %v1133
        %1315 = vmatprep.subr.mxu0 0.0
        %1316 = vmatpush1.msra.mxu0 %v1134
        %1317 = vmatprep.subr.mxu0 0.0
        %1318 = vmatpush1.msra.mxu0 %v1135
        %1319 = vmatprep.mubr.f32.mxu0 %v817
        %1320 = vmatmul.mubr.f32.gmra.mrb[0].mxu0 %v816
        %v1321 = vpop.f32.mrb[0].mxu0
        %v1322 = vadd.f32 %v1253, %v1321
        %v1323 = vpop.f32.mrb[0].mxu0
        %1324 = vmatprep.mubr.f32.mxu0 %v826
        %1325 = vmatmul.mubr.f32.gmra.mrb[0].mxu0 %v825
        %v1326 = vpop.f32.mrb[0].mxu0
        %v1327 = vadd.f32 %v1253, %v1326
        %v1328 = vpop.f32.mrb[0].mxu0
        %1329 = vmatprep.mubr.f32.mxu0 %v835
        %1330 = vmatmul.mubr.f32.gmra.mrb[0].mxu0 %v834
        %v1331 = vpop.f32.mrb[0].mxu0
        %v1332 = vadd.f32 %v1253, %v1331
        %v1333 = vpop.f32.mrb[0].mxu0
        %1334 = vmatprep.mubr.f32.mxu0 %v844
        %1335 = vmatmul.mubr.f32.gmra.mrb[0].mxu0 %v843
        %v1336 = vpop.f32.mrb[0].mxu0
        %v1337 = vadd.f32 %v1253, %v1336
        %v1338 = vpop.f32.mrb[0].mxu0
        %1339 = vmatprep.mubr.f32.mxu0 %v853
        %1340 = vmatmul.mubr.f32.gmra.mrb[0].mxu0 %v852
        %v1341 = vpop.f32.mrb[0].mxu0
        %v1342 = vadd.f32 %v1253, %v1341
        %v1343 = vpop.f32.mrb[0].mxu0
        %1344 = vmatprep.mubr.f32.mxu0 %v862
        %1345 = vmatmul.mubr.f32.gmra.mrb[0].mxu0 %v861
        %v1346 = vpop.f32.mrb[0].mxu0
        %v1347 = vadd.f32 %v1253, %v1346
        %v1348 = vpop.f32.mrb[0].mxu0
        %1349 = vmatprep.mubr.f32.mxu0 %v871
        %1350 = vmatmul.mubr.f32.gmra.mrb[0].mxu0 %v870
        %v1351 = vpop.f32.mrb[0].mxu0
        %v1352 = vadd.f32 %v1253, %v1351
        %v1353 = vpop.f32.mrb[0].mxu0
        %1354 = vmatprep.mubr.f32.mxu0 %v880
        %1355 = vmatmul.mubr.f32.gmra.mrb[0].mxu0 %v879
        %v1356 = vpop.f32.mrb[0].mxu0
        %v1357 = vadd.f32 %v1253, %v1356
        %v1358 = vpop.f32.mrb[0].mxu0
        %1359 = vmatprep.mubr.f32.mxu0 %v889
        %1360 = vmatmul.mubr.f32.gmra.mrb[0].mxu0 %v888
        %v1361 = vpop.f32.mrb[0].mxu0
        %v1362 = vadd.f32 %v1253, %v1361
        %v1363 = vpop.f32.mrb[0].mxu0
        %1364 = vmatprep.mubr.f32.mxu0 %v898
        %1365 = vmatmul.mubr.f32.gmra.mrb[0].mxu0 %v897
        %v1366 = vpop.f32.mrb[0].mxu0
        %v1367 = vadd.f32 %v1253, %v1366
        %v1368 = vpop.f32.mrb[0].mxu0
        %1369 = vmatprep.mubr.f32.mxu0 %v907
        %1370 = vmatmul.mubr.f32.gmra.mrb[0].mxu0 %v906
        %v1371 = vpop.f32.mrb[0].mxu0
        %v1372 = vadd.f32 %v1253, %v1371
        %v1373 = vpop.f32.mrb[0].mxu0
        %1374 = vmatprep.mubr.f32.mxu0 %v916
        %1375 = vmatmul.mubr.f32.gmra.mrb[0].mxu0 %v915
        %v1376 = vpop.f32.mrb[0].mxu0
        %v1377 = vadd.f32 %v1253, %v1376
        %v1378 = vpop.f32.mrb[0].mxu0
        %1379 = vmatprep.mubr.f32.mxu0 %v925
        %1380 = vmatmul.mubr.f32.gmra.mrb[0].mxu0 %v924
        %v1381 = vpop.f32.mrb[0].mxu0
        %v1382 = vadd.f32 %v1253, %v1381
        %v1383 = vpop.f32.mrb[0].mxu0
        %1384 = vmatprep.mubr.f32.mxu0 %v934
        %1385 = vmatmul.mubr.f32.gmra.mrb[0].mxu0 %v933
        %v1386 = vpop.f32.mrb[0].mxu0
        %v1387 = vadd.f32 %v1253, %v1386
        %v1388 = vpop.f32.mrb[0].mxu0
        %1389 = vmatprep.mubr.f32.mxu0 %v943
        %1390 = vmatmul.mubr.f32.gmra.mrb[0].mxu0 %v942
        %v1391 = vpop.f32.mrb[0].mxu0
        %v1392 = vadd.f32 %v1253, %v1391
        %v1393 = vpop.f32.mrb[0].mxu0
        %1394 = vmatprep.mubr.f32.mxu0 %v952
        %1395 = vmatmul.mubr.f32.gmra.mrb[0].mxu0 %v951
        %v1396 = vpop.f32.mrb[0].mxu0
        %v1397 = vadd.f32 %v1253, %v1396
        %v1398 = vpop.f32.mrb[0].mxu0
        %1399 = vmatprep.mubr.f32.mxu0 %v961
        %1400 = vmatmul.mubr.f32.gmra.mrb[0].mxu0 %v960
        %v1401 = vpop.f32.mrb[0].mxu0
        %v1402 = vadd.f32 %v1253, %v1401
        %v1403 = vpop.f32.mrb[0].mxu0
        %1404 = vmatprep.mubr.f32.mxu0 %v970
        %1405 = vmatmul.mubr.f32.gmra.mrb[0].mxu0 %v969
        %v1406 = vpop.f32.mrb[0].mxu0
        %v1407 = vadd.f32 %v1253, %v1406
        %v1408 = vpop.f32.mrb[0].mxu0
        %1409 = vmatprep.mubr.f32.mxu0 %v979
        %1410 = vmatmul.mubr.f32.gmra.mrb[0].mxu0 %v978
        %v1411 = vpop.f32.mrb[0].mxu0
        %v1412 = vadd.f32 %v1253, %v1411
        %v1413 = vpop.f32.mrb[0].mxu0
        %1414 = vmatprep.mubr.f32.mxu0 %v988
        %1415 = vmatmul.mubr.f32.gmra.mrb[0].mxu0 %v987
        %v1416 = vpop.f32.mrb[0].mxu0
        %v1417 = vadd.f32 %v1253, %v1416
        %v1418 = vpop.f32.mrb[0].mxu0
        %1419 = vmatprep.mubr.f32.mxu0 %v997
        %1420 = vmatmul.mubr.f32.gmra.mrb[0].mxu0 %v996
        %v1421 = vpop.f32.mrb[0].mxu0
        %v1422 = vadd.f32 %v1253, %v1421
        %v1423 = vpop.f32.mrb[0].mxu0
        %1424 = vmatprep.mubr.f32.mxu0 %v1006
        %1425 = vmatmul.mubr.f32.gmra.mrb[0].mxu0 %v1005
        %v1426 = vpop.f32.mrb[0].mxu0
        %v1427 = vadd.f32 %v1253, %v1426
        %v1428 = vpop.f32.mrb[0].mxu0
        %1429 = vmatprep.mubr.f32.mxu0 %v1015
        %1430 = vmatmul.mubr.f32.gmra.mrb[0].mxu0 %v1014
        %v1431 = vpop.f32.mrb[0].mxu0
        %v1432 = vadd.f32 %v1253, %v1431
        %v1433 = vpop.f32.mrb[0].mxu0
        %1434 = vmatprep.mubr.f32.mxu0 %v1024
        %1435 = vmatmul.mubr.f32.gmra.mrb[0].mxu0 %v1023
        %v1436 = vpop.f32.mrb[0].mxu0
        %v1437 = vadd.f32 %v1253, %v1436
        %v1438 = vpop.f32.mrb[0].mxu0
        %1439 = vmatprep.mubr.f32.mxu0 %v1033
        %1440 = vmatmul.mubr.f32.gmra.mrb[0].mxu0 %v1032
        %v1441 = vpop.f32.mrb[0].mxu0
        %v1442 = vadd.f32 %v1253, %v1441
        %v1443 = vpop.f32.mrb[0].mxu0
        %1444 = vmatprep.mubr.f32.mxu0 %v1042
        %1445 = vmatmul.mubr.f32.gmra.mrb[0].mxu0 %v1041
        %v1446 = vpop.f32.mrb[0].mxu0
        %v1447 = vadd.f32 %v1253, %v1446
        %v1448 = vpop.f32.mrb[0].mxu0
        %1449 = vmatprep.mubr.f32.mxu0 %v1051
        %1450 = vmatmul.mubr.f32.gmra.mrb[0].mxu0 %v1050
        %v1451 = vpop.f32.mrb[0].mxu0
        %v1452 = vadd.f32 %v1253, %v1451
        %v1453 = vpop.f32.mrb[0].mxu0
        %1454 = vmatprep.mubr.f32.mxu0 %v1060
        %1455 = vmatmul.mubr.f32.gmra.mrb[0].mxu0 %v1059
        %v1456 = vpop.f32.mrb[0].mxu0
        %v1457 = vadd.f32 %v1253, %v1456
        %v1458 = vpop.f32.mrb[0].mxu0
        %1459 = vmatprep.mubr.f32.mxu0 %v1069
        %1460 = vmatmul.mubr.f32.gmra.mrb[0].mxu0 %v1068
        %v1461 = vpop.f32.mrb[0].mxu0
        %v1462 = vadd.f32 %v1253, %v1461
        %v1463 = vpop.f32.mrb[0].mxu0
        %1464 = vmatprep.mubr.f32.mxu0 %v1078
        %1465 = vmatmul.mubr.f32.gmra.mrb[0].mxu0 %v1077
        %v1466 = vpop.f32.mrb[0].mxu0
        %v1467 = vadd.f32 %v1253, %v1466
        %v1468 = vpop.f32.mrb[0].mxu0
        %1469 = vmatprep.mubr.f32.mxu0 %v1087
        %1470 = vmatmul.mubr.f32.gmra.mrb[0].mxu0 %v1086
        %v1471 = vpop.f32.mrb[0].mxu0
        %v1472 = vadd.f32 %v1253, %v1471
        %v1473 = vpop.f32.mrb[0].mxu0
        %1474 = vmatprep.mubr.f32.mxu0 %v1096
        %1475 = vmatmul.mubr.f32.gmra.mrb[0].mxu0 %v1095
        %v1476 = vpop.f32.mrb[0].mxu0
        %v1477 = vadd.f32 %v1253, %v1476
        %v1478 = vpop.f32.mrb[0].mxu0
        %1479 = vdwg.mxu0
        %1480 = vmatprep.subr.mxu0 0.0
        %1481 = vmatpush1.msra.mxu0 %v1136
        %1482 = vmatprep.subr.mxu0 0.0
        %1483 = vmatpush1.msra.mxu0 %v1137
        %1484 = vmatprep.subr.mxu0 0.0
        %1485 = vmatpush1.msra.mxu0 %v1138
        %1486 = vmatprep.subr.mxu0 0.0
        %1487 = vmatpush1.msra.mxu0 %v1139
        %1488 = vmatprep.subr.mxu0 0.0
        %1489 = vmatpush1.msra.mxu0 %v1140
        %1490 = vmatprep.subr.mxu0 0.0
        %1491 = vmatpush1.msra.mxu0 %v1141
        %1492 = vmatprep.subr.mxu0 0.0
        %1493 = vmatpush1.msra.mxu0 %v1142
        %1494 = vmatprep.subr.mxu0 0.0
        %1495 = vmatpush1.msra.mxu0 %v1143
        %1496 = vmatprep.subr.mxu0 0.0
        %1497 = vmatpush1.msra.mxu0 %v1144
        %1498 = vmatprep.subr.mxu0 0.0
        %1499 = vmatpush1.msra.mxu0 %v1145
        %1500 = vmatprep.subr.mxu0 0.0
        %1501 = vmatpush1.msra.mxu0 %v1146
        %1502 = vmatprep.subr.mxu0 0.0
        %1503 = vmatpush1.msra.mxu0 %v1147
        %1504 = vmatprep.subr.mxu0 0.0
        %1505 = vmatpush1.msra.mxu0 %v1148
        %1506 = vmatprep.subr.mxu0 0.0
        %1507 = vmatpush1.msra.mxu0 %v1149
        %1508 = vmatprep.subr.mxu0 0.0
        %1509 = vmatpush1.msra.mxu0 %v1150
        %1510 = vmatprep.subr.mxu0 0.0
        %1511 = vmatpush1.msra.mxu0 %v1151
        %1512 = vmatprep.subr.mxu0 0.0
        %1513 = vmatpush1.msra.mxu0 %v1152
        %1514 = vmatprep.subr.mxu0 0.0
        %1515 = vmatpush1.msra.mxu0 %v1153
        %1516 = vmatprep.subr.mxu0 0.0
        %1517 = vmatpush1.msra.mxu0 %v1154
        %1518 = vmatprep.subr.mxu0 0.0
        %1519 = vmatpush1.msra.mxu0 %v1155
        %1520 = vmatprep.subr.mxu0 0.0
        %1521 = vmatpush1.msra.mxu0 %v1156
        %1522 = vmatprep.subr.mxu0 0.0
        %1523 = vmatpush1.msra.mxu0 %v1157
        %1524 = vmatprep.subr.mxu0 0.0
        %1525 = vmatpush1.msra.mxu0 %v1158
        %1526 = vmatprep.subr.mxu0 0.0
        %1527 = vmatpush1.msra.mxu0 %v1159
        %1528 = vmatprep.subr.mxu0 0.0
        %1529 = vmatpush1.msra.mxu0 %v1160
        %1530 = vmatprep.subr.mxu0 0.0
        %1531 = vmatpush1.msra.mxu0 %v1161
        %1532 = vmatprep.subr.mxu0 0.0
        %1533 = vmatpush1.msra.mxu0 %v1162
        %1534 = vmatprep.subr.mxu0 0.0
        %1535 = vmatpush1.msra.mxu0 %v1163
        %1536 = vmatprep.subr.mxu0 0.0
        %1537 = vmatpush1.msra.mxu0 %v1164
        %1538 = vmatprep.subr.mxu0 0.0
        %1539 = vmatpush1.msra.mxu0 %v1165
        %1540 = vmatprep.subr.mxu0 0.0
        %1541 = vmatpush1.msra.mxu0 %v1166
        %1542 = vmatprep.subr.mxu0 0.0
        %1543 = vmatpush1.msra.mxu0 %v1167
        %1544 = vmatprep.mubr.f32.mxu0 %v819
        %1545 = vmatmul.mubr.f32.gmra.mrb[0].mxu0 %v818
        %v1546 = vpop.f32.mrb[0].mxu0
        %v1547 = vadd.f32 %v1322, %v1546
        %v1548 = vpop.f32.mrb[0].mxu0
        %1549 = vmatprep.mubr.f32.mxu0 %v828
        %1550 = vmatmul.mubr.f32.gmra.mrb[0].mxu0 %v827
        %v1551 = vpop.f32.mrb[0].mxu0
        %v1552 = vadd.f32 %v1327, %v1551
        %v1553 = vpop.f32.mrb[0].mxu0
        %1554 = vmatprep.mubr.f32.mxu0 %v837
        %1555 = vmatmul.mubr.f32.gmra.mrb[0].mxu0 %v836
        %v1556 = vpop.f32.mrb[0].mxu0
        %v1557 = vadd.f32 %v1332, %v1556
        %v1558 = vpop.f32.mrb[0].mxu0
        %1559 = vmatprep.mubr.f32.mxu0 %v846
        %1560 = vmatmul.mubr.f32.gmra.mrb[0].mxu0 %v845
        %v1561 = vpop.f32.mrb[0].mxu0
        %v1562 = vadd.f32 %v1337, %v1561
        %v1563 = vpop.f32.mrb[0].mxu0
        %1564 = vmatprep.mubr.f32.mxu0 %v855
        %1565 = vmatmul.mubr.f32.gmra.mrb[0].mxu0 %v854
        %v1566 = vpop.f32.mrb[0].mxu0
        %v1567 = vadd.f32 %v1342, %v1566
        %v1568 = vpop.f32.mrb[0].mxu0
        %1569 = vmatprep.mubr.f32.mxu0 %v864
        %1570 = vmatmul.mubr.f32.gmra.mrb[0].mxu0 %v863
        %v1571 = vpop.f32.mrb[0].mxu0
        %v1572 = vadd.f32 %v1347, %v1571
        %v1573 = vpop.f32.mrb[0].mxu0
        %1574 = vmatprep.mubr.f32.mxu0 %v873
        %1575 = vmatmul.mubr.f32.gmra.mrb[0].mxu0 %v872
        %v1576 = vpop.f32.mrb[0].mxu0
        %v1577 = vadd.f32 %v1352, %v1576
        %v1578 = vpop.f32.mrb[0].mxu0
        %1579 = vmatprep.mubr.f32.mxu0 %v882
        %1580 = vmatmul.mubr.f32.gmra.mrb[0].mxu0 %v881
        %v1581 = vpop.f32.mrb[0].mxu0
        %v1582 = vadd.f32 %v1357, %v1581
        %v1583 = vpop.f32.mrb[0].mxu0
        %1584 = vmatprep.mubr.f32.mxu0 %v891
        %1585 = vmatmul.mubr.f32.gmra.mrb[0].mxu0 %v890
        %v1586 = vpop.f32.mrb[0].mxu0
        %v1587 = vadd.f32 %v1362, %v1586
        %v1588 = vpop.f32.mrb[0].mxu0
        %1589 = vmatprep.mubr.f32.mxu0 %v900
        %1590 = vmatmul.mubr.f32.gmra.mrb[0].mxu0 %v899
        %v1591 = vpop.f32.mrb[0].mxu0
        %v1592 = vadd.f32 %v1367, %v1591
        %v1593 = vpop.f32.mrb[0].mxu0
        %1594 = vmatprep.mubr.f32.mxu0 %v909
        %1595 = vmatmul.mubr.f32.gmra.mrb[0].mxu0 %v908
        %v1596 = vpop.f32.mrb[0].mxu0
        %v1597 = vadd.f32 %v1372, %v1596
        %v1598 = vpop.f32.mrb[0].mxu0
        %1599 = vmatprep.mubr.f32.mxu0 %v918
        %1600 = vmatmul.mubr.f32.gmra.mrb[0].mxu0 %v917
        %v1601 = vpop.f32.mrb[0].mxu0
        %v1602 = vadd.f32 %v1377, %v1601
        %v1603 = vpop.f32.mrb[0].mxu0
        %1604 = vmatprep.mubr.f32.mxu0 %v927
        %1605 = vmatmul.mubr.f32.gmra.mrb[0].mxu0 %v926
        %v1606 = vpop.f32.mrb[0].mxu0
        %v1607 = vadd.f32 %v1382, %v1606
        %v1608 = vpop.f32.mrb[0].mxu0
        %1609 = vmatprep.mubr.f32.mxu0 %v936
        %1610 = vmatmul.mubr.f32.gmra.mrb[0].mxu0 %v935
        %v1611 = vpop.f32.mrb[0].mxu0
        %v1612 = vadd.f32 %v1387, %v1611
        %v1613 = vpop.f32.mrb[0].mxu0
        %1614 = vmatprep.mubr.f32.mxu0 %v945
        %1615 = vmatmul.mubr.f32.gmra.mrb[0].mxu0 %v944
        %v1616 = vpop.f32.mrb[0].mxu0
        %v1617 = vadd.f32 %v1392, %v1616
        %v1618 = vpop.f32.mrb[0].mxu0
        %1619 = vmatprep.mubr.f32.mxu0 %v954
        %1620 = vmatmul.mubr.f32.gmra.mrb[0].mxu0 %v953
        %v1621 = vpop.f32.mrb[0].mxu0
        %v1622 = vadd.f32 %v1397, %v1621
        %v1623 = vpop.f32.mrb[0].mxu0
        %1624 = vmatprep.mubr.f32.mxu0 %v963
        %1625 = vmatmul.mubr.f32.gmra.mrb[0].mxu0 %v962
        %v1626 = vpop.f32.mrb[0].mxu0
        %v1627 = vadd.f32 %v1402, %v1626
        %v1628 = vpop.f32.mrb[0].mxu0
        %1629 = vmatprep.mubr.f32.mxu0 %v972
        %1630 = vmatmul.mubr.f32.gmra.mrb[0].mxu0 %v971
        %v1631 = vpop.f32.mrb[0].mxu0
        %v1632 = vadd.f32 %v1407, %v1631
        %v1633 = vpop.f32.mrb[0].mxu0
        %1634 = vmatprep.mubr.f32.mxu0 %v981
        %1635 = vmatmul.mubr.f32.gmra.mrb[0].mxu0 %v980
        %v1636 = vpop.f32.mrb[0].mxu0
        %v1637 = vadd.f32 %v1412, %v1636
        %v1638 = vpop.f32.mrb[0].mxu0
        %1639 = vmatprep.mubr.f32.mxu0 %v990
        %1640 = vmatmul.mubr.f32.gmra.mrb[0].mxu0 %v989
        %v1641 = vpop.f32.mrb[0].mxu0
        %v1642 = vadd.f32 %v1417, %v1641
        %v1643 = vpop.f32.mrb[0].mxu0
        %1644 = vmatprep.mubr.f32.mxu0 %v999
        %1645 = vmatmul.mubr.f32.gmra.mrb[0].mxu0 %v998
        %v1646 = vpop.f32.mrb[0].mxu0
        %v1647 = vadd.f32 %v1422, %v1646
        %v1648 = vpop.f32.mrb[0].mxu0
        %1649 = vmatprep.mubr.f32.mxu0 %v1008
        %1650 = vmatmul.mubr.f32.gmra.mrb[0].mxu0 %v1007
        %v1651 = vpop.f32.mrb[0].mxu0
        %v1652 = vadd.f32 %v1427, %v1651
        %v1653 = vpop.f32.mrb[0].mxu0
        %1654 = vmatprep.mubr.f32.mxu0 %v1017
        %1655 = vmatmul.mubr.f32.gmra.mrb[0].mxu0 %v1016
        %v1656 = vpop.f32.mrb[0].mxu0
        %v1657 = vadd.f32 %v1432, %v1656
        %v1658 = vpop.f32.mrb[0].mxu0
        %1659 = vmatprep.mubr.f32.mxu0 %v1026
        %1660 = vmatmul.mubr.f32.gmra.mrb[0].mxu0 %v1025
        %v1661 = vpop.f32.mrb[0].mxu0
        %v1662 = vadd.f32 %v1437, %v1661
        %v1663 = vpop.f32.mrb[0].mxu0
        %1664 = vmatprep.mubr.f32.mxu0 %v1035
        %1665 = vmatmul.mubr.f32.gmra.mrb[0].mxu0 %v1034
        %v1666 = vpop.f32.mrb[0].mxu0
        %v1667 = vadd.f32 %v1442, %v1666
        %v1668 = vpop.f32.mrb[0].mxu0
        %1669 = vmatprep.mubr.f32.mxu0 %v1044
        %1670 = vmatmul.mubr.f32.gmra.mrb[0].mxu0 %v1043
        %v1671 = vpop.f32.mrb[0].mxu0
        %v1672 = vadd.f32 %v1447, %v1671
        %v1673 = vpop.f32.mrb[0].mxu0
        %1674 = vmatprep.mubr.f32.mxu0 %v1053
        %1675 = vmatmul.mubr.f32.gmra.mrb[0].mxu0 %v1052
        %v1676 = vpop.f32.mrb[0].mxu0
        %v1677 = vadd.f32 %v1452, %v1676
        %v1678 = vpop.f32.mrb[0].mxu0
        %1679 = vmatprep.mubr.f32.mxu0 %v1062
        %1680 = vmatmul.mubr.f32.gmra.mrb[0].mxu0 %v1061
        %v1681 = vpop.f32.mrb[0].mxu0
        %v1682 = vadd.f32 %v1457, %v1681
        %v1683 = vpop.f32.mrb[0].mxu0
        %1684 = vmatprep.mubr.f32.mxu0 %v1071
        %1685 = vmatmul.mubr.f32.gmra.mrb[0].mxu0 %v1070
        %v1686 = vpop.f32.mrb[0].mxu0
        %v1687 = vadd.f32 %v1462, %v1686
        %v1688 = vpop.f32.mrb[0].mxu0
        %1689 = vmatprep.mubr.f32.mxu0 %v1080
        %1690 = vmatmul.mubr.f32.gmra.mrb[0].mxu0 %v1079
        %v1691 = vpop.f32.mrb[0].mxu0
        %v1692 = vadd.f32 %v1467, %v1691
        %v1693 = vpop.f32.mrb[0].mxu0
        %1694 = vmatprep.mubr.f32.mxu0 %v1089
        %1695 = vmatmul.mubr.f32.gmra.mrb[0].mxu0 %v1088
        %v1696 = vpop.f32.mrb[0].mxu0
        %v1697 = vadd.f32 %v1472, %v1696
        %v1698 = vpop.f32.mrb[0].mxu0
        %1699 = vmatprep.mubr.f32.mxu0 %v1098
        %1700 = vmatmul.mubr.f32.gmra.mrb[0].mxu0 %v1097
        %v1701 = vpop.f32.mrb[0].mxu0
        %v1702 = vadd.f32 %v1477, %v1701
        %v1703 = vpop.f32.mrb[0].mxu0
        %1704 = vdwg.mxu0
        %1705 = vmatprep.subr.mxu0 0.0
        %1706 = vmatpush1.msra.mxu0 %v1168
        %1707 = vmatprep.subr.mxu0 0.0
        %1708 = vmatpush1.msra.mxu0 %v1169
        %1709 = vmatprep.subr.mxu0 0.0
        %1710 = vmatpush1.msra.mxu0 %v1170
        %1711 = vmatprep.subr.mxu0 0.0
        %1712 = vmatpush1.msra.mxu0 %v1171
        %1713 = vmatprep.subr.mxu0 0.0
        %1714 = vmatpush1.msra.mxu0 %v1172
        %1715 = vmatprep.subr.mxu0 0.0
        %1716 = vmatpush1.msra.mxu0 %v1173
        %1717 = vmatprep.subr.mxu0 0.0
        %1718 = vmatpush1.msra.mxu0 %v1174
        %1719 = vmatprep.subr.mxu0 0.0
        %1720 = vmatpush1.msra.mxu0 %v1175
        %1721 = vmatprep.subr.mxu0 0.0
        %1722 = vmatpush1.msra.mxu0 %v1176
        %1723 = vmatprep.subr.mxu0 0.0
        %1724 = vmatpush1.msra.mxu0 %v1177
        %1725 = vmatprep.subr.mxu0 0.0
        %1726 = vmatpush1.msra.mxu0 %v1178
        %1727 = vmatprep.subr.mxu0 0.0
        %1728 = vmatpush1.msra.mxu0 %v1179
        %1729 = vmatprep.subr.mxu0 0.0
        %1730 = vmatpush1.msra.mxu0 %v1180
        %1731 = vmatprep.subr.mxu0 0.0
        %1732 = vmatpush1.msra.mxu0 %v1181
        %1733 = vmatprep.subr.mxu0 0.0
        %1734 = vmatpush1.msra.mxu0 %v1182
        %1735 = vmatprep.subr.mxu0 0.0
        %1736 = vmatpush1.msra.mxu0 %v1183
        %1737 = vmatprep.subr.mxu0 0.0
        %1738 = vmatpush1.msra.mxu0 %v1184
        %1739 = vmatprep.subr.mxu0 0.0
        %1740 = vmatpush1.msra.mxu0 %v1185
        %1741 = vmatprep.subr.mxu0 0.0
        %1742 = vmatpush1.msra.mxu0 %v1186
        %1743 = vmatprep.subr.mxu0 0.0
        %1744 = vmatpush1.msra.mxu0 %v1187
        %1745 = vmatprep.subr.mxu0 0.0
        %1746 = vmatpush1.msra.mxu0 %v1188
        %1747 = vmatprep.subr.mxu0 0.0
        %1748 = vmatpush1.msra.mxu0 %v1189
        %1749 = vmatprep.subr.mxu0 0.0
        %1750 = vmatpush1.msra.mxu0 %v1190
        %1751 = vmatprep.subr.mxu0 0.0
        %1752 = vmatpush1.msra.mxu0 %v1191
        %1753 = vmatprep.subr.mxu0 0.0
        %1754 = vmatpush1.msra.mxu0 %v1192
        %1755 = vmatprep.subr.mxu0 0.0
        %1756 = vmatpush1.msra.mxu0 %v1193
        %1757 = vmatprep.subr.mxu0 0.0
        %1758 = vmatpush1.msra.mxu0 %v1194
        %1759 = vmatprep.subr.mxu0 0.0
        %1760 = vmatpush1.msra.mxu0 %v1195
        %1761 = vmatprep.subr.mxu0 0.0
        %1762 = vmatpush1.msra.mxu0 %v1196
        %1763 = vmatprep.subr.mxu0 0.0
        %1764 = vmatpush1.msra.mxu0 %v1197
        %1765 = vmatprep.subr.mxu0 0.0
        %1766 = vmatpush1.msra.mxu0 %v1198
        %1767 = vmatprep.subr.mxu0 0.0
        %1768 = vmatpush1.msra.mxu0 %v1199
        %1769 = vmatprep.mubr.f32.mxu0 %v821
        %1770 = vmatmul.mubr.f32.gmra.mrb[0].mxu0 %v820
        %v1771 = vpop.f32.mrb[0].mxu0
        %v1772 = vadd.f32 %v1547, %v1771
        %v1773 = vpop.f32.mrb[0].mxu0
        %1774 = vmatprep.mubr.f32.mxu0 %v830
        %1775 = vmatmul.mubr.f32.gmra.mrb[0].mxu0 %v829
        %v1776 = vpop.f32.mrb[0].mxu0
        %v1777 = vadd.f32 %v1552, %v1776
        %v1778 = vpop.f32.mrb[0].mxu0
        %1779 = vmatprep.mubr.f32.mxu0 %v839
        %1780 = vmatmul.mubr.f32.gmra.mrb[0].mxu0 %v838
        %v1781 = vpop.f32.mrb[0].mxu0
        %v1782 = vadd.f32 %v1557, %v1781
        %v1783 = vpop.f32.mrb[0].mxu0
        %1784 = vmatprep.mubr.f32.mxu0 %v848
        %1785 = vmatmul.mubr.f32.gmra.mrb[0].mxu0 %v847
        %v1786 = vpop.f32.mrb[0].mxu0
        %v1787 = vadd.f32 %v1562, %v1786
        %v1788 = vpop.f32.mrb[0].mxu0
        %1789 = vmatprep.mubr.f32.mxu0 %v857
        %1790 = vmatmul.mubr.f32.gmra.mrb[0].mxu0 %v856
        %v1791 = vpop.f32.mrb[0].mxu0
        %v1792 = vadd.f32 %v1567, %v1791
        %v1793 = vpop.f32.mrb[0].mxu0
        %1794 = vmatprep.mubr.f32.mxu0 %v866
        %1795 = vmatmul.mubr.f32.gmra.mrb[0].mxu0 %v865
        %v1796 = vpop.f32.mrb[0].mxu0
        %v1797 = vadd.f32 %v1572, %v1796
        %v1798 = vpop.f32.mrb[0].mxu0
        %1799 = vmatprep.mubr.f32.mxu0 %v875
        %1800 = vmatmul.mubr.f32.gmra.mrb[0].mxu0 %v874
        %v1801 = vpop.f32.mrb[0].mxu0
        %v1802 = vadd.f32 %v1577, %v1801
        %v1803 = vpop.f32.mrb[0].mxu0
        %1804 = vmatprep.mubr.f32.mxu0 %v884
        %1805 = vmatmul.mubr.f32.gmra.mrb[0].mxu0 %v883
        %v1806 = vpop.f32.mrb[0].mxu0
        %v1807 = vadd.f32 %v1582, %v1806
        %v1808 = vpop.f32.mrb[0].mxu0
        %1809 = vmatprep.mubr.f32.mxu0 %v893
        %1810 = vmatmul.mubr.f32.gmra.mrb[0].mxu0 %v892
        %v1811 = vpop.f32.mrb[0].mxu0
        %v1812 = vadd.f32 %v1587, %v1811
        %v1813 = vpop.f32.mrb[0].mxu0
        %1814 = vmatprep.mubr.f32.mxu0 %v902
        %1815 = vmatmul.mubr.f32.gmra.mrb[0].mxu0 %v901
        %v1816 = vpop.f32.mrb[0].mxu0
        %v1817 = vadd.f32 %v1592, %v1816
        %v1818 = vpop.f32.mrb[0].mxu0
        %1819 = vmatprep.mubr.f32.mxu0 %v911
        %1820 = vmatmul.mubr.f32.gmra.mrb[0].mxu0 %v910
        %v1821 = vpop.f32.mrb[0].mxu0
        %v1822 = vadd.f32 %v1597, %v1821
        %v1823 = vpop.f32.mrb[0].mxu0
        %1824 = vmatprep.mubr.f32.mxu0 %v920
        %1825 = vmatmul.mubr.f32.gmra.mrb[0].mxu0 %v919
        %v1826 = vpop.f32.mrb[0].mxu0
        %v1827 = vadd.f32 %v1602, %v1826
        %v1828 = vpop.f32.mrb[0].mxu0
        %1829 = vmatprep.mubr.f32.mxu0 %v929
        %1830 = vmatmul.mubr.f32.gmra.mrb[0].mxu0 %v928
        %v1831 = vpop.f32.mrb[0].mxu0
        %v1832 = vadd.f32 %v1607, %v1831
        %v1833 = vpop.f32.mrb[0].mxu0
        %1834 = vmatprep.mubr.f32.mxu0 %v938
        %1835 = vmatmul.mubr.f32.gmra.mrb[0].mxu0 %v937
        %v1836 = vpop.f32.mrb[0].mxu0
        %v1837 = vadd.f32 %v1612, %v1836
        %v1838 = vpop.f32.mrb[0].mxu0
        %1839 = vmatprep.mubr.f32.mxu0 %v947
        %1840 = vmatmul.mubr.f32.gmra.mrb[0].mxu0 %v946
        %v1841 = vpop.f32.mrb[0].mxu0
        %v1842 = vadd.f32 %v1617, %v1841
        %v1843 = vpop.f32.mrb[0].mxu0
        %1844 = vmatprep.mubr.f32.mxu0 %v956
        %1845 = vmatmul.mubr.f32.gmra.mrb[0].mxu0 %v955
        %v1846 = vpop.f32.mrb[0].mxu0
        %v1847 = vadd.f32 %v1622, %v1846
        %v1848 = vpop.f32.mrb[0].mxu0
        %1849 = vmatprep.mubr.f32.mxu0 %v965
        %1850 = vmatmul.mubr.f32.gmra.mrb[0].mxu0 %v964
        %v1851 = vpop.f32.mrb[0].mxu0
        %v1852 = vadd.f32 %v1627, %v1851
        %v1853 = vpop.f32.mrb[0].mxu0
        %1854 = vmatprep.mubr.f32.mxu0 %v974
        %1855 = vmatmul.mubr.f32.gmra.mrb[0].mxu0 %v973
        %v1856 = vpop.f32.mrb[0].mxu0
        %v1857 = vadd.f32 %v1632, %v1856
        %v1858 = vpop.f32.mrb[0].mxu0
        %1859 = vmatprep.mubr.f32.mxu0 %v983
        %1860 = vmatmul.mubr.f32.gmra.mrb[0].mxu0 %v982
        %v1861 = vpop.f32.mrb[0].mxu0
        %v1862 = vadd.f32 %v1637, %v1861
        %v1863 = vpop.f32.mrb[0].mxu0
        %1864 = vmatprep.mubr.f32.mxu0 %v992
        %1865 = vmatmul.mubr.f32.gmra.mrb[0].mxu0 %v991
        %v1866 = vpop.f32.mrb[0].mxu0
        %v1867 = vadd.f32 %v1642, %v1866
        %v1868 = vpop.f32.mrb[0].mxu0
        %1869 = vmatprep.mubr.f32.mxu0 %v1001
        %1870 = vmatmul.mubr.f32.gmra.mrb[0].mxu0 %v1000
        %v1871 = vpop.f32.mrb[0].mxu0
        %v1872 = vadd.f32 %v1647, %v1871
        %v1873 = vpop.f32.mrb[0].mxu0
        %1874 = vmatprep.mubr.f32.mxu0 %v1010
        %1875 = vmatmul.mubr.f32.gmra.mrb[0].mxu0 %v1009
        %v1876 = vpop.f32.mrb[0].mxu0
        %v1877 = vadd.f32 %v1652, %v1876
        %v1878 = vpop.f32.mrb[0].mxu0
        %1879 = vmatprep.mubr.f32.mxu0 %v1019
        %1880 = vmatmul.mubr.f32.gmra.mrb[0].mxu0 %v1018
        %v1881 = vpop.f32.mrb[0].mxu0
        %v1882 = vadd.f32 %v1657, %v1881
        %v1883 = vpop.f32.mrb[0].mxu0
        %1884 = vmatprep.mubr.f32.mxu0 %v1028
        %1885 = vmatmul.mubr.f32.gmra.mrb[0].mxu0 %v1027
        %v1886 = vpop.f32.mrb[0].mxu0
        %v1887 = vadd.f32 %v1662, %v1886
        %v1888 = vpop.f32.mrb[0].mxu0
        %1889 = vmatprep.mubr.f32.mxu0 %v1037
        %1890 = vmatmul.mubr.f32.gmra.mrb[0].mxu0 %v1036
        %v1891 = vpop.f32.mrb[0].mxu0
        %v1892 = vadd.f32 %v1667, %v1891
        %v1893 = vpop.f32.mrb[0].mxu0
        %1894 = vmatprep.mubr.f32.mxu0 %v1046
        %1895 = vmatmul.mubr.f32.gmra.mrb[0].mxu0 %v1045
        %v1896 = vpop.f32.mrb[0].mxu0
        %v1897 = vadd.f32 %v1672, %v1896
        %v1898 = vpop.f32.mrb[0].mxu0
        %1899 = vmatprep.mubr.f32.mxu0 %v1055
        %1900 = vmatmul.mubr.f32.gmra.mrb[0].mxu0 %v1054
        %v1901 = vpop.f32.mrb[0].mxu0
        %v1902 = vadd.f32 %v1677, %v1901
        %v1903 = vpop.f32.mrb[0].mxu0
        %1904 = vmatprep.mubr.f32.mxu0 %v1064
        %1905 = vmatmul.mubr.f32.gmra.mrb[0].mxu0 %v1063
        %v1906 = vpop.f32.mrb[0].mxu0
        %v1907 = vadd.f32 %v1682, %v1906
        %v1908 = vpop.f32.mrb[0].mxu0
        %1909 = vmatprep.mubr.f32.mxu0 %v1073
        %1910 = vmatmul.mubr.f32.gmra.mrb[0].mxu0 %v1072
        %v1911 = vpop.f32.mrb[0].mxu0
        %v1912 = vadd.f32 %v1687, %v1911
        %v1913 = vpop.f32.mrb[0].mxu0
        %1914 = vmatprep.mubr.f32.mxu0 %v1082
        %1915 = vmatmul.mubr.f32.gmra.mrb[0].mxu0 %v1081
        %v1916 = vpop.f32.mrb[0].mxu0
        %v1917 = vadd.f32 %v1692, %v1916
        %v1918 = vpop.f32.mrb[0].mxu0
        %1919 = vmatprep.mubr.f32.mxu0 %v1091
        %1920 = vmatmul.mubr.f32.gmra.mrb[0].mxu0 %v1090
        %v1921 = vpop.f32.mrb[0].mxu0
        %v1922 = vadd.f32 %v1697, %v1921
        %v1923 = vpop.f32.mrb[0].mxu0
        %1924 = vmatprep.mubr.f32.mxu0 %v1100
        %1925 = vmatmul.mubr.f32.gmra.mrb[0].mxu0 %v1099
        %v1926 = vpop.f32.mrb[0].mxu0
        %v1927 = vadd.f32 %v1702, %v1926
        %v1928 = vpop.f32.mrb[0].mxu0
        %1929 = vdwg.mxu0
        %1930 = vmatprep.subr.mxu0 0.0
        %1931 = vmatpush1.msra.mxu0 %v1200
        %1932 = vmatprep.subr.mxu0 0.0
        %1933 = vmatpush1.msra.mxu0 %v1201
        %1934 = vmatprep.subr.mxu0 0.0
        %1935 = vmatpush1.msra.mxu0 %v1202
        %1936 = vmatprep.subr.mxu0 0.0
        %1937 = vmatpush1.msra.mxu0 %v1203
        %1938 = vmatprep.subr.mxu0 0.0
        %1939 = vmatpush1.msra.mxu0 %v1204
        %1940 = vmatprep.subr.mxu0 0.0
        %1941 = vmatpush1.msra.mxu0 %v1205
        %1942 = vmatprep.subr.mxu0 0.0
        %1943 = vmatpush1.msra.mxu0 %v1206
        %1944 = vmatprep.subr.mxu0 0.0
        %1945 = vmatpush1.msra.mxu0 %v1207
        %1946 = vmatprep.subr.mxu0 0.0
        %1947 = vmatpush1.msra.mxu0 %v1208
        %1948 = vmatprep.subr.mxu0 0.0
        %1949 = vmatpush1.msra.mxu0 %v1209
        %1950 = vmatprep.subr.mxu0 0.0
        %1951 = vmatpush1.msra.mxu0 %v1210
        %1952 = vmatprep.subr.mxu0 0.0
        %1953 = vmatpush1.msra.mxu0 %v1211
        %1954 = vmatprep.subr.mxu0 0.0
        %1955 = vmatpush1.msra.mxu0 %v1212
        %1956 = vmatprep.subr.mxu0 0.0
        %1957 = vmatpush1.msra.mxu0 %v1213
        %1958 = vmatprep.subr.mxu0 0.0
        %1959 = vmatpush1.msra.mxu0 %v1214
        %1960 = vmatprep.subr.mxu0 0.0
        %1961 = vmatpush1.msra.mxu0 %v1215
        %1962 = vmatprep.subr.mxu0 0.0
        %1963 = vmatpush1.msra.mxu0 %v1216
        %1964 = vmatprep.subr.mxu0 0.0
        %1965 = vmatpush1.msra.mxu0 %v1217
        %1966 = vmatprep.subr.mxu0 0.0
        %1967 = vmatpush1.msra.mxu0 %v1218
        %1968 = vmatprep.subr.mxu0 0.0
        %1969 = vmatpush1.msra.mxu0 %v1219
        %1970 = vmatprep.subr.mxu0 0.0
        %1971 = vmatpush1.msra.mxu0 %v1220
        %1972 = vmatprep.subr.mxu0 0.0
        %1973 = vmatpush1.msra.mxu0 %v1221
        %1974 = vmatprep.subr.mxu0 0.0
        %1975 = vmatpush1.msra.mxu0 %v1222
        %1976 = vmatprep.subr.mxu0 0.0
        %1977 = vmatpush1.msra.mxu0 %v1223
        %1978 = vmatprep.subr.mxu0 0.0
        %1979 = vmatpush1.msra.mxu0 %v1224
        %1980 = vmatprep.subr.mxu0 0.0
        %1981 = vmatpush1.msra.mxu0 %v1225
        %1982 = vmatprep.subr.mxu0 0.0
        %1983 = vmatpush1.msra.mxu0 %v1226
        %1984 = vmatprep.subr.mxu0 0.0
        %1985 = vmatpush1.msra.mxu0 %v1227
        %1986 = vmatprep.subr.mxu0 0.0
        %1987 = vmatpush1.msra.mxu0 %v1228
        %1988 = vmatprep.subr.mxu0 0.0
        %1989 = vmatpush1.msra.mxu0 %v1229
        %1990 = vmatprep.subr.mxu0 0.0
        %1991 = vmatpush1.msra.mxu0 %v1230
        %1992 = vmatprep.subr.mxu0 0.0
        %1993 = vmatpush1.msra.mxu0 %v1231
        %1994 = vmatprep.mubr.f32.mxu0 %v823
        %1995 = vmatmul.mubr.f32.gmra.mrb[0].mxu0 %v822
        %v1996 = vpop.f32.mrb[0].mxu0
        %v1997 = vadd.f32 %v1772, %v1996
        %v1998 = vpop.f32.mrb[0].mxu0
        %1999 = vmatprep.mubr.f32.mxu0 %v832
        %2000 = vmatmul.mubr.f32.gmra.mrb[0].mxu0 %v831
        %v2001 = vpop.f32.mrb[0].mxu0
        %v2002 = vadd.f32 %v1777, %v2001
        %v2003 = vpop.f32.mrb[0].mxu0
        %2004 = vmatprep.mubr.f32.mxu0 %v841
        %2005 = vmatmul.mubr.f32.gmra.mrb[0].mxu0 %v840
        %v2006 = vpop.f32.mrb[0].mxu0
        %v2007 = vadd.f32 %v1782, %v2006
        %v2008 = vpop.f32.mrb[0].mxu0
        %2009 = vmatprep.mubr.f32.mxu0 %v850
        %2010 = vmatmul.mubr.f32.gmra.mrb[0].mxu0 %v849
        %v2011 = vpop.f32.mrb[0].mxu0
        %v2012 = vadd.f32 %v1787, %v2011
        %v2013 = vpop.f32.mrb[0].mxu0
        %2014 = vmatprep.mubr.f32.mxu0 %v859
        %2015 = vmatmul.mubr.f32.gmra.mrb[0].mxu0 %v858
        %v2016 = vpop.f32.mrb[0].mxu0
        %v2017 = vadd.f32 %v1792, %v2016
        %v2018 = vpop.f32.mrb[0].mxu0
        %2019 = vmatprep.mubr.f32.mxu0 %v868
        %2020 = vmatmul.mubr.f32.gmra.mrb[0].mxu0 %v867
        %v2021 = vpop.f32.mrb[0].mxu0
        %v2022 = vadd.f32 %v1797, %v2021
        %v2023 = vpop.f32.mrb[0].mxu0
        %2024 = vmatprep.mubr.f32.mxu0 %v877
        %2025 = vmatmul.mubr.f32.gmra.mrb[0].mxu0 %v876
        %v2026 = vpop.f32.mrb[0].mxu0
        %v2027 = vadd.f32 %v1802, %v2026
        %v2028 = vpop.f32.mrb[0].mxu0
        %2029 = vmatprep.mubr.f32.mxu0 %v886
        %2030 = vmatmul.mubr.f32.gmra.mrb[0].mxu0 %v885
        %v2031 = vpop.f32.mrb[0].mxu0
        %v2032 = vadd.f32 %v1807, %v2031
        %v2033 = vpop.f32.mrb[0].mxu0
        %2034 = vmatprep.mubr.f32.mxu0 %v895
        %2035 = vmatmul.mubr.f32.gmra.mrb[0].mxu0 %v894
        %v2036 = vpop.f32.mrb[0].mxu0
        %v2037 = vadd.f32 %v1812, %v2036
        %v2038 = vpop.f32.mrb[0].mxu0
        %2039 = vmatprep.mubr.f32.mxu0 %v904
        %2040 = vmatmul.mubr.f32.gmra.mrb[0].mxu0 %v903
        %v2041 = vpop.f32.mrb[0].mxu0
        %v2042 = vadd.f32 %v1817, %v2041
        %v2043 = vpop.f32.mrb[0].mxu0
        %2044 = vmatprep.mubr.f32.mxu0 %v913
        %2045 = vmatmul.mubr.f32.gmra.mrb[0].mxu0 %v912
        %v2046 = vpop.f32.mrb[0].mxu0
        %v2047 = vadd.f32 %v1822, %v2046
        %v2048 = vpop.f32.mrb[0].mxu0
        %2049 = vmatprep.mubr.f32.mxu0 %v922
        %2050 = vmatmul.mubr.f32.gmra.mrb[0].mxu0 %v921
        %v2051 = vpop.f32.mrb[0].mxu0
        %v2052 = vadd.f32 %v1827, %v2051
        %v2053 = vpop.f32.mrb[0].mxu0
        %2054 = vmatprep.mubr.f32.mxu0 %v931
        %2055 = vmatmul.mubr.f32.gmra.mrb[0].mxu0 %v930
        %v2056 = vpop.f32.mrb[0].mxu0
        %v2057 = vadd.f32 %v1832, %v2056
        %v2058 = vpop.f32.mrb[0].mxu0
        %2059 = vmatprep.mubr.f32.mxu0 %v940
        %2060 = vmatmul.mubr.f32.gmra.mrb[0].mxu0 %v939
        %v2061 = vpop.f32.mrb[0].mxu0
        %v2062 = vadd.f32 %v1837, %v2061
        %v2063 = vpop.f32.mrb[0].mxu0
        %2064 = vmatprep.mubr.f32.mxu0 %v949
        %2065 = vmatmul.mubr.f32.gmra.mrb[0].mxu0 %v948
        %v2066 = vpop.f32.mrb[0].mxu0
        %v2067 = vadd.f32 %v1842, %v2066
        %v2068 = vpop.f32.mrb[0].mxu0
        %2069 = vmatprep.mubr.f32.mxu0 %v958
        %2070 = vmatmul.mubr.f32.gmra.mrb[0].mxu0 %v957
        %v2071 = vpop.f32.mrb[0].mxu0
        %v2072 = vadd.f32 %v1847, %v2071
        %v2073 = vpop.f32.mrb[0].mxu0
        %2074 = vmatprep.mubr.f32.mxu0 %v967
        %2075 = vmatmul.mubr.f32.gmra.mrb[0].mxu0 %v966
        %v2076 = vpop.f32.mrb[0].mxu0
        %v2077 = vadd.f32 %v1852, %v2076
        %v2078 = vpop.f32.mrb[0].mxu0
        %2079 = vmatprep.mubr.f32.mxu0 %v976
        %2080 = vmatmul.mubr.f32.gmra.mrb[0].mxu0 %v975
        %v2081 = vpop.f32.mrb[0].mxu0
        %v2082 = vadd.f32 %v1857, %v2081
        %v2083 = vpop.f32.mrb[0].mxu0
        %2084 = vmatprep.mubr.f32.mxu0 %v985
        %2085 = vmatmul.mubr.f32.gmra.mrb[0].mxu0 %v984
        %v2086 = vpop.f32.mrb[0].mxu0
        %v2087 = vadd.f32 %v1862, %v2086
        %v2088 = vpop.f32.mrb[0].mxu0
        %2089 = vmatprep.mubr.f32.mxu0 %v994
        %2090 = vmatmul.mubr.f32.gmra.mrb[0].mxu0 %v993
        %v2091 = vpop.f32.mrb[0].mxu0
        %v2092 = vadd.f32 %v1867, %v2091
        %v2093 = vpop.f32.mrb[0].mxu0
        %2094 = vmatprep.mubr.f32.mxu0 %v1003
        %2095 = vmatmul.mubr.f32.gmra.mrb[0].mxu0 %v1002
        %v2096 = vpop.f32.mrb[0].mxu0
        %v2097 = vadd.f32 %v1872, %v2096
        %v2098 = vpop.f32.mrb[0].mxu0
        %2099 = vmatprep.mubr.f32.mxu0 %v1012
        %2100 = vmatmul.mubr.f32.gmra.mrb[0].mxu0 %v1011
        %v2101 = vpop.f32.mrb[0].mxu0
        %v2102 = vadd.f32 %v1877, %v2101
        %v2103 = vpop.f32.mrb[0].mxu0
        %2104 = vmatprep.mubr.f32.mxu0 %v1021
        %2105 = vmatmul.mubr.f32.gmra.mrb[0].mxu0 %v1020
        %v2106 = vpop.f32.mrb[0].mxu0
        %v2107 = vadd.f32 %v1882, %v2106
        %v2108 = vpop.f32.mrb[0].mxu0
        %2109 = vmatprep.mubr.f32.mxu0 %v1030
        %2110 = vmatmul.mubr.f32.gmra.mrb[0].mxu0 %v1029
        %v2111 = vpop.f32.mrb[0].mxu0
        %v2112 = vadd.f32 %v1887, %v2111
        %v2113 = vpop.f32.mrb[0].mxu0
        %2114 = vmatprep.mubr.f32.mxu0 %v1039
        %2115 = vmatmul.mubr.f32.gmra.mrb[0].mxu0 %v1038
        %v2116 = vpop.f32.mrb[0].mxu0
        %v2117 = vadd.f32 %v1892, %v2116
        %v2118 = vpop.f32.mrb[0].mxu0
        %2119 = vmatprep.mubr.f32.mxu0 %v1048
        %2120 = vmatmul.mubr.f32.gmra.mrb[0].mxu0 %v1047
        %v2121 = vpop.f32.mrb[0].mxu0
        %v2122 = vadd.f32 %v1897, %v2121
        %v2123 = vpop.f32.mrb[0].mxu0
        %2124 = vmatprep.mubr.f32.mxu0 %v1057
        %2125 = vmatmul.mubr.f32.gmra.mrb[0].mxu0 %v1056
        %v2126 = vpop.f32.mrb[0].mxu0
        %v2127 = vadd.f32 %v1902, %v2126
        %v2128 = vpop.f32.mrb[0].mxu0
        %2129 = vmatprep.mubr.f32.mxu0 %v1066
        %2130 = vmatmul.mubr.f32.gmra.mrb[0].mxu0 %v1065
        %v2131 = vpop.f32.mrb[0].mxu0
        %v2132 = vadd.f32 %v1907, %v2131
        %v2133 = vpop.f32.mrb[0].mxu0
        %2134 = vmatprep.mubr.f32.mxu0 %v1075
        %2135 = vmatmul.mubr.f32.gmra.mrb[0].mxu0 %v1074
        %v2136 = vpop.f32.mrb[0].mxu0
        %v2137 = vadd.f32 %v1912, %v2136
        %v2138 = vpop.f32.mrb[0].mxu0
        %2139 = vmatprep.mubr.f32.mxu0 %v1084
        %2140 = vmatmul.mubr.f32.gmra.mrb[0].mxu0 %v1083
        %v2141 = vpop.f32.mrb[0].mxu0
        %v2142 = vadd.f32 %v1917, %v2141
        %v2143 = vpop.f32.mrb[0].mxu0
        %2144 = vmatprep.mubr.f32.mxu0 %v1093
        %2145 = vmatmul.mubr.f32.gmra.mrb[0].mxu0 %v1092
        %v2146 = vpop.f32.mrb[0].mxu0
        %v2147 = vadd.f32 %v1922, %v2146
        %v2148 = vpop.f32.mrb[0].mxu0
        %2149 = vmatprep.mubr.f32.mxu0 %v1102
        %2150 = vmatmul.mubr.f32.gmra.mrb[0].mxu0 %v1101
        %v2151 = vpop.f32.mrb[0].mxu0
        %v2152 = vadd.f32 %v1927, %v2151
        %v2153 = vpop.f32.mrb[0].mxu0
        %2154 = vdwg.mxu0
        %2155 = vmatprep.subr.mxu0 0.0
        %2156 = vmatpush1.msra.mxu0 %v1232
        %2157 = vmatprep.subr.mxu0 0.0
        %2158 = vmatpush1.msra.mxu0 %v1233
        %2159 = vmatprep.subr.mxu0 0.0
        %2160 = vmatpush1.msra.mxu0 %v1234
        %2161 = vmatprep.subr.mxu0 0.0
        %2162 = vmatpush1.msra.mxu0 %v1235
        %2163 = vmatprep.subr.mxu0 0.0
        %2164 = vmatpush1.msra.mxu0 %v1236
        %2165 = vmatprep.subr.mxu0 0.0
        %2166 = vmatpush1.msra.mxu0 %v1237
        %2167 = vmatprep.subr.mxu0 0.0
        %2168 = vmatpush1.msra.mxu0 %v1238
        %2169 = vmatprep.subr.mxu0 0.0
        %2170 = vmatpush1.msra.mxu0 %v1239
        %2171 = vmatprep.subr.mxu0 0.0
        %2172 = vmatpush1.msra.mxu0 %v1240
        %2173 = vmatprep.subr.mxu0 0.0
        %2174 = vmatpush1.msra.mxu0 %v1241
        %2175 = vmatprep.subr.mxu0 0.0
        %2176 = vmatpush1.msra.mxu0 %v1242
        %2177 = vmatprep.subr.mxu0 0.0
        %2178 = vmatpush1.msra.mxu0 %v1243
        %2179 = vmatprep.subr.mxu0 0.0
        %2180 = vmatpush1.msra.mxu0 %v1244
        %2181 = vmatprep.subr.mxu0 0.0
        %2182 = vmatpush1.msra.mxu0 %v1245
        %2183 = vmatprep.subr.mxu0 0.0
        %2184 = vmatpush1.msra.mxu0 %v1246
        %2185 = vmatprep.subr.mxu0 0.0
        %2186 = vmatpush1.msra.mxu0 %v1247
        %2187 = vmatprep.subr.mxu0 0.0
        %2188 = vmatpush1.msra.mxu0 0.0
        %2189 = vmatprep.subr.mxu0 0.0
        %2190 = vmatpush1.msra.mxu0 0.0
        %2191 = vmatprep.subr.mxu0 0.0
        %2192 = vmatpush1.msra.mxu0 0.0
        %2193 = vmatprep.subr.mxu0 0.0
        %2194 = vmatpush1.msra.mxu0 0.0
        %2195 = vmatprep.subr.mxu0 0.0
        %2196 = vmatpush1.msra.mxu0 0.0
        %2197 = vmatprep.subr.mxu0 0.0
        %2198 = vmatpush1.msra.mxu0 0.0
        %2199 = vmatprep.subr.mxu0 0.0
        %2200 = vmatpush1.msra.mxu0 0.0
        %2201 = vmatprep.subr.mxu0 0.0
        %2202 = vmatpush1.msra.mxu0 0.0
        %2203 = vmatprep.subr.mxu0 0.0
        %2204 = vmatpush1.msra.mxu0 0.0
        %2205 = vmatprep.subr.mxu0 0.0
        %2206 = vmatpush1.msra.mxu0 0.0
        %2207 = vmatprep.subr.mxu0 0.0
        %2208 = vmatpush1.msra.mxu0 0.0
        %2209 = vmatprep.subr.mxu0 0.0
        %2210 = vmatpush1.msra.mxu0 0.0
        %2211 = vmatprep.subr.mxu0 0.0
        %2212 = vmatpush1.msra.mxu0 0.0
        %2213 = vmatprep.subr.mxu0 0.0
        %2214 = vmatpush1.msra.mxu0 0.0
        %2215 = vmatprep.subr.mxu0 0.0
        %2216 = vmatpush1.msra.mxu0 0.0
        %2217 = vmatprep.subr.mxu0 0.0
        %2218 = vmatpush1.msra.mxu0 0.0
        %2219 = vmatprep.mubr.f32.mxu0 0.0
        %2220 = vmatmul.mubr.f32.gmra.mrb[0].mxu0 %v824
        %v2221 = vpop.f32.mrb[0].mxu0
        %v2222 = vadd.f32 %v1997, %v2221
        %v2223 = vpop.f32.mrb[0].mxu0
        %2224 = vmatprep.mubr.f32.mxu0 0.0
        %2225 = vmatmul.mubr.f32.gmra.mrb[0].mxu0 %v833
        %v2226 = vpop.f32.mrb[0].mxu0
        %v2227 = vadd.f32 %v2002, %v2226
        %v2228 = vpop.f32.mrb[0].mxu0
        %2229 = vmatprep.mubr.f32.mxu0 0.0
        %2230 = vmatmul.mubr.f32.gmra.mrb[0].mxu0 %v842
        %v2231 = vpop.f32.mrb[0].mxu0
        %v2232 = vadd.f32 %v2007, %v2231
        %v2233 = vpop.f32.mrb[0].mxu0
        %2234 = vmatprep.mubr.f32.mxu0 0.0
        %2235 = vmatmul.mubr.f32.gmra.mrb[0].mxu0 %v851
        %v2236 = vpop.f32.mrb[0].mxu0
        %v2237 = vadd.f32 %v2012, %v2236
        %v2238 = vpop.f32.mrb[0].mxu0
        %2239 = vmatprep.mubr.f32.mxu0 0.0
        %2240 = vmatmul.mubr.f32.gmra.mrb[0].mxu0 %v860
        %v2241 = vpop.f32.mrb[0].mxu0
        %v2242 = vadd.f32 %v2017, %v2241
        %v2243 = vpop.f32.mrb[0].mxu0
        %2244 = vmatprep.mubr.f32.mxu0 0.0
        %2245 = vmatmul.mubr.f32.gmra.mrb[0].mxu0 %v869
        %v2246 = vpop.f32.mrb[0].mxu0
        %v2247 = vadd.f32 %v2022, %v2246
        %v2248 = vpop.f32.mrb[0].mxu0
        %2249 = vmatprep.mubr.f32.mxu0 0.0
        %2250 = vmatmul.mubr.f32.gmra.mrb[0].mxu0 %v878
        %v2251 = vpop.f32.mrb[0].mxu0
        %v2252 = vadd.f32 %v2027, %v2251
        %v2253 = vpop.f32.mrb[0].mxu0
        %2254 = vmatprep.mubr.f32.mxu0 0.0
        %2255 = vmatmul.mubr.f32.gmra.mrb[0].mxu0 %v887
        %v2256 = vpop.f32.mrb[0].mxu0
        %v2257 = vadd.f32 %v2032, %v2256
        %v2258 = vpop.f32.mrb[0].mxu0
        %2259 = vmatprep.mubr.f32.mxu0 0.0
        %2260 = vmatmul.mubr.f32.gmra.mrb[0].mxu0 %v896
        %v2261 = vpop.f32.mrb[0].mxu0
        %v2262 = vadd.f32 %v2037, %v2261
        %v2263 = vpop.f32.mrb[0].mxu0
        %2264 = vmatprep.mubr.f32.mxu0 0.0
        %2265 = vmatmul.mubr.f32.gmra.mrb[0].mxu0 %v905
        %v2266 = vpop.f32.mrb[0].mxu0
        %v2267 = vadd.f32 %v2042, %v2266
        %v2268 = vpop.f32.mrb[0].mxu0
        %2269 = vmatprep.mubr.f32.mxu0 0.0
        %2270 = vmatmul.mubr.f32.gmra.mrb[0].mxu0 %v914
        %v2271 = vpop.f32.mrb[0].mxu0
        %v2272 = vadd.f32 %v2047, %v2271
        %v2273 = vpop.f32.mrb[0].mxu0
        %2274 = vmatprep.mubr.f32.mxu0 0.0
        %2275 = vmatmul.mubr.f32.gmra.mrb[0].mxu0 %v923
        %v2276 = vpop.f32.mrb[0].mxu0
        %v2277 = vadd.f32 %v2052, %v2276
        %v2278 = vpop.f32.mrb[0].mxu0
        %2279 = vmatprep.mubr.f32.mxu0 0.0
        %2280 = vmatmul.mubr.f32.gmra.mrb[0].mxu0 %v932
        %v2281 = vpop.f32.mrb[0].mxu0
        %v2282 = vadd.f32 %v2057, %v2281
        %v2283 = vpop.f32.mrb[0].mxu0
        %2284 = vmatprep.mubr.f32.mxu0 0.0
        %2285 = vmatmul.mubr.f32.gmra.mrb[0].mxu0 %v941
        %v2286 = vpop.f32.mrb[0].mxu0
        %v2287 = vadd.f32 %v2062, %v2286
        %v2288 = vpop.f32.mrb[0].mxu0
        %2289 = vmatprep.mubr.f32.mxu0 0.0
        %2290 = vmatmul.mubr.f32.gmra.mrb[0].mxu0 %v950
        %v2291 = vpop.f32.mrb[0].mxu0
        %v2292 = vadd.f32 %v2067, %v2291
        %v2293 = vpop.f32.mrb[0].mxu0
        %2294 = vmatprep.mubr.f32.mxu0 0.0
        %2295 = vmatmul.mubr.f32.gmra.mrb[0].mxu0 %v959
        %v2296 = vpop.f32.mrb[0].mxu0
        %v2297 = vadd.f32 %v2072, %v2296
        %v2298 = vpop.f32.mrb[0].mxu0
        %2299 = vmatprep.mubr.f32.mxu0 0.0
        %2300 = vmatmul.mubr.f32.gmra.mrb[0].mxu0 %v968
        %v2301 = vpop.f32.mrb[0].mxu0
        %v2302 = vadd.f32 %v2077, %v2301
        %v2303 = vpop.f32.mrb[0].mxu0
        %2304 = vmatprep.mubr.f32.mxu0 0.0
        %2305 = vmatmul.mubr.f32.gmra.mrb[0].mxu0 %v977
        %v2306 = vpop.f32.mrb[0].mxu0
        %v2307 = vadd.f32 %v2082, %v2306
        %v2308 = vpop.f32.mrb[0].mxu0
        %2309 = vmatprep.mubr.f32.mxu0 0.0
        %2310 = vmatmul.mubr.f32.gmra.mrb[0].mxu0 %v986
        %v2311 = vpop.f32.mrb[0].mxu0
        %v2312 = vadd.f32 %v2087, %v2311
        %v2313 = vpop.f32.mrb[0].mxu0
        %2314 = vmatprep.mubr.f32.mxu0 0.0
        %2315 = vmatmul.mubr.f32.gmra.mrb[0].mxu0 %v995
        %v2316 = vpop.f32.mrb[0].mxu0
        %v2317 = vadd.f32 %v2092, %v2316
        %v2318 = vpop.f32.mrb[0].mxu0
        %2319 = vmatprep.mubr.f32.mxu0 0.0
        %2320 = vmatmul.mubr.f32.gmra.mrb[0].mxu0 %v1004
        %v2321 = vpop.f32.mrb[0].mxu0
        %v2322 = vadd.f32 %v2097, %v2321
        %v2323 = vpop.f32.mrb[0].mxu0
        %2324 = vmatprep.mubr.f32.mxu0 0.0
        %2325 = vmatmul.mubr.f32.gmra.mrb[0].mxu0 %v1013
        %v2326 = vpop.f32.mrb[0].mxu0
        %v2327 = vadd.f32 %v2102, %v2326
        %v2328 = vpop.f32.mrb[0].mxu0
        %2329 = vmatprep.mubr.f32.mxu0 0.0
        %2330 = vmatmul.mubr.f32.gmra.mrb[0].mxu0 %v1022
        %v2331 = vpop.f32.mrb[0].mxu0
        %v2332 = vadd.f32 %v2107, %v2331
        %v2333 = vpop.f32.mrb[0].mxu0
        %2334 = vmatprep.mubr.f32.mxu0 0.0
        %2335 = vmatmul.mubr.f32.gmra.mrb[0].mxu0 %v1031
        %v2336 = vpop.f32.mrb[0].mxu0
        %v2337 = vadd.f32 %v2112, %v2336
        %v2338 = vpop.f32.mrb[0].mxu0
        %2339 = vmatprep.mubr.f32.mxu0 0.0
        %2340 = vmatmul.mubr.f32.gmra.mrb[0].mxu0 %v1040
        %v2341 = vpop.f32.mrb[0].mxu0
        %v2342 = vadd.f32 %v2117, %v2341
        %v2343 = vpop.f32.mrb[0].mxu0
        %2344 = vmatprep.mubr.f32.mxu0 0.0
        %2345 = vmatmul.mubr.f32.gmra.mrb[0].mxu0 %v1049
        %v2346 = vpop.f32.mrb[0].mxu0
        %v2347 = vadd.f32 %v2122, %v2346
        %v2348 = vpop.f32.mrb[0].mxu0
        %2349 = vmatprep.mubr.f32.mxu0 0.0
        %2350 = vmatmul.mubr.f32.gmra.mrb[0].mxu0 %v1058
        %v2351 = vpop.f32.mrb[0].mxu0
        %v2352 = vadd.f32 %v2127, %v2351
        %v2353 = vpop.f32.mrb[0].mxu0
        %2354 = vmatprep.mubr.f32.mxu0 0.0
        %2355 = vmatmul.mubr.f32.gmra.mrb[0].mxu0 %v1067
        %v2356 = vpop.f32.mrb[0].mxu0
        %v2357 = vadd.f32 %v2132, %v2356
        %v2358 = vpop.f32.mrb[0].mxu0
        %2359 = vmatprep.mubr.f32.mxu0 0.0
        %2360 = vmatmul.mubr.f32.gmra.mrb[0].mxu0 %v1076
        %v2361 = vpop.f32.mrb[0].mxu0
        %v2362 = vadd.f32 %v2137, %v2361
        %v2363 = vpop.f32.mrb[0].mxu0
        %2364 = vmatprep.mubr.f32.mxu0 0.0
        %2365 = vmatmul.mubr.f32.gmra.mrb[0].mxu0 %v1085
        %v2366 = vpop.f32.mrb[0].mxu0
        %v2367 = vadd.f32 %v2142, %v2366
        %v2368 = vpop.f32.mrb[0].mxu0
        %2369 = vmatprep.mubr.f32.mxu0 0.0
        %2370 = vmatmul.mubr.f32.gmra.mrb[0].mxu0 %v1094
        %v2371 = vpop.f32.mrb[0].mxu0
        %v2372 = vadd.f32 %v2147, %v2371
        %v2373 = vpop.f32.mrb[0].mxu0
        %2374 = vmatprep.mubr.f32.mxu0 0.0
        %2375 = vmatmul.mubr.f32.gmra.mrb[0].mxu0 %v1103
        %v2376 = vpop.f32.mrb[0].mxu0
        %v2377 = vadd.f32 %v2152, %v2376
        %v2378 = vpop.f32.mrb[0].mxu0
        %2379 = vdwg.mxu0
        %v2380 = vmax.f32 %v2222, 0.0
        %v2381 = vmax.f32 %v2227, 0.0
        %v2382 = vmax.f32 %v2232, 0.0
        %v2383 = vmax.f32 %v2237, 0.0
        %v2384 = vmax.f32 %v2242, 0.0
        %v2385 = vmax.f32 %v2247, 0.0
        %v2386 = vmax.f32 %v2252, 0.0
        %v2387 = vmax.f32 %v2257, 0.0
        %v2388 = vmax.f32 %v2262, 0.0
        %v2389 = vmax.f32 %v2267, 0.0
        %v2390 = vmax.f32 %v2272, 0.0
        %v2391 = vmax.f32 %v2277, 0.0
        %v2392 = vmax.f32 %v2282, 0.0
        %v2393 = vmax.f32 %v2287, 0.0
        %v2394 = vmax.f32 %v2292, 0.0
        %v2395 = vmax.f32 %v2297, 0.0
        %v2396 = vmax.f32 %v2302, 0.0
        %v2397 = vmax.f32 %v2307, 0.0
        %v2398 = vmax.f32 %v2312, 0.0
        %v2399 = vmax.f32 %v2317, 0.0
        %v2400 = vmax.f32 %v2322, 0.0
        %v2401 = vmax.f32 %v2327, 0.0
        %v2402 = vmax.f32 %v2332, 0.0
        %v2403 = vmax.f32 %v2337, 0.0
        %v2404 = vmax.f32 %v2342, 0.0
        %v2405 = vmax.f32 %v2347, 0.0
        %v2406 = vmax.f32 %v2352, 0.0
        %v2407 = vmax.f32 %v2357, 0.0
        %v2408 = vmax.f32 %v2362, 0.0
        %v2409 = vmax.f32 %v2367, 0.0
        %v2410 = vmax.f32 %v2372, 0.0
        %v2411 = vmax.f32 %v2377, 0.0
        %s2412 = scalar_lea.vmem [#allocation3], 24
        %2413 = vst [vmem:[%s2412 + $0x1] sm:$0xff] %v2380
        %2414 = vst [vmem:[%s2412 + $0x9] sm:$0xff] %v2381
        %2415 = vst [vmem:[%s2412 + $0x19] sm:$0xff] %v2382
        %2416 = vst [vmem:[%s2412 + $0x21] sm:$0xff] %v2383
        %2417 = vst [vmem:[%s2412 + $0x31] sm:$0xff] %v2384
        %2418 = vst [vmem:[%s2412 + $0x39] sm:$0xff] %v2385
        %2419 = vst [vmem:[%s2412 + $0x49] sm:$0xff] %v2386
        %2420 = vst [vmem:[%s2412 + $0x51] sm:$0xff] %v2387
        %2421 = vst [vmem:[%s2412 + $0x61] sm:$0xff] %v2388
        %2422 = vst [vmem:[%s2412 + $0x69] sm:$0xff] %v2389
        %2423 = vst [vmem:[%s2412 + $0x79] sm:$0xff] %v2390
        %2424 = vst [vmem:[%s2412 + $0x81] sm:$0xff] %v2391
        %2425 = vst [vmem:[%s2412 + $0x91] sm:$0xff] %v2392
        %2426 = vst [vmem:[%s2412 + $0x99] sm:$0xff] %v2393
        %2427 = vst [vmem:[%s2412 + $0xa9] sm:$0xff] %v2394
        %2428 = vst [vmem:[%s2412 + $0xb1] sm:$0xff] %v2395
        %2429 = vst [vmem:[%s2412 + $0xc1] sm:$0xff] %v2396
        %2430 = vst [vmem:[%s2412 + $0xc9] sm:$0xff] %v2397
        %2431 = vst [vmem:[%s2412 + $0xd9] sm:$0xff] %v2398
        %2432 = vst [vmem:[%s2412 + $0xe1] sm:$0xff] %v2399
        %2433 = vst [vmem:[%s2412 + $0xf1] sm:$0xff] %v2400
        %2434 = vst [vmem:[%s2412 + $0xf9] sm:$0xff] %v2401
        %2435 = vst [vmem:[%s2412 + $0x109] sm:$0xff] %v2402
        %2436 = vst [vmem:[%s2412 + $0x111] sm:$0xff] %v2403
        %2437 = vst [vmem:[%s2412 + $0x121] sm:$0xff] %v2404
        %2438 = vst [vmem:[%s2412 + $0x129] sm:$0xff] %v2405
        %2439 = vst [vmem:[%s2412 + $0x139] sm:$0xff] %v2406
        %2440 = vst [vmem:[%s2412 + $0x141] sm:$0xff] %v2407
        %2441 = vst [vmem:[%s2412 + $0x151] sm:$0xff] %v2408
        %2442 = vst [vmem:[%s2412 + $0x159] sm:$0xff] %v2409
        %2443 = vst [vmem:[%s2412 + $0x169] sm:$0xff] %v2410
        %2444 = vst [vmem:[%s2412 + $0x171] sm:$0xff] %v2411
        %2445 = vst [vmem:[#allocation3] sm:$0xff] 0.0
        %2446 = vst [vmem:[#allocation3 + $0x8] sm:$0xff] 0.0
        %2447 = vst [vmem:[#allocation3 + $0x10] sm:$0x3] 0.0
        %s2448 = scalar_lea.vmem [#allocation3], 408
        %2449 = vst [vmem:[%s2448] sm:$0xff] 0.0
        %2450 = vst [vmem:[%s2448 + $0x8] sm:$0xff] 0.0
        %2451 = vst [vmem:[%s2448 + $0x10] sm:$0x3] 0.0
        %2452 = vst [vmem:[%s2412] sm:$0x1] 0.0
        %2453 = vst [vmem:[%s2412 + $0x18] sm:$0x1] 0.0
        %2454 = vst [vmem:[%s2412 + $0x30] sm:$0x1] 0.0
        %2455 = vst [vmem:[%s2412 + $0x48] sm:$0x1] 0.0
        %2456 = vst [vmem:[%s2412 + $0x60] sm:$0x1] 0.0
        %2457 = vst [vmem:[%s2412 + $0x78] sm:$0x1] 0.0
        %2458 = vst [vmem:[%s2412 + $0x90] sm:$0x1] 0.0
        %2459 = vst [vmem:[%s2412 + $0xa8] sm:$0x1] 0.0
        %2460 = vst [vmem:[%s2412 + $0xc0] sm:$0x1] 0.0
        %2461 = vst [vmem:[%s2412 + $0xd8] sm:$0x1] 0.0
        %2462 = vst [vmem:[%s2412 + $0xf0] sm:$0x1] 0.0
        %2463 = vst [vmem:[%s2412 + $0x108] sm:$0x1] 0.0
        %2464 = vst [vmem:[%s2412 + $0x120] sm:$0x1] 0.0
        %2465 = vst [vmem:[%s2412 + $0x138] sm:$0x1] 0.0
        %2466 = vst [vmem:[%s2412 + $0x150] sm:$0x1] 0.0
        %2467 = vst [vmem:[%s2412 + $0x168] sm:$0x1] 0.0
        %2468 = vst [vmem:[%s2412 + $0x11] sm:$0x1] 0.0
        %2469 = vst [vmem:[%s2412 + $0x29] sm:$0x1] 0.0
        %2470 = vst [vmem:[%s2412 + $0x41] sm:$0x1] 0.0
        %2471 = vst [vmem:[%s2412 + $0x59] sm:$0x1] 0.0
        %2472 = vst [vmem:[%s2412 + $0x71] sm:$0x1] 0.0
        %2473 = vst [vmem:[%s2412 + $0x89] sm:$0x1] 0.0
        %2474 = vst [vmem:[%s2412 + $0xa1] sm:$0x1] 0.0
        %2475 = vst [vmem:[%s2412 + $0xb9] sm:$0x1] 0.0
        %2476 = vst [vmem:[%s2412 + $0xd1] sm:$0x1] 0.0
        %2477 = vst [vmem:[%s2412 + $0xe9] sm:$0x1] 0.0
        %2478 = vst [vmem:[%s2412 + $0x101] sm:$0x1] 0.0
        %2479 = vst [vmem:[%s2412 + $0x119] sm:$0x1] 0.0
        %2480 = vst [vmem:[%s2412 + $0x131] sm:$0x1] 0.0
        %2481 = vst [vmem:[%s2412 + $0x149] sm:$0x1] 0.0
        %2482 = vst [vmem:[%s2412 + $0x161] sm:$0x1] 0.0
        %2483 = vst [vmem:[%s2412 + $0x179] sm:$0x1] 0.0
        %v2484 = vld [vmem:[#allocation3] sm:$0xff]
        %v2485 = vld [vmem:[#allocation3 + $0x8] sm:$0xff]
        %v2486 = vld [vmem:[#allocation3 + $0x18] sm:$0xff]
        %v2487 = vld [vmem:[#allocation3 + $0x20] sm:$0xff]
        %v2488 = vld [vmem:[#allocation3 + $0x30] sm:$0xff]
        %v2489 = vld [vmem:[#allocation3 + $0x38] sm:$0xff]
        %v2490 = vld [vmem:[#allocation3 + $0x48] sm:$0xff]
        %v2491 = vld [vmem:[#allocation3 + $0x50] sm:$0xff]
        %v2492 = vld [vmem:[#allocation3 + $0x60] sm:$0xff]
        %v2493 = vld [vmem:[#allocation3 + $0x68] sm:$0xff]
        %v2494 = vld [vmem:[#allocation3 + $0x78] sm:$0xff]
        %v2495 = vld [vmem:[#allocation3 + $0x80] sm:$0xff]
        %v2496 = vld [vmem:[#allocation3 + $0x90] sm:$0xff]
        %v2497 = vld [vmem:[#allocation3 + $0x98] sm:$0xff]
        %v2498 = vld [vmem:[#allocation3 + $0xa8] sm:$0xff]
        %v2499 = vld [vmem:[#allocation3 + $0xb0] sm:$0xff]
        %v2500 = vld [vmem:[#allocation3 + $0xc0] sm:$0xff]
        %v2501 = vld [vmem:[#allocation3 + $0xc8] sm:$0xff]
        %v2502 = vld [vmem:[#allocation3 + $0xd8] sm:$0xff]
        %v2503 = vld [vmem:[#allocation3 + $0xe0] sm:$0xff]
        %v2504 = vld [vmem:[#allocation3 + $0xf0] sm:$0xff]
        %v2505 = vld [vmem:[#allocation3 + $0xf8] sm:$0xff]
        %v2506 = vld [vmem:[#allocation3 + $0x108] sm:$0xff]
        %v2507 = vld [vmem:[#allocation3 + $0x110] sm:$0xff]
        %v2508 = vld [vmem:[#allocation3 + $0x120] sm:$0xff]
        %v2509 = vld [vmem:[#allocation3 + $0x128] sm:$0xff]
        %v2510 = vld [vmem:[#allocation3 + $0x138] sm:$0xff]
        %v2511 = vld [vmem:[#allocation3 + $0x140] sm:$0xff]
        %v2512 = vld [vmem:[#allocation3 + $0x150] sm:$0xff]
        %v2513 = vld [vmem:[#allocation3 + $0x158] sm:$0xff]
        %v2514 = vld [vmem:[#allocation3 + $0x168] sm:$0xff]
        %v2515 = vld [vmem:[#allocation3 + $0x170] sm:$0xff]
        %2516 = vst [vmem:[#allocation2] sm:$0xff] %v2484
        %2517 = vst [vmem:[#allocation2 + $0x48] sm:$0xff] %v2485
        %2518 = vst [vmem:[#allocation2 + $0x90] sm:$0xff] %v2486
        %2519 = vst [vmem:[#allocation2 + $0xd8] sm:$0xff] %v2487
        %2520 = vst [vmem:[#allocation2 + $0x120] sm:$0xff] %v2488
        %2521 = vst [vmem:[#allocation2 + $0x168] sm:$0xff] %v2489
        %2522 = vst [vmem:[#allocation2 + $0x1b0] sm:$0xff] %v2490
        %2523 = vst [vmem:[#allocation2 + $0x1f8] sm:$0xff] %v2491
        %2524 = vst [vmem:[#allocation2 + $0x240] sm:$0xff] %v2492
        %2525 = vst [vmem:[#allocation2 + $0x288] sm:$0xff] %v2493
        %2526 = vst [vmem:[#allocation2 + $0x2d0] sm:$0xff] %v2494
        %2527 = vst [vmem:[#allocation2 + $0x318] sm:$0xff] %v2495
        %2528 = vst [vmem:[#allocation2 + $0x360] sm:$0xff] %v2496
        %2529 = vst [vmem:[#allocation2 + $0x3a8] sm:$0xff] %v2497
        %2530 = vst [vmem:[#allocation2 + $0x3f0] sm:$0xff] %v2498
        %2531 = vst [vmem:[#allocation2 + $0x438] sm:$0xff] %v2499
        %2532 = vst [vmem:[#allocation2 + $0x480] sm:$0xff] %v2500
        %2533 = vst [vmem:[#allocation2 + $0x4c8] sm:$0xff] %v2501
        %2534 = vst [vmem:[#allocation2 + $0x510] sm:$0xff] %v2502
        %2535 = vst [vmem:[#allocation2 + $0x558] sm:$0xff] %v2503
        %2536 = vst [vmem:[#allocation2 + $0x5a0] sm:$0xff] %v2504
        %2537 = vst [vmem:[#allocation2 + $0x5e8] sm:$0xff] %v2505
        %2538 = vst [vmem:[#allocation2 + $0x630] sm:$0xff] %v2506
        %2539 = vst [vmem:[#allocation2 + $0x678] sm:$0xff] %v2507
        %2540 = vst [vmem:[#allocation2 + $0x6c0] sm:$0xff] %v2508
        %2541 = vst [vmem:[#allocation2 + $0x708] sm:$0xff] %v2509
        %2542 = vst [vmem:[#allocation2 + $0x750] sm:$0xff] %v2510
        %2543 = vst [vmem:[#allocation2 + $0x798] sm:$0xff] %v2511
        %2544 = vst [vmem:[#allocation2 + $0x7e0] sm:$0xff] %v2512
        %2545 = vst [vmem:[#allocation2 + $0x828] sm:$0xff] %v2513
        %2546 = vst [vmem:[#allocation2 + $0x870] sm:$0xff] %v2514
        %2547 = vst [vmem:[#allocation2 + $0x8b8] sm:$0xff] %v2515
        %v2548 = vld [vmem:[#allocation3 + $0x1] sm:$0xff]
        %v2549 = vld [vmem:[#allocation3 + $0x9] sm:$0xff]
        %v2550 = vld [vmem:[#allocation3 + $0x19] sm:$0xff]
        %v2551 = vld [vmem:[#allocation3 + $0x21] sm:$0xff]
        %v2552 = vld [vmem:[#allocation3 + $0x31] sm:$0xff]
        %v2553 = vld [vmem:[#allocation3 + $0x39] sm:$0xff]
        %v2554 = vld [vmem:[#allocation3 + $0x49] sm:$0xff]
        %v2555 = vld [vmem:[#allocation3 + $0x51] sm:$0xff]
        %v2556 = vld [vmem:[#allocation3 + $0x61] sm:$0xff]
        %v2557 = vld [vmem:[#allocation3 + $0x69] sm:$0xff]
        %v2558 = vld [vmem:[#allocation3 + $0x79] sm:$0xff]
        %v2559 = vld [vmem:[#allocation3 + $0x81] sm:$0xff]
        %v2560 = vld [vmem:[#allocation3 + $0x91] sm:$0xff]
        %v2561 = vld [vmem:[#allocation3 + $0x99] sm:$0xff]
        %v2562 = vld [vmem:[#allocation3 + $0xa9] sm:$0xff]
        %v2563 = vld [vmem:[#allocation3 + $0xb1] sm:$0xff]
        %v2564 = vld [vmem:[#allocation3 + $0xc1] sm:$0xff]
        %v2565 = vld [vmem:[#allocation3 + $0xc9] sm:$0xff]
        %v2566 = vld [vmem:[#allocation3 + $0xd9] sm:$0xff]
        %v2567 = vld [vmem:[#allocation3 + $0xe1] sm:$0xff]
        %v2568 = vld [vmem:[#allocation3 + $0xf1] sm:$0xff]
        %v2569 = vld [vmem:[#allocation3 + $0xf9] sm:$0xff]
        %v2570 = vld [vmem:[#allocation3 + $0x109] sm:$0xff]
        %v2571 = vld [vmem:[#allocation3 + $0x111] sm:$0xff]
        %v2572 = vld [vmem:[#allocation3 + $0x121] sm:$0xff]
        %v2573 = vld [vmem:[#allocation3 + $0x129] sm:$0xff]
        %v2574 = vld [vmem:[#allocation3 + $0x139] sm:$0xff]
        %v2575 = vld [vmem:[#allocation3 + $0x141] sm:$0xff]
        %v2576 = vld [vmem:[#allocation3 + $0x151] sm:$0xff]
        %v2577 = vld [vmem:[#allocation3 + $0x159] sm:$0xff]
        %v2578 = vld [vmem:[#allocation3 + $0x169] sm:$0xff]
        %v2579 = vld [vmem:[#allocation3 + $0x171] sm:$0xff]
        %2580 = vst [vmem:[#allocation2 + $0x8] sm:$0xff] %v2548
        %2581 = vst [vmem:[#allocation2 + $0x50] sm:$0xff] %v2549
        %2582 = vst [vmem:[#allocation2 + $0x98] sm:$0xff] %v2550
        %2583 = vst [vmem:[#allocation2 + $0xe0] sm:$0xff] %v2551
        %2584 = vst [vmem:[#allocation2 + $0x128] sm:$0xff] %v2552
        %2585 = vst [vmem:[#allocation2 + $0x170] sm:$0xff] %v2553
        %2586 = vst [vmem:[#allocation2 + $0x1b8] sm:$0xff] %v2554
        %2587 = vst [vmem:[#allocation2 + $0x200] sm:$0xff] %v2555
        %2588 = vst [vmem:[#allocation2 + $0x248] sm:$0xff] %v2556
        %2589 = vst [vmem:[#allocation2 + $0x290] sm:$0xff] %v2557
        %2590 = vst [vmem:[#allocation2 + $0x2d8] sm:$0xff] %v2558
        %2591 = vst [vmem:[#allocation2 + $0x320] sm:$0xff] %v2559
        %2592 = vst [vmem:[#allocation2 + $0x368] sm:$0xff] %v2560
        %2593 = vst [vmem:[#allocation2 + $0x3b0] sm:$0xff] %v2561
        %2594 = vst [vmem:[#allocation2 + $0x3f8] sm:$0xff] %v2562
        %2595 = vst [vmem:[#allocation2 + $0x440] sm:$0xff] %v2563
        %2596 = vst [vmem:[#allocation2 + $0x488] sm:$0xff] %v2564
        %2597 = vst [vmem:[#allocation2 + $0x4d0] sm:$0xff] %v2565
        %2598 = vst [vmem:[#allocation2 + $0x518] sm:$0xff] %v2566
        %2599 = vst [vmem:[#allocation2 + $0x560] sm:$0xff] %v2567
        %2600 = vst [vmem:[#allocation2 + $0x5a8] sm:$0xff] %v2568
        %2601 = vst [vmem:[#allocation2 + $0x5f0] sm:$0xff] %v2569
        %2602 = vst [vmem:[#allocation2 + $0x638] sm:$0xff] %v2570
        %2603 = vst [vmem:[#allocation2 + $0x680] sm:$0xff] %v2571
        %2604 = vst [vmem:[#allocation2 + $0x6c8] sm:$0xff] %v2572
        %2605 = vst [vmem:[#allocation2 + $0x710] sm:$0xff] %v2573
        %2606 = vst [vmem:[#allocation2 + $0x758] sm:$0xff] %v2574
        %2607 = vst [vmem:[#allocation2 + $0x7a0] sm:$0xff] %v2575
        %2608 = vst [vmem:[#allocation2 + $0x7e8] sm:$0xff] %v2576
        %2609 = vst [vmem:[#allocation2 + $0x830] sm:$0xff] %v2577
        %2610 = vst [vmem:[#allocation2 + $0x878] sm:$0xff] %v2578
        %2611 = vst [vmem:[#allocation2 + $0x8c0] sm:$0xff] %v2579
        %v2612 = vld [vmem:[#allocation3 + $0x2] sm:$0xff]
        %v2613 = vld [vmem:[#allocation3 + $0xa] sm:$0xff]
        %v2614 = vld [vmem:[#allocation3 + $0x1a] sm:$0xff]
        %v2615 = vld [vmem:[#allocation3 + $0x22] sm:$0xff]
        %v2616 = vld [vmem:[#allocation3 + $0x32] sm:$0xff]
        %v2617 = vld [vmem:[#allocation3 + $0x3a] sm:$0xff]
        %v2618 = vld [vmem:[#allocation3 + $0x4a] sm:$0xff]
        %v2619 = vld [vmem:[#allocation3 + $0x52] sm:$0xff]
        %v2620 = vld [vmem:[#allocation3 + $0x62] sm:$0xff]
        %v2621 = vld [vmem:[#allocation3 + $0x6a] sm:$0xff]
        %v2622 = vld [vmem:[#allocation3 + $0x7a] sm:$0xff]
        %v2623 = vld [vmem:[#allocation3 + $0x82] sm:$0xff]
        %v2624 = vld [vmem:[#allocation3 + $0x92] sm:$0xff]
        %v2625 = vld [vmem:[#allocation3 + $0x9a] sm:$0xff]
        %v2626 = vld [vmem:[#allocation3 + $0xaa] sm:$0xff]
        %v2627 = vld [vmem:[#allocation3 + $0xb2] sm:$0xff]
        %v2628 = vld [vmem:[#allocation3 + $0xc2] sm:$0xff]
        %v2629 = vld [vmem:[#allocation3 + $0xca] sm:$0xff]
        %v2630 = vld [vmem:[#allocation3 + $0xda] sm:$0xff]
        %v2631 = vld [vmem:[#allocation3 + $0xe2] sm:$0xff]
        %v2632 = vld [vmem:[#allocation3 + $0xf2] sm:$0xff]
        %v2633 = vld [vmem:[#allocation3 + $0xfa] sm:$0xff]
        %v2634 = vld [vmem:[#allocation3 + $0x10a] sm:$0xff]
        %v2635 = vld [vmem:[#allocation3 + $0x112] sm:$0xff]
        %v2636 = vld [vmem:[#allocation3 + $0x122] sm:$0xff]
        %v2637 = vld [vmem:[#allocation3 + $0x12a] sm:$0xff]
        %v2638 = vld [vmem:[#allocation3 + $0x13a] sm:$0xff]
        %v2639 = vld [vmem:[#allocation3 + $0x142] sm:$0xff]
        %v2640 = vld [vmem:[#allocation3 + $0x152] sm:$0xff]
        %v2641 = vld [vmem:[#allocation3 + $0x15a] sm:$0xff]
        %v2642 = vld [vmem:[#allocation3 + $0x16a] sm:$0xff]
        %v2643 = vld [vmem:[#allocation3 + $0x172] sm:$0xff]
        %2644 = vst [vmem:[#allocation2 + $0x10] sm:$0xff] %v2612
        %2645 = vst [vmem:[#allocation2 + $0x58] sm:$0xff] %v2613
        %2646 = vst [vmem:[#allocation2 + $0xa0] sm:$0xff] %v2614
        %2647 = vst [vmem:[#allocation2 + $0xe8] sm:$0xff] %v2615
        %2648 = vst [vmem:[#allocation2 + $0x130] sm:$0xff] %v2616
        %2649 = vst [vmem:[#allocation2 + $0x178] sm:$0xff] %v2617
        %2650 = vst [vmem:[#allocation2 + $0x1c0] sm:$0xff] %v2618
        %2651 = vst [vmem:[#allocation2 + $0x208] sm:$0xff] %v2619
        %2652 = vst [vmem:[#allocation2 + $0x250] sm:$0xff] %v2620
        %2653 = vst [vmem:[#allocation2 + $0x298] sm:$0xff] %v2621
        %2654 = vst [vmem:[#allocation2 + $0x2e0] sm:$0xff] %v2622
        %2655 = vst [vmem:[#allocation2 + $0x328] sm:$0xff] %v2623
        %2656 = vst [vmem:[#allocation2 + $0x370] sm:$0xff] %v2624
        %2657 = vst [vmem:[#allocation2 + $0x3b8] sm:$0xff] %v2625
        %2658 = vst [vmem:[#allocation2 + $0x400] sm:$0xff] %v2626
        %2659 = vst [vmem:[#allocation2 + $0x448] sm:$0xff] %v2627
        %2660 = vst [vmem:[#allocation2 + $0x490] sm:$0xff] %v2628
        %2661 = vst [vmem:[#allocation2 + $0x4d8] sm:$0xff] %v2629
        %2662 = vst [vmem:[#allocation2 + $0x520] sm:$0xff] %v2630
        %2663 = vst [vmem:[#allocation2 + $0x568] sm:$0xff] %v2631
        %2664 = vst [vmem:[#allocation2 + $0x5b0] sm:$0xff] %v2632
        %2665 = vst [vmem:[#allocation2 + $0x5f8] sm:$0xff] %v2633
        %2666 = vst [vmem:[#allocation2 + $0x640] sm:$0xff] %v2634
        %2667 = vst [vmem:[#allocation2 + $0x688] sm:$0xff] %v2635
        %2668 = vst [vmem:[#allocation2 + $0x6d0] sm:$0xff] %v2636
        %2669 = vst [vmem:[#allocation2 + $0x718] sm:$0xff] %v2637
        %2670 = vst [vmem:[#allocation2 + $0x760] sm:$0xff] %v2638
        %2671 = vst [vmem:[#allocation2 + $0x7a8] sm:$0xff] %v2639
        %2672 = vst [vmem:[#allocation2 + $0x7f0] sm:$0xff] %v2640
        %2673 = vst [vmem:[#allocation2 + $0x838] sm:$0xff] %v2641
        %2674 = vst [vmem:[#allocation2 + $0x880] sm:$0xff] %v2642
        %2675 = vst [vmem:[#allocation2 + $0x8c8] sm:$0xff] %v2643
        %v2676 = vld [vmem:[%s2412] sm:$0xff]
        %v2677 = vld [vmem:[%s2412 + $0x8] sm:$0xff]
        %v2678 = vld [vmem:[%s2412 + $0x18] sm:$0xff]
        %v2679 = vld [vmem:[%s2412 + $0x20] sm:$0xff]
        %v2680 = vld [vmem:[%s2412 + $0x30] sm:$0xff]
        %v2681 = vld [vmem:[%s2412 + $0x38] sm:$0xff]
        %v2682 = vld [vmem:[%s2412 + $0x48] sm:$0xff]
        %v2683 = vld [vmem:[%s2412 + $0x50] sm:$0xff]
        %v2684 = vld [vmem:[%s2412 + $0x60] sm:$0xff]
        %v2685 = vld [vmem:[%s2412 + $0x68] sm:$0xff]
        %v2686 = vld [vmem:[%s2412 + $0x78] sm:$0xff]
        %v2687 = vld [vmem:[%s2412 + $0x80] sm:$0xff]
        %v2688 = vld [vmem:[%s2412 + $0x90] sm:$0xff]
        %v2689 = vld [vmem:[%s2412 + $0x98] sm:$0xff]
        %v2690 = vld [vmem:[%s2412 + $0xa8] sm:$0xff]
        %v2691 = vld [vmem:[%s2412 + $0xb0] sm:$0xff]
        %v2692 = vld [vmem:[%s2412 + $0xc0] sm:$0xff]
        %v2693 = vld [vmem:[%s2412 + $0xc8] sm:$0xff]
        %v2694 = vld [vmem:[%s2412 + $0xd8] sm:$0xff]
        %v2695 = vld [vmem:[%s2412 + $0xe0] sm:$0xff]
        %v2696 = vld [vmem:[%s2412 + $0xf0] sm:$0xff]
        %v2697 = vld [vmem:[%s2412 + $0xf8] sm:$0xff]
        %v2698 = vld [vmem:[%s2412 + $0x108] sm:$0xff]
        %v2699 = vld [vmem:[%s2412 + $0x110] sm:$0xff]
        %v2700 = vld [vmem:[%s2412 + $0x120] sm:$0xff]
        %v2701 = vld [vmem:[%s2412 + $0x128] sm:$0xff]
        %v2702 = vld [vmem:[%s2412 + $0x138] sm:$0xff]
        %v2703 = vld [vmem:[%s2412 + $0x140] sm:$0xff]
        %v2704 = vld [vmem:[%s2412 + $0x150] sm:$0xff]
        %v2705 = vld [vmem:[%s2412 + $0x158] sm:$0xff]
        %v2706 = vld [vmem:[%s2412 + $0x168] sm:$0xff]
        %v2707 = vld [vmem:[%s2412 + $0x170] sm:$0xff]
        %2708 = vst [vmem:[#allocation2 + $0x18] sm:$0xff] %v2676
        %2709 = vst [vmem:[#allocation2 + $0x60] sm:$0xff] %v2677
        %2710 = vst [vmem:[#allocation2 + $0xa8] sm:$0xff] %v2678
        %2711 = vst [vmem:[#allocation2 + $0xf0] sm:$0xff] %v2679
        %2712 = vst [vmem:[#allocation2 + $0x138] sm:$0xff] %v2680
        %2713 = vst [vmem:[#allocation2 + $0x180] sm:$0xff] %v2681
        %2714 = vst [vmem:[#allocation2 + $0x1c8] sm:$0xff] %v2682
        %2715 = vst [vmem:[#allocation2 + $0x210] sm:$0xff] %v2683
        %2716 = vst [vmem:[#allocation2 + $0x258] sm:$0xff] %v2684
        %2717 = vst [vmem:[#allocation2 + $0x2a0] sm:$0xff] %v2685
        %2718 = vst [vmem:[#allocation2 + $0x2e8] sm:$0xff] %v2686
        %2719 = vst [vmem:[#allocation2 + $0x330] sm:$0xff] %v2687
        %2720 = vst [vmem:[#allocation2 + $0x378] sm:$0xff] %v2688
        %2721 = vst [vmem:[#allocation2 + $0x3c0] sm:$0xff] %v2689
        %2722 = vst [vmem:[#allocation2 + $0x408] sm:$0xff] %v2690
        %2723 = vst [vmem:[#allocation2 + $0x450] sm:$0xff] %v2691
        %2724 = vst [vmem:[#allocation2 + $0x498] sm:$0xff] %v2692
        %2725 = vst [vmem:[#allocation2 + $0x4e0] sm:$0xff] %v2693
        %2726 = vst [vmem:[#allocation2 + $0x528] sm:$0xff] %v2694
        %2727 = vst [vmem:[#allocation2 + $0x570] sm:$0xff] %v2695
        %2728 = vst [vmem:[#allocation2 + $0x5b8] sm:$0xff] %v2696
        %2729 = vst [vmem:[#allocation2 + $0x600] sm:$0xff] %v2697
        %2730 = vst [vmem:[#allocation2 + $0x648] sm:$0xff] %v2698
        %2731 = vst [vmem:[#allocation2 + $0x690] sm:$0xff] %v2699
        %2732 = vst [vmem:[#allocation2 + $0x6d8] sm:$0xff] %v2700
        %2733 = vst [vmem:[#allocation2 + $0x720] sm:$0xff] %v2701
        %2734 = vst [vmem:[#allocation2 + $0x768] sm:$0xff] %v2702
        %2735 = vst [vmem:[#allocation2 + $0x7b0] sm:$0xff] %v2703
        %2736 = vst [vmem:[#allocation2 + $0x7f8] sm:$0xff] %v2704
        %2737 = vst [vmem:[#allocation2 + $0x840] sm:$0xff] %v2705
        %2738 = vst [vmem:[#allocation2 + $0x888] sm:$0xff] %v2706
        %2739 = vst [vmem:[#allocation2 + $0x8d0] sm:$0xff] %v2707
        %v2740 = vld [vmem:[%s2412 + $0x1] sm:$0xff]
        %v2741 = vld [vmem:[%s2412 + $0x9] sm:$0xff]
        %v2742 = vld [vmem:[%s2412 + $0x19] sm:$0xff]
        %v2743 = vld [vmem:[%s2412 + $0x21] sm:$0xff]
        %v2744 = vld [vmem:[%s2412 + $0x31] sm:$0xff]
        %v2745 = vld [vmem:[%s2412 + $0x39] sm:$0xff]
        %v2746 = vld [vmem:[%s2412 + $0x49] sm:$0xff]
        %v2747 = vld [vmem:[%s2412 + $0x51] sm:$0xff]
        %v2748 = vld [vmem:[%s2412 + $0x61] sm:$0xff]
        %v2749 = vld [vmem:[%s2412 + $0x69] sm:$0xff]
        %v2750 = vld [vmem:[%s2412 + $0x79] sm:$0xff]
        %v2751 = vld [vmem:[%s2412 + $0x81] sm:$0xff]
        %v2752 = vld [vmem:[%s2412 + $0x91] sm:$0xff]
        %v2753 = vld [vmem:[%s2412 + $0x99] sm:$0xff]
        %v2754 = vld [vmem:[%s2412 + $0xa9] sm:$0xff]
        %v2755 = vld [vmem:[%s2412 + $0xb1] sm:$0xff]
        %v2756 = vld [vmem:[%s2412 + $0xc1] sm:$0xff]
        %v2757 = vld [vmem:[%s2412 + $0xc9] sm:$0xff]
        %v2758 = vld [vmem:[%s2412 + $0xd9] sm:$0xff]
        %v2759 = vld [vmem:[%s2412 + $0xe1] sm:$0xff]
        %v2760 = vld [vmem:[%s2412 + $0xf1] sm:$0xff]
        %v2761 = vld [vmem:[%s2412 + $0xf9] sm:$0xff]
        %v2762 = vld [vmem:[%s2412 + $0x109] sm:$0xff]
        %v2763 = vld [vmem:[%s2412 + $0x111] sm:$0xff]
        %v2764 = vld [vmem:[%s2412 + $0x121] sm:$0xff]
        %v2765 = vld [vmem:[%s2412 + $0x129] sm:$0xff]
        %v2766 = vld [vmem:[%s2412 + $0x139] sm:$0xff]
        %v2767 = vld [vmem:[%s2412 + $0x141] sm:$0xff]
        %v2768 = vld [vmem:[%s2412 + $0x151] sm:$0xff]
        %v2769 = vld [vmem:[%s2412 + $0x159] sm:$0xff]
        %v2770 = vld [vmem:[%s2412 + $0x169] sm:$0xff]
        %v2771 = vld [vmem:[%s2412 + $0x171] sm:$0xff]
        %2772 = vst [vmem:[#allocation2 + $0x20] sm:$0xff] %v2740
        %2773 = vst [vmem:[#allocation2 + $0x68] sm:$0xff] %v2741
        %2774 = vst [vmem:[#allocation2 + $0xb0] sm:$0xff] %v2742
        %2775 = vst [vmem:[#allocation2 + $0xf8] sm:$0xff] %v2743
        %2776 = vst [vmem:[#allocation2 + $0x140] sm:$0xff] %v2744
        %2777 = vst [vmem:[#allocation2 + $0x188] sm:$0xff] %v2745
        %2778 = vst [vmem:[#allocation2 + $0x1d0] sm:$0xff] %v2746
        %2779 = vst [vmem:[#allocation2 + $0x218] sm:$0xff] %v2747
        %2780 = vst [vmem:[#allocation2 + $0x260] sm:$0xff] %v2748
        %2781 = vst [vmem:[#allocation2 + $0x2a8] sm:$0xff] %v2749
        %2782 = vst [vmem:[#allocation2 + $0x2f0] sm:$0xff] %v2750
        %2783 = vst [vmem:[#allocation2 + $0x338] sm:$0xff] %v2751
        %2784 = vst [vmem:[#allocation2 + $0x380] sm:$0xff] %v2752
        %2785 = vst [vmem:[#allocation2 + $0x3c8] sm:$0xff] %v2753
        %2786 = vst [vmem:[#allocation2 + $0x410] sm:$0xff] %v2754
        %2787 = vst [vmem:[#allocation2 + $0x458] sm:$0xff] %v2755
        %2788 = vst [vmem:[#allocation2 + $0x4a0] sm:$0xff] %v2756
        %2789 = vst [vmem:[#allocation2 + $0x4e8] sm:$0xff] %v2757
        %2790 = vst [vmem:[#allocation2 + $0x530] sm:$0xff] %v2758
        %2791 = vst [vmem:[#allocation2 + $0x578] sm:$0xff] %v2759
        %2792 = vst [vmem:[#allocation2 + $0x5c0] sm:$0xff] %v2760
        %2793 = vst [vmem:[#allocation2 + $0x608] sm:$0xff] %v2761
        %2794 = vst [vmem:[#allocation2 + $0x650] sm:$0xff] %v2762
        %2795 = vst [vmem:[#allocation2 + $0x698] sm:$0xff] %v2763
        %2796 = vst [vmem:[#allocation2 + $0x6e0] sm:$0xff] %v2764
        %2797 = vst [vmem:[#allocation2 + $0x728] sm:$0xff] %v2765
        %2798 = vst [vmem:[#allocation2 + $0x770] sm:$0xff] %v2766
        %2799 = vst [vmem:[#allocation2 + $0x7b8] sm:$0xff] %v2767
        %2800 = vst [vmem:[#allocation2 + $0x800] sm:$0xff] %v2768
        %2801 = vst [vmem:[#allocation2 + $0x848] sm:$0xff] %v2769
        %2802 = vst [vmem:[#allocation2 + $0x890] sm:$0xff] %v2770
        %2803 = vst [vmem:[#allocation2 + $0x8d8] sm:$0xff] %v2771
        %v2804 = vld [vmem:[%s2412 + $0x2] sm:$0xff]
        %v2805 = vld [vmem:[%s2412 + $0xa] sm:$0xff]
        %v2806 = vld [vmem:[%s2412 + $0x1a] sm:$0xff]
        %v2807 = vld [vmem:[%s2412 + $0x22] sm:$0xff]
        %v2808 = vld [vmem:[%s2412 + $0x32] sm:$0xff]
        %v2809 = vld [vmem:[%s2412 + $0x3a] sm:$0xff]
        %v2810 = vld [vmem:[%s2412 + $0x4a] sm:$0xff]
        %v2811 = vld [vmem:[%s2412 + $0x52] sm:$0xff]
        %v2812 = vld [vmem:[%s2412 + $0x62] sm:$0xff]
        %v2813 = vld [vmem:[%s2412 + $0x6a] sm:$0xff]
        %v2814 = vld [vmem:[%s2412 + $0x7a] sm:$0xff]
        %v2815 = vld [vmem:[%s2412 + $0x82] sm:$0xff]
        %v2816 = vld [vmem:[%s2412 + $0x92] sm:$0xff]
        %v2817 = vld [vmem:[%s2412 + $0x9a] sm:$0xff]
        %v2818 = vld [vmem:[%s2412 + $0xaa] sm:$0xff]
        %v2819 = vld [vmem:[%s2412 + $0xb2] sm:$0xff]
        %v2820 = vld [vmem:[%s2412 + $0xc2] sm:$0xff]
        %v2821 = vld [vmem:[%s2412 + $0xca] sm:$0xff]
        %v2822 = vld [vmem:[%s2412 + $0xda] sm:$0xff]
        %v2823 = vld [vmem:[%s2412 + $0xe2] sm:$0xff]
        %v2824 = vld [vmem:[%s2412 + $0xf2] sm:$0xff]
        %v2825 = vld [vmem:[%s2412 + $0xfa] sm:$0xff]
        %v2826 = vld [vmem:[%s2412 + $0x10a] sm:$0xff]
        %v2827 = vld [vmem:[%s2412 + $0x112] sm:$0xff]
        %v2828 = vld [vmem:[%s2412 + $0x122] sm:$0xff]
        %v2829 = vld [vmem:[%s2412 + $0x12a] sm:$0xff]
        %v2830 = vld [vmem:[%s2412 + $0x13a] sm:$0xff]
        %v2831 = vld [vmem:[%s2412 + $0x142] sm:$0xff]
        %v2832 = vld [vmem:[%s2412 + $0x152] sm:$0xff]
        %v2833 = vld [vmem:[%s2412 + $0x15a] sm:$0xff]
        %v2834 = vld [vmem:[%s2412 + $0x16a] sm:$0xff]
        %v2835 = vld [vmem:[%s2412 + $0x172] sm:$0xff]
        %2836 = vst [vmem:[#allocation2 + $0x28] sm:$0xff] %v2804
        %2837 = vst [vmem:[#allocation2 + $0x70] sm:$0xff] %v2805
        %2838 = vst [vmem:[#allocation2 + $0xb8] sm:$0xff] %v2806
        %2839 = vst [vmem:[#allocation2 + $0x100] sm:$0xff] %v2807
        %2840 = vst [vmem:[#allocation2 + $0x148] sm:$0xff] %v2808
        %2841 = vst [vmem:[#allocation2 + $0x190] sm:$0xff] %v2809
        %2842 = vst [vmem:[#allocation2 + $0x1d8] sm:$0xff] %v2810
        %2843 = vst [vmem:[#allocation2 + $0x220] sm:$0xff] %v2811
        %2844 = vst [vmem:[#allocation2 + $0x268] sm:$0xff] %v2812
        %2845 = vst [vmem:[#allocation2 + $0x2b0] sm:$0xff] %v2813
        %2846 = vst [vmem:[#allocation2 + $0x2f8] sm:$0xff] %v2814
        %2847 = vst [vmem:[#allocation2 + $0x340] sm:$0xff] %v2815
        %2848 = vst [vmem:[#allocation2 + $0x388] sm:$0xff] %v2816
        %2849 = vst [vmem:[#allocation2 + $0x3d0] sm:$0xff] %v2817
        %2850 = vst [vmem:[#allocation2 + $0x418] sm:$0xff] %v2818
        %2851 = vst [vmem:[#allocation2 + $0x460] sm:$0xff] %v2819
        %2852 = vst [vmem:[#allocation2 + $0x4a8] sm:$0xff] %v2820
        %2853 = vst [vmem:[#allocation2 + $0x4f0] sm:$0xff] %v2821
        %2854 = vst [vmem:[#allocation2 + $0x538] sm:$0xff] %v2822
        %2855 = vst [vmem:[#allocation2 + $0x580] sm:$0xff] %v2823
        %2856 = vst [vmem:[#allocation2 + $0x5c8] sm:$0xff] %v2824
        %2857 = vst [vmem:[#allocation2 + $0x610] sm:$0xff] %v2825
        %2858 = vst [vmem:[#allocation2 + $0x658] sm:$0xff] %v2826
        %2859 = vst [vmem:[#allocation2 + $0x6a0] sm:$0xff] %v2827
        %2860 = vst [vmem:[#allocation2 + $0x6e8] sm:$0xff] %v2828
        %2861 = vst [vmem:[#allocation2 + $0x730] sm:$0xff] %v2829
        %2862 = vst [vmem:[#allocation2 + $0x778] sm:$0xff] %v2830
        %2863 = vst [vmem:[#allocation2 + $0x7c0] sm:$0xff] %v2831
        %2864 = vst [vmem:[#allocation2 + $0x808] sm:$0xff] %v2832
        %2865 = vst [vmem:[#allocation2 + $0x850] sm:$0xff] %v2833
        %2866 = vst [vmem:[#allocation2 + $0x898] sm:$0xff] %v2834
        %2867 = vst [vmem:[#allocation2 + $0x8e0] sm:$0xff] %v2835
        %s2868 = scalar_lea.vmem [#allocation3], 48
        %v2869 = vld [vmem:[%s2868] sm:$0xff]
        %v2870 = vld [vmem:[%s2868 + $0x8] sm:$0xff]
        %v2871 = vld [vmem:[%s2868 + $0x18] sm:$0xff]
        %v2872 = vld [vmem:[%s2868 + $0x20] sm:$0xff]
        %v2873 = vld [vmem:[%s2868 + $0x30] sm:$0xff]
        %v2874 = vld [vmem:[%s2868 + $0x38] sm:$0xff]
        %v2875 = vld [vmem:[%s2868 + $0x48] sm:$0xff]
        %v2876 = vld [vmem:[%s2868 + $0x50] sm:$0xff]
        %v2877 = vld [vmem:[%s2868 + $0x60] sm:$0xff]
        %v2878 = vld [vmem:[%s2868 + $0x68] sm:$0xff]
        %v2879 = vld [vmem:[%s2868 + $0x78] sm:$0xff]
        %v2880 = vld [vmem:[%s2868 + $0x80] sm:$0xff]
        %v2881 = vld [vmem:[%s2868 + $0x90] sm:$0xff]
        %v2882 = vld [vmem:[%s2868 + $0x98] sm:$0xff]
        %v2883 = vld [vmem:[%s2868 + $0xa8] sm:$0xff]
        %v2884 = vld [vmem:[%s2868 + $0xb0] sm:$0xff]
        %v2885 = vld [vmem:[%s2868 + $0xc0] sm:$0xff]
        %v2886 = vld [vmem:[%s2868 + $0xc8] sm:$0xff]
        %v2887 = vld [vmem:[%s2868 + $0xd8] sm:$0xff]
        %v2888 = vld [vmem:[%s2868 + $0xe0] sm:$0xff]
        %v2889 = vld [vmem:[%s2868 + $0xf0] sm:$0xff]
        %v2890 = vld [vmem:[%s2868 + $0xf8] sm:$0xff]
        %v2891 = vld [vmem:[%s2868 + $0x108] sm:$0xff]
        %v2892 = vld [vmem:[%s2868 + $0x110] sm:$0xff]
        %v2893 = vld [vmem:[%s2868 + $0x120] sm:$0xff]
        %v2894 = vld [vmem:[%s2868 + $0x128] sm:$0xff]
        %v2895 = vld [vmem:[%s2868 + $0x138] sm:$0xff]
        %v2896 = vld [vmem:[%s2868 + $0x140] sm:$0xff]
        %v2897 = vld [vmem:[%s2868 + $0x150] sm:$0xff]
        %v2898 = vld [vmem:[%s2868 + $0x158] sm:$0xff]
        %v2899 = vld [vmem:[%s2868 + $0x168] sm:$0xff]
        %v2900 = vld [vmem:[%s2868 + $0x170] sm:$0xff]
        %2901 = vst [vmem:[#allocation2 + $0x30] sm:$0xff] %v2869
        %2902 = vst [vmem:[#allocation2 + $0x78] sm:$0xff] %v2870
        %2903 = vst [vmem:[#allocation2 + $0xc0] sm:$0xff] %v2871
        %2904 = vst [vmem:[#allocation2 + $0x108] sm:$0xff] %v2872
        %2905 = vst [vmem:[#allocation2 + $0x150] sm:$0xff] %v2873
        %2906 = vst [vmem:[#allocation2 + $0x198] sm:$0xff] %v2874
        %2907 = vst [vmem:[#allocation2 + $0x1e0] sm:$0xff] %v2875
        %2908 = vst [vmem:[#allocation2 + $0x228] sm:$0xff] %v2876
        %2909 = vst [vmem:[#allocation2 + $0x270] sm:$0xff] %v2877
        %2910 = vst [vmem:[#allocation2 + $0x2b8] sm:$0xff] %v2878
        %2911 = vst [vmem:[#allocation2 + $0x300] sm:$0xff] %v2879
        %2912 = vst [vmem:[#allocation2 + $0x348] sm:$0xff] %v2880
        %2913 = vst [vmem:[#allocation2 + $0x390] sm:$0xff] %v2881
        %2914 = vst [vmem:[#allocation2 + $0x3d8] sm:$0xff] %v2882
        %2915 = vst [vmem:[#allocation2 + $0x420] sm:$0xff] %v2883
        %2916 = vst [vmem:[#allocation2 + $0x468] sm:$0xff] %v2884
        %2917 = vst [vmem:[#allocation2 + $0x4b0] sm:$0xff] %v2885
        %2918 = vst [vmem:[#allocation2 + $0x4f8] sm:$0xff] %v2886
        %2919 = vst [vmem:[#allocation2 + $0x540] sm:$0xff] %v2887
        %2920 = vst [vmem:[#allocation2 + $0x588] sm:$0xff] %v2888
        %2921 = vst [vmem:[#allocation2 + $0x5d0] sm:$0xff] %v2889
        %2922 = vst [vmem:[#allocation2 + $0x618] sm:$0xff] %v2890
        %2923 = vst [vmem:[#allocation2 + $0x660] sm:$0xff] %v2891
        %2924 = vst [vmem:[#allocation2 + $0x6a8] sm:$0xff] %v2892
        %2925 = vst [vmem:[#allocation2 + $0x6f0] sm:$0xff] %v2893
        %2926 = vst [vmem:[#allocation2 + $0x738] sm:$0xff] %v2894
        %2927 = vst [vmem:[#allocation2 + $0x780] sm:$0xff] %v2895
        %2928 = vst [vmem:[#allocation2 + $0x7c8] sm:$0xff] %v2896
        %2929 = vst [vmem:[#allocation2 + $0x810] sm:$0xff] %v2897
        %2930 = vst [vmem:[#allocation2 + $0x858] sm:$0xff] %v2898
        %2931 = vst [vmem:[#allocation2 + $0x8a0] sm:$0xff] %v2899
        %2932 = vst [vmem:[#allocation2 + $0x8e8] sm:$0xff] %v2900
        %v2933 = vld [vmem:[%s2868 + $0x1] sm:$0xff]
        %v2934 = vld [vmem:[%s2868 + $0x9] sm:$0xff]
        %v2935 = vld [vmem:[%s2868 + $0x19] sm:$0xff]
        %v2936 = vld [vmem:[%s2868 + $0x21] sm:$0xff]
        %v2937 = vld [vmem:[%s2868 + $0x31] sm:$0xff]
        %v2938 = vld [vmem:[%s2868 + $0x39] sm:$0xff]
        %v2939 = vld [vmem:[%s2868 + $0x49] sm:$0xff]
        %v2940 = vld [vmem:[%s2868 + $0x51] sm:$0xff]
        %v2941 = vld [vmem:[%s2868 + $0x61] sm:$0xff]
        %v2942 = vld [vmem:[%s2868 + $0x69] sm:$0xff]
        %v2943 = vld [vmem:[%s2868 + $0x79] sm:$0xff]
        %v2944 = vld [vmem:[%s2868 + $0x81] sm:$0xff]
        %v2945 = vld [vmem:[%s2868 + $0x91] sm:$0xff]
        %v2946 = vld [vmem:[%s2868 + $0x99] sm:$0xff]
        %v2947 = vld [vmem:[%s2868 + $0xa9] sm:$0xff]
        %v2948 = vld [vmem:[%s2868 + $0xb1] sm:$0xff]
        %v2949 = vld [vmem:[%s2868 + $0xc1] sm:$0xff]
        %v2950 = vld [vmem:[%s2868 + $0xc9] sm:$0xff]
        %v2951 = vld [vmem:[%s2868 + $0xd9] sm:$0xff]
        %v2952 = vld [vmem:[%s2868 + $0xe1] sm:$0xff]
        %v2953 = vld [vmem:[%s2868 + $0xf1] sm:$0xff]
        %v2954 = vld [vmem:[%s2868 + $0xf9] sm:$0xff]
        %v2955 = vld [vmem:[%s2868 + $0x109] sm:$0xff]
        %v2956 = vld [vmem:[%s2868 + $0x111] sm:$0xff]
        %v2957 = vld [vmem:[%s2868 + $0x121] sm:$0xff]
        %v2958 = vld [vmem:[%s2868 + $0x129] sm:$0xff]
        %v2959 = vld [vmem:[%s2868 + $0x139] sm:$0xff]
        %v2960 = vld [vmem:[%s2868 + $0x141] sm:$0xff]
        %v2961 = vld [vmem:[%s2868 + $0x151] sm:$0xff]
        %v2962 = vld [vmem:[%s2868 + $0x159] sm:$0xff]
        %v2963 = vld [vmem:[%s2868 + $0x169] sm:$0xff]
        %v2964 = vld [vmem:[%s2868 + $0x171] sm:$0xff]
        %2965 = vst [vmem:[#allocation2 + $0x38] sm:$0xff] %v2933
        %2966 = vst [vmem:[#allocation2 + $0x80] sm:$0xff] %v2934
        %2967 = vst [vmem:[#allocation2 + $0xc8] sm:$0xff] %v2935
        %2968 = vst [vmem:[#allocation2 + $0x110] sm:$0xff] %v2936
        %2969 = vst [vmem:[#allocation2 + $0x158] sm:$0xff] %v2937
        %2970 = vst [vmem:[#allocation2 + $0x1a0] sm:$0xff] %v2938
        %2971 = vst [vmem:[#allocation2 + $0x1e8] sm:$0xff] %v2939
        %2972 = vst [vmem:[#allocation2 + $0x230] sm:$0xff] %v2940
        %2973 = vst [vmem:[#allocation2 + $0x278] sm:$0xff] %v2941
        %2974 = vst [vmem:[#allocation2 + $0x2c0] sm:$0xff] %v2942
        %2975 = vst [vmem:[#allocation2 + $0x308] sm:$0xff] %v2943
        %2976 = vst [vmem:[#allocation2 + $0x350] sm:$0xff] %v2944
        %2977 = vst [vmem:[#allocation2 + $0x398] sm:$0xff] %v2945
        %2978 = vst [vmem:[#allocation2 + $0x3e0] sm:$0xff] %v2946
        %2979 = vst [vmem:[#allocation2 + $0x428] sm:$0xff] %v2947
        %2980 = vst [vmem:[#allocation2 + $0x470] sm:$0xff] %v2948
        %2981 = vst [vmem:[#allocation2 + $0x4b8] sm:$0xff] %v2949
        %2982 = vst [vmem:[#allocation2 + $0x500] sm:$0xff] %v2950
        %2983 = vst [vmem:[#allocation2 + $0x548] sm:$0xff] %v2951
        %2984 = vst [vmem:[#allocation2 + $0x590] sm:$0xff] %v2952
        %2985 = vst [vmem:[#allocation2 + $0x5d8] sm:$0xff] %v2953
        %2986 = vst [vmem:[#allocation2 + $0x620] sm:$0xff] %v2954
        %2987 = vst [vmem:[#allocation2 + $0x668] sm:$0xff] %v2955
        %2988 = vst [vmem:[#allocation2 + $0x6b0] sm:$0xff] %v2956
        %2989 = vst [vmem:[#allocation2 + $0x6f8] sm:$0xff] %v2957
        %2990 = vst [vmem:[#allocation2 + $0x740] sm:$0xff] %v2958
        %2991 = vst [vmem:[#allocation2 + $0x788] sm:$0xff] %v2959
        %2992 = vst [vmem:[#allocation2 + $0x7d0] sm:$0xff] %v2960
        %2993 = vst [vmem:[#allocation2 + $0x818] sm:$0xff] %v2961
        %2994 = vst [vmem:[#allocation2 + $0x860] sm:$0xff] %v2962
        %2995 = vst [vmem:[#allocation2 + $0x8a8] sm:$0xff] %v2963
        %2996 = vst [vmem:[#allocation2 + $0x8f0] sm:$0xff] %v2964
        %v2997 = vld [vmem:[%s2868 + $0x2] sm:$0xff]
        %v2998 = vld [vmem:[%s2868 + $0xa] sm:$0xff]
        %v2999 = vld [vmem:[%s2868 + $0x1a] sm:$0xff]
        %v3000 = vld [vmem:[%s2868 + $0x22] sm:$0xff]
        %v3001 = vld [vmem:[%s2868 + $0x32] sm:$0xff]
        %v3002 = vld [vmem:[%s2868 + $0x3a] sm:$0xff]
        %v3003 = vld [vmem:[%s2868 + $0x4a] sm:$0xff]
        %v3004 = vld [vmem:[%s2868 + $0x52] sm:$0xff]
        %v3005 = vld [vmem:[%s2868 + $0x62] sm:$0xff]
        %v3006 = vld [vmem:[%s2868 + $0x6a] sm:$0xff]
        %v3007 = vld [vmem:[%s2868 + $0x7a] sm:$0xff]
        %v3008 = vld [vmem:[%s2868 + $0x82] sm:$0xff]
        %v3009 = vld [vmem:[%s2868 + $0x92] sm:$0xff]
        %v3010 = vld [vmem:[%s2868 + $0x9a] sm:$0xff]
        %v3011 = vld [vmem:[%s2868 + $0xaa] sm:$0xff]
        %v3012 = vld [vmem:[%s2868 + $0xb2] sm:$0xff]
        %v3013 = vld [vmem:[%s2868 + $0xc2] sm:$0xff]
        %v3014 = vld [vmem:[%s2868 + $0xca] sm:$0xff]
        %v3015 = vld [vmem:[%s2868 + $0xda] sm:$0xff]
        %v3016 = vld [vmem:[%s2868 + $0xe2] sm:$0xff]
        %v3017 = vld [vmem:[%s2868 + $0xf2] sm:$0xff]
        %v3018 = vld [vmem:[%s2868 + $0xfa] sm:$0xff]
        %v3019 = vld [vmem:[%s2868 + $0x10a] sm:$0xff]
        %v3020 = vld [vmem:[%s2868 + $0x112] sm:$0xff]
        %v3021 = vld [vmem:[%s2868 + $0x122] sm:$0xff]
        %v3022 = vld [vmem:[%s2868 + $0x12a] sm:$0xff]
        %v3023 = vld [vmem:[%s2868 + $0x13a] sm:$0xff]
        %v3024 = vld [vmem:[%s2868 + $0x142] sm:$0xff]
        %v3025 = vld [vmem:[%s2868 + $0x152] sm:$0xff]
        %v3026 = vld [vmem:[%s2868 + $0x15a] sm:$0xff]
        %v3027 = vld [vmem:[%s2868 + $0x16a] sm:$0xff]
        %v3028 = vld [vmem:[%s2868 + $0x172] sm:$0xff]
        %3029 = vst [vmem:[#allocation2 + $0x40] sm:$0xff] %v2997
        %3030 = vst [vmem:[#allocation2 + $0x88] sm:$0xff] %v2998
        %3031 = vst [vmem:[#allocation2 + $0xd0] sm:$0xff] %v2999
        %3032 = vst [vmem:[#allocation2 + $0x118] sm:$0xff] %v3000
        %3033 = vst [vmem:[#allocation2 + $0x160] sm:$0xff] %v3001
        %3034 = vst [vmem:[#allocation2 + $0x1a8] sm:$0xff] %v3002
        %3035 = vst [vmem:[#allocation2 + $0x1f0] sm:$0xff] %v3003
        %3036 = vst [vmem:[#allocation2 + $0x238] sm:$0xff] %v3004
        %3037 = vst [vmem:[#allocation2 + $0x280] sm:$0xff] %v3005
        %3038 = vst [vmem:[#allocation2 + $0x2c8] sm:$0xff] %v3006
        %3039 = vst [vmem:[#allocation2 + $0x310] sm:$0xff] %v3007
        %3040 = vst [vmem:[#allocation2 + $0x358] sm:$0xff] %v3008
        %3041 = vst [vmem:[#allocation2 + $0x3a0] sm:$0xff] %v3009
        %3042 = vst [vmem:[#allocation2 + $0x3e8] sm:$0xff] %v3010
        %3043 = vst [vmem:[#allocation2 + $0x430] sm:$0xff] %v3011
        %3044 = vst [vmem:[#allocation2 + $0x478] sm:$0xff] %v3012
        %3045 = vst [vmem:[#allocation2 + $0x4c0] sm:$0xff] %v3013
        %3046 = vst [vmem:[#allocation2 + $0x508] sm:$0xff] %v3014
        %3047 = vst [vmem:[#allocation2 + $0x550] sm:$0xff] %v3015
        %3048 = vst [vmem:[#allocation2 + $0x598] sm:$0xff] %v3016
        %3049 = vst [vmem:[#allocation2 + $0x5e0] sm:$0xff] %v3017
        %3050 = vst [vmem:[#allocation2 + $0x628] sm:$0xff] %v3018
        %3051 = vst [vmem:[#allocation2 + $0x670] sm:$0xff] %v3019
        %3052 = vst [vmem:[#allocation2 + $0x6b8] sm:$0xff] %v3020
        %3053 = vst [vmem:[#allocation2 + $0x700] sm:$0xff] %v3021
        %3054 = vst [vmem:[#allocation2 + $0x748] sm:$0xff] %v3022
        %3055 = vst [vmem:[#allocation2 + $0x790] sm:$0xff] %v3023
        %3056 = vst [vmem:[#allocation2 + $0x7d8] sm:$0xff] %v3024
        %3057 = vst [vmem:[#allocation2 + $0x820] sm:$0xff] %v3025
        %3058 = vst [vmem:[#allocation2 + $0x868] sm:$0xff] %v3026
        %3059 = vst [vmem:[#allocation2 + $0x8b0] sm:$0xff] %v3027
        %3060 = vst [vmem:[#allocation2 + $0x8f8] sm:$0xff] %v3028
        %v3061 = vld [vmem:[#allocation2] sm:$0xff]
        %v3062 = vld [vmem:[#allocation2 + $0x8] sm:$0xff]
        %v3063 = vld [vmem:[#allocation2 + $0x10] sm:$0xff]
        %v3064 = vld [vmem:[#allocation2 + $0x18] sm:$0xff]
        %v3065 = vld [vmem:[#allocation2 + $0x20] sm:$0xff]
        %v3066 = vld [vmem:[#allocation2 + $0x28] sm:$0xff]
        %v3067 = vld [vmem:[#allocation2 + $0x30] sm:$0xff]
        %v3068 = vld [vmem:[#allocation2 + $0x38] sm:$0xff]
        %v3069 = vld [vmem:[#allocation2 + $0x40] sm:$0xff]
        %v3070 = vld [vmem:[#allocation2 + $0x48] sm:$0xff]
        %v3071 = vld [vmem:[#allocation2 + $0x50] sm:$0xff]
        %v3072 = vld [vmem:[#allocation2 + $0x58] sm:$0xff]
        %v3073 = vld [vmem:[#allocation2 + $0x60] sm:$0xff]
        %v3074 = vld [vmem:[#allocation2 + $0x68] sm:$0xff]
        %v3075 = vld [vmem:[#allocation2 + $0x70] sm:$0xff]
        %v3076 = vld [vmem:[#allocation2 + $0x78] sm:$0xff]
        %v3077 = vld [vmem:[#allocation2 + $0x80] sm:$0xff]
        %v3078 = vld [vmem:[#allocation2 + $0x88] sm:$0xff]
        %v3079 = vld [vmem:[#allocation2 + $0x90] sm:$0xff]
        %v3080 = vld [vmem:[#allocation2 + $0x98] sm:$0xff]
        %v3081 = vld [vmem:[#allocation2 + $0xa0] sm:$0xff]
        %v3082 = vld [vmem:[#allocation2 + $0xa8] sm:$0xff]
        %v3083 = vld [vmem:[#allocation2 + $0xb0] sm:$0xff]
        %v3084 = vld [vmem:[#allocation2 + $0xb8] sm:$0xff]
        %v3085 = vld [vmem:[#allocation2 + $0xc0] sm:$0xff]
        %v3086 = vld [vmem:[#allocation2 + $0xc8] sm:$0xff]
        %v3087 = vld [vmem:[#allocation2 + $0xd0] sm:$0xff]
        %v3088 = vld [vmem:[#allocation2 + $0xd8] sm:$0xff]
        %v3089 = vld [vmem:[#allocation2 + $0xe0] sm:$0xff]
        %v3090 = vld [vmem:[#allocation2 + $0xe8] sm:$0xff]
        %v3091 = vld [vmem:[#allocation2 + $0xf0] sm:$0xff]
        %v3092 = vld [vmem:[#allocation2 + $0xf8] sm:$0xff]
        %v3093 = vld [vmem:[#allocation2 + $0x100] sm:$0xff]
        %v3094 = vld [vmem:[#allocation2 + $0x108] sm:$0xff]
        %v3095 = vld [vmem:[#allocation2 + $0x110] sm:$0xff]
        %v3096 = vld [vmem:[#allocation2 + $0x118] sm:$0xff]
        %v3097 = vld [vmem:[#allocation2 + $0x120] sm:$0xff]
        %v3098 = vld [vmem:[#allocation2 + $0x128] sm:$0xff]
        %v3099 = vld [vmem:[#allocation2 + $0x130] sm:$0xff]
        %v3100 = vld [vmem:[#allocation2 + $0x138] sm:$0xff]
        %v3101 = vld [vmem:[#allocation2 + $0x140] sm:$0xff]
        %v3102 = vld [vmem:[#allocation2 + $0x148] sm:$0xff]
        %v3103 = vld [vmem:[#allocation2 + $0x150] sm:$0xff]
        %v3104 = vld [vmem:[#allocation2 + $0x158] sm:$0xff]
        %v3105 = vld [vmem:[#allocation2 + $0x160] sm:$0xff]
        %v3106 = vld [vmem:[#allocation2 + $0x168] sm:$0xff]
        %v3107 = vld [vmem:[#allocation2 + $0x170] sm:$0xff]
        %v3108 = vld [vmem:[#allocation2 + $0x178] sm:$0xff]
        %v3109 = vld [vmem:[#allocation2 + $0x180] sm:$0xff]
        %v3110 = vld [vmem:[#allocation2 + $0x188] sm:$0xff]
        %v3111 = vld [vmem:[#allocation2 + $0x190] sm:$0xff]
        %v3112 = vld [vmem:[#allocation2 + $0x198] sm:$0xff]
        %v3113 = vld [vmem:[#allocation2 + $0x1a0] sm:$0xff]
        %v3114 = vld [vmem:[#allocation2 + $0x1a8] sm:$0xff]
        %v3115 = vld [vmem:[#allocation2 + $0x1b0] sm:$0xff]
        %v3116 = vld [vmem:[#allocation2 + $0x1b8] sm:$0xff]
        %v3117 = vld [vmem:[#allocation2 + $0x1c0] sm:$0xff]
        %v3118 = vld [vmem:[#allocation2 + $0x1c8] sm:$0xff]
        %v3119 = vld [vmem:[#allocation2 + $0x1d0] sm:$0xff]
        %v3120 = vld [vmem:[#allocation2 + $0x1d8] sm:$0xff]
        %v3121 = vld [vmem:[#allocation2 + $0x1e0] sm:$0xff]
        %v3122 = vld [vmem:[#allocation2 + $0x1e8] sm:$0xff]
        %v3123 = vld [vmem:[#allocation2 + $0x1f0] sm:$0xff]
        %v3124 = vld [vmem:[#allocation2 + $0x1f8] sm:$0xff]
        %v3125 = vld [vmem:[#allocation2 + $0x200] sm:$0xff]
        %v3126 = vld [vmem:[#allocation2 + $0x208] sm:$0xff]
        %v3127 = vld [vmem:[#allocation2 + $0x210] sm:$0xff]
        %v3128 = vld [vmem:[#allocation2 + $0x218] sm:$0xff]
        %v3129 = vld [vmem:[#allocation2 + $0x220] sm:$0xff]
        %v3130 = vld [vmem:[#allocation2 + $0x228] sm:$0xff]
        %v3131 = vld [vmem:[#allocation2 + $0x230] sm:$0xff]
        %v3132 = vld [vmem:[#allocation2 + $0x238] sm:$0xff]
        %v3133 = vld [vmem:[#allocation2 + $0x240] sm:$0xff]
        %v3134 = vld [vmem:[#allocation2 + $0x248] sm:$0xff]
        %v3135 = vld [vmem:[#allocation2 + $0x250] sm:$0xff]
        %v3136 = vld [vmem:[#allocation2 + $0x258] sm:$0xff]
        %v3137 = vld [vmem:[#allocation2 + $0x260] sm:$0xff]
        %v3138 = vld [vmem:[#allocation2 + $0x268] sm:$0xff]
        %v3139 = vld [vmem:[#allocation2 + $0x270] sm:$0xff]
        %v3140 = vld [vmem:[#allocation2 + $0x278] sm:$0xff]
        %v3141 = vld [vmem:[#allocation2 + $0x280] sm:$0xff]
        %v3142 = vld [vmem:[#allocation2 + $0x288] sm:$0xff]
        %v3143 = vld [vmem:[#allocation2 + $0x290] sm:$0xff]
        %v3144 = vld [vmem:[#allocation2 + $0x298] sm:$0xff]
        %v3145 = vld [vmem:[#allocation2 + $0x2a0] sm:$0xff]
        %v3146 = vld [vmem:[#allocation2 + $0x2a8] sm:$0xff]
        %v3147 = vld [vmem:[#allocation2 + $0x2b0] sm:$0xff]
        %v3148 = vld [vmem:[#allocation2 + $0x2b8] sm:$0xff]
        %v3149 = vld [vmem:[#allocation2 + $0x2c0] sm:$0xff]
        %v3150 = vld [vmem:[#allocation2 + $0x2c8] sm:$0xff]
        %v3151 = vld [vmem:[#allocation2 + $0x2d0] sm:$0xff]
        %v3152 = vld [vmem:[#allocation2 + $0x2d8] sm:$0xff]
        %v3153 = vld [vmem:[#allocation2 + $0x2e0] sm:$0xff]
        %v3154 = vld [vmem:[#allocation2 + $0x2e8] sm:$0xff]
        %v3155 = vld [vmem:[#allocation2 + $0x2f0] sm:$0xff]
        %v3156 = vld [vmem:[#allocation2 + $0x2f8] sm:$0xff]
        %v3157 = vld [vmem:[#allocation2 + $0x300] sm:$0xff]
        %v3158 = vld [vmem:[#allocation2 + $0x308] sm:$0xff]
        %v3159 = vld [vmem:[#allocation2 + $0x310] sm:$0xff]
        %v3160 = vld [vmem:[#allocation2 + $0x318] sm:$0xff]
        %v3161 = vld [vmem:[#allocation2 + $0x320] sm:$0xff]
        %v3162 = vld [vmem:[#allocation2 + $0x328] sm:$0xff]
        %v3163 = vld [vmem:[#allocation2 + $0x330] sm:$0xff]
        %v3164 = vld [vmem:[#allocation2 + $0x338] sm:$0xff]
        %v3165 = vld [vmem:[#allocation2 + $0x340] sm:$0xff]
        %v3166 = vld [vmem:[#allocation2 + $0x348] sm:$0xff]
        %v3167 = vld [vmem:[#allocation2 + $0x350] sm:$0xff]
        %v3168 = vld [vmem:[#allocation2 + $0x358] sm:$0xff]
        %v3169 = vld [vmem:[#allocation2 + $0x360] sm:$0xff]
        %v3170 = vld [vmem:[#allocation2 + $0x368] sm:$0xff]
        %v3171 = vld [vmem:[#allocation2 + $0x370] sm:$0xff]
        %v3172 = vld [vmem:[#allocation2 + $0x378] sm:$0xff]
        %v3173 = vld [vmem:[#allocation2 + $0x380] sm:$0xff]
        %v3174 = vld [vmem:[#allocation2 + $0x388] sm:$0xff]
        %v3175 = vld [vmem:[#allocation2 + $0x390] sm:$0xff]
        %v3176 = vld [vmem:[#allocation2 + $0x398] sm:$0xff]
        %v3177 = vld [vmem:[#allocation2 + $0x3a0] sm:$0xff]
        %v3178 = vld [vmem:[#allocation2 + $0x3a8] sm:$0xff]
        %v3179 = vld [vmem:[#allocation2 + $0x3b0] sm:$0xff]
        %v3180 = vld [vmem:[#allocation2 + $0x3b8] sm:$0xff]
        %v3181 = vld [vmem:[#allocation2 + $0x3c0] sm:$0xff]
        %v3182 = vld [vmem:[#allocation2 + $0x3c8] sm:$0xff]
        %v3183 = vld [vmem:[#allocation2 + $0x3d0] sm:$0xff]
        %v3184 = vld [vmem:[#allocation2 + $0x3d8] sm:$0xff]
        %v3185 = vld [vmem:[#allocation2 + $0x3e0] sm:$0xff]
        %v3186 = vld [vmem:[#allocation2 + $0x3e8] sm:$0xff]
        %v3187 = vld [vmem:[#allocation2 + $0x3f0] sm:$0xff]
        %v3188 = vld [vmem:[#allocation2 + $0x3f8] sm:$0xff]
        %v3189 = vld [vmem:[#allocation2 + $0x400] sm:$0xff]
        %v3190 = vld [vmem:[#allocation2 + $0x408] sm:$0xff]
        %v3191 = vld [vmem:[#allocation2 + $0x410] sm:$0xff]
        %v3192 = vld [vmem:[#allocation2 + $0x418] sm:$0xff]
        %v3193 = vld [vmem:[#allocation2 + $0x420] sm:$0xff]
        %v3194 = vld [vmem:[#allocation2 + $0x428] sm:$0xff]
        %v3195 = vld [vmem:[#allocation2 + $0x430] sm:$0xff]
        %v3196 = vld [vmem:[#allocation2 + $0x438] sm:$0xff]
        %v3197 = vld [vmem:[#allocation2 + $0x440] sm:$0xff]
        %v3198 = vld [vmem:[#allocation2 + $0x448] sm:$0xff]
        %v3199 = vld [vmem:[#allocation2 + $0x450] sm:$0xff]
        %v3200 = vld [vmem:[#allocation2 + $0x458] sm:$0xff]
        %v3201 = vld [vmem:[#allocation2 + $0x460] sm:$0xff]
        %v3202 = vld [vmem:[#allocation2 + $0x468] sm:$0xff]
        %v3203 = vld [vmem:[#allocation2 + $0x470] sm:$0xff]
        %v3204 = vld [vmem:[#allocation2 + $0x478] sm:$0xff]
        %v3205 = vld [vmem:[#allocation2 + $0x480] sm:$0xff]
        %v3206 = vld [vmem:[#allocation2 + $0x488] sm:$0xff]
        %v3207 = vld [vmem:[#allocation2 + $0x490] sm:$0xff]
        %v3208 = vld [vmem:[#allocation2 + $0x498] sm:$0xff]
        %v3209 = vld [vmem:[#allocation2 + $0x4a0] sm:$0xff]
        %v3210 = vld [vmem:[#allocation2 + $0x4a8] sm:$0xff]
        %v3211 = vld [vmem:[#allocation2 + $0x4b0] sm:$0xff]
        %v3212 = vld [vmem:[#allocation2 + $0x4b8] sm:$0xff]
        %v3213 = vld [vmem:[#allocation2 + $0x4c0] sm:$0xff]
        %v3214 = vld [vmem:[#allocation2 + $0x4c8] sm:$0xff]
        %v3215 = vld [vmem:[#allocation2 + $0x4d0] sm:$0xff]
        %v3216 = vld [vmem:[#allocation2 + $0x4d8] sm:$0xff]
        %v3217 = vld [vmem:[#allocation2 + $0x4e0] sm:$0xff]
        %v3218 = vld [vmem:[#allocation2 + $0x4e8] sm:$0xff]
        %v3219 = vld [vmem:[#allocation2 + $0x4f0] sm:$0xff]
        %v3220 = vld [vmem:[#allocation2 + $0x4f8] sm:$0xff]
        %v3221 = vld [vmem:[#allocation2 + $0x500] sm:$0xff]
        %v3222 = vld [vmem:[#allocation2 + $0x508] sm:$0xff]
        %v3223 = vld [vmem:[#allocation2 + $0x510] sm:$0xff]
        %v3224 = vld [vmem:[#allocation2 + $0x518] sm:$0xff]
        %v3225 = vld [vmem:[#allocation2 + $0x520] sm:$0xff]
        %v3226 = vld [vmem:[#allocation2 + $0x528] sm:$0xff]
        %v3227 = vld [vmem:[#allocation2 + $0x530] sm:$0xff]
        %v3228 = vld [vmem:[#allocation2 + $0x538] sm:$0xff]
        %v3229 = vld [vmem:[#allocation2 + $0x540] sm:$0xff]
        %v3230 = vld [vmem:[#allocation2 + $0x548] sm:$0xff]
        %v3231 = vld [vmem:[#allocation2 + $0x550] sm:$0xff]
        %v3232 = vld [vmem:[#allocation2 + $0x558] sm:$0xff]
        %v3233 = vld [vmem:[#allocation2 + $0x560] sm:$0xff]
        %v3234 = vld [vmem:[#allocation2 + $0x568] sm:$0xff]
        %v3235 = vld [vmem:[#allocation2 + $0x570] sm:$0xff]
        %v3236 = vld [vmem:[#allocation2 + $0x578] sm:$0xff]
        %v3237 = vld [vmem:[#allocation2 + $0x580] sm:$0xff]
        %v3238 = vld [vmem:[#allocation2 + $0x588] sm:$0xff]
        %v3239 = vld [vmem:[#allocation2 + $0x590] sm:$0xff]
        %v3240 = vld [vmem:[#allocation2 + $0x598] sm:$0xff]
        %v3241 = vld [vmem:[#allocation2 + $0x5a0] sm:$0xff]
        %v3242 = vld [vmem:[#allocation2 + $0x5a8] sm:$0xff]
        %v3243 = vld [vmem:[#allocation2 + $0x5b0] sm:$0xff]
        %v3244 = vld [vmem:[#allocation2 + $0x5b8] sm:$0xff]
        %v3245 = vld [vmem:[#allocation2 + $0x5c0] sm:$0xff]
        %v3246 = vld [vmem:[#allocation2 + $0x5c8] sm:$0xff]
        %v3247 = vld [vmem:[#allocation2 + $0x5d0] sm:$0xff]
        %v3248 = vld [vmem:[#allocation2 + $0x5d8] sm:$0xff]
        %v3249 = vld [vmem:[#allocation2 + $0x5e0] sm:$0xff]
        %v3250 = vld [vmem:[#allocation2 + $0x5e8] sm:$0xff]
        %v3251 = vld [vmem:[#allocation2 + $0x5f0] sm:$0xff]
        %v3252 = vld [vmem:[#allocation2 + $0x5f8] sm:$0xff]
        %v3253 = vld [vmem:[#allocation2 + $0x600] sm:$0xff]
        %v3254 = vld [vmem:[#allocation2 + $0x608] sm:$0xff]
        %v3255 = vld [vmem:[#allocation2 + $0x610] sm:$0xff]
        %v3256 = vld [vmem:[#allocation2 + $0x618] sm:$0xff]
        %v3257 = vld [vmem:[#allocation2 + $0x620] sm:$0xff]
        %v3258 = vld [vmem:[#allocation2 + $0x628] sm:$0xff]
        %v3259 = vld [vmem:[#allocation2 + $0x630] sm:$0xff]
        %v3260 = vld [vmem:[#allocation2 + $0x638] sm:$0xff]
        %v3261 = vld [vmem:[#allocation2 + $0x640] sm:$0xff]
        %v3262 = vld [vmem:[#allocation2 + $0x648] sm:$0xff]
        %v3263 = vld [vmem:[#allocation2 + $0x650] sm:$0xff]
        %v3264 = vld [vmem:[#allocation2 + $0x658] sm:$0xff]
        %v3265 = vld [vmem:[#allocation2 + $0x660] sm:$0xff]
        %v3266 = vld [vmem:[#allocation2 + $0x668] sm:$0xff]
        %v3267 = vld [vmem:[#allocation2 + $0x670] sm:$0xff]
        %v3268 = vld [vmem:[#allocation2 + $0x678] sm:$0xff]
        %v3269 = vld [vmem:[#allocation2 + $0x680] sm:$0xff]
        %v3270 = vld [vmem:[#allocation2 + $0x688] sm:$0xff]
        %v3271 = vld [vmem:[#allocation2 + $0x690] sm:$0xff]
        %v3272 = vld [vmem:[#allocation2 + $0x698] sm:$0xff]
        %v3273 = vld [vmem:[#allocation2 + $0x6a0] sm:$0xff]
        %v3274 = vld [vmem:[#allocation2 + $0x6a8] sm:$0xff]
        %v3275 = vld [vmem:[#allocation2 + $0x6b0] sm:$0xff]
        %v3276 = vld [vmem:[#allocation2 + $0x6b8] sm:$0xff]
        %v3277 = vld [vmem:[#allocation2 + $0x6c0] sm:$0xff]
        %v3278 = vld [vmem:[#allocation2 + $0x6c8] sm:$0xff]
        %v3279 = vld [vmem:[#allocation2 + $0x6d0] sm:$0xff]
        %v3280 = vld [vmem:[#allocation2 + $0x6d8] sm:$0xff]
        %v3281 = vld [vmem:[#allocation2 + $0x6e0] sm:$0xff]
        %v3282 = vld [vmem:[#allocation2 + $0x6e8] sm:$0xff]
        %v3283 = vld [vmem:[#allocation2 + $0x6f0] sm:$0xff]
        %v3284 = vld [vmem:[#allocation2 + $0x6f8] sm:$0xff]
        %v3285 = vld [vmem:[#allocation2 + $0x700] sm:$0xff]
        %v3286 = vld [vmem:[#allocation2 + $0x708] sm:$0xff]
        %v3287 = vld [vmem:[#allocation2 + $0x710] sm:$0xff]
        %v3288 = vld [vmem:[#allocation2 + $0x718] sm:$0xff]
        %v3289 = vld [vmem:[#allocation2 + $0x720] sm:$0xff]
        %v3290 = vld [vmem:[#allocation2 + $0x728] sm:$0xff]
        %v3291 = vld [vmem:[#allocation2 + $0x730] sm:$0xff]
        %v3292 = vld [vmem:[#allocation2 + $0x738] sm:$0xff]
        %v3293 = vld [vmem:[#allocation2 + $0x740] sm:$0xff]
        %v3294 = vld [vmem:[#allocation2 + $0x748] sm:$0xff]
        %v3295 = vld [vmem:[#allocation2 + $0x750] sm:$0xff]
        %v3296 = vld [vmem:[#allocation2 + $0x758] sm:$0xff]
        %v3297 = vld [vmem:[#allocation2 + $0x760] sm:$0xff]
        %v3298 = vld [vmem:[#allocation2 + $0x768] sm:$0xff]
        %v3299 = vld [vmem:[#allocation2 + $0x770] sm:$0xff]
        %v3300 = vld [vmem:[#allocation2 + $0x778] sm:$0xff]
        %v3301 = vld [vmem:[#allocation2 + $0x780] sm:$0xff]
        %v3302 = vld [vmem:[#allocation2 + $0x788] sm:$0xff]
        %v3303 = vld [vmem:[#allocation2 + $0x790] sm:$0xff]
        %v3304 = vld [vmem:[#allocation2 + $0x798] sm:$0xff]
        %v3305 = vld [vmem:[#allocation2 + $0x7a0] sm:$0xff]
        %v3306 = vld [vmem:[#allocation2 + $0x7a8] sm:$0xff]
        %v3307 = vld [vmem:[#allocation2 + $0x7b0] sm:$0xff]
        %v3308 = vld [vmem:[#allocation2 + $0x7b8] sm:$0xff]
        %v3309 = vld [vmem:[#allocation2 + $0x7c0] sm:$0xff]
        %v3310 = vld [vmem:[#allocation2 + $0x7c8] sm:$0xff]
        %v3311 = vld [vmem:[#allocation2 + $0x7d0] sm:$0xff]
        %v3312 = vld [vmem:[#allocation2 + $0x7d8] sm:$0xff]
        %v3313 = vld [vmem:[#allocation2 + $0x7e0] sm:$0xff]
        %v3314 = vld [vmem:[#allocation2 + $0x7e8] sm:$0xff]
        %v3315 = vld [vmem:[#allocation2 + $0x7f0] sm:$0xff]
        %v3316 = vld [vmem:[#allocation2 + $0x7f8] sm:$0xff]
        %v3317 = vld [vmem:[#allocation2 + $0x800] sm:$0xff]
        %v3318 = vld [vmem:[#allocation2 + $0x808] sm:$0xff]
        %v3319 = vld [vmem:[#allocation2 + $0x810] sm:$0xff]
        %v3320 = vld [vmem:[#allocation2 + $0x818] sm:$0xff]
        %v3321 = vld [vmem:[#allocation2 + $0x820] sm:$0xff]
        %v3322 = vld [vmem:[#allocation2 + $0x828] sm:$0xff]
        %v3323 = vld [vmem:[#allocation2 + $0x830] sm:$0xff]
        %v3324 = vld [vmem:[#allocation2 + $0x838] sm:$0xff]
        %v3325 = vld [vmem:[#allocation2 + $0x840] sm:$0xff]
        %v3326 = vld [vmem:[#allocation2 + $0x848] sm:$0xff]
        %v3327 = vld [vmem:[#allocation2 + $0x850] sm:$0xff]
        %v3328 = vld [vmem:[#allocation2 + $0x858] sm:$0xff]
        %v3329 = vld [vmem:[#allocation2 + $0x860] sm:$0xff]
        %v3330 = vld [vmem:[#allocation2 + $0x868] sm:$0xff]
        %v3331 = vld [vmem:[#allocation2 + $0x870] sm:$0xff]
        %v3332 = vld [vmem:[#allocation2 + $0x878] sm:$0xff]
        %v3333 = vld [vmem:[#allocation2 + $0x880] sm:$0xff]
        %v3334 = vld [vmem:[#allocation2 + $0x888] sm:$0xff]
        %v3335 = vld [vmem:[#allocation2 + $0x890] sm:$0xff]
        %v3336 = vld [vmem:[#allocation2 + $0x898] sm:$0xff]
        %v3337 = vld [vmem:[#allocation2 + $0x8a0] sm:$0xff]
        %v3338 = vld [vmem:[#allocation2 + $0x8a8] sm:$0xff]
        %v3339 = vld [vmem:[#allocation2 + $0x8b0] sm:$0xff]
        %v3340 = vld [vmem:[#allocation2 + $0x8b8] sm:$0xff]
        %v3341 = vld [vmem:[#allocation2 + $0x8c0] sm:$0xff]
        %v3342 = vld [vmem:[#allocation2 + $0x8c8] sm:$0xff]
        %v3343 = vld [vmem:[#allocation2 + $0x8d0] sm:$0xff]
        %v3344 = vld [vmem:[#allocation2 + $0x8d8] sm:$0xff]
        %v3345 = vld [vmem:[#allocation2 + $0x8e0] sm:$0xff]
        %v3346 = vld [vmem:[#allocation2 + $0x8e8] sm:$0xff]
        %v3347 = vld [vmem:[#allocation2 + $0x8f0] sm:$0xff]
        %v3348 = vld [vmem:[#allocation2 + $0x8f8] sm:$0xff]
        %v3349 = vld [vmem:[#allocation4] sm:$0xff]
        %v3350 = vld [vmem:[#allocation4 + $0x8] sm:$0xff]
        %v3351 = vld [vmem:[#allocation4 + $0x10] sm:$0xff]
        %v3352 = vld [vmem:[#allocation4 + $0x18] sm:$0xff]
        %v3353 = vld [vmem:[#allocation4 + $0x20] sm:$0xff]
        %v3354 = vld [vmem:[#allocation4 + $0x28] sm:$0xff]
        %v3355 = vld [vmem:[#allocation4 + $0x30] sm:$0xff]
        %v3356 = vld [vmem:[#allocation4 + $0x38] sm:$0xff]
        %v3357 = vld [vmem:[#allocation4 + $0x40] sm:$0xff]
        %v3358 = vld [vmem:[#allocation4 + $0x48] sm:$0xff]
        %v3359 = vld [vmem:[#allocation4 + $0x50] sm:$0xff]
        %v3360 = vld [vmem:[#allocation4 + $0x58] sm:$0xff]
        %v3361 = vld [vmem:[#allocation4 + $0x60] sm:$0xff]
        %v3362 = vld [vmem:[#allocation4 + $0x68] sm:$0xff]
        %v3363 = vld [vmem:[#allocation4 + $0x70] sm:$0xff]
        %v3364 = vld [vmem:[#allocation4 + $0x78] sm:$0xff]
        %v3365 = vld [vmem:[#allocation4 + $0x80] sm:$0xff]
        %v3366 = vld [vmem:[#allocation4 + $0x88] sm:$0xff]
        %v3367 = vld [vmem:[#allocation4 + $0x90] sm:$0xff]
        %v3368 = vld [vmem:[#allocation4 + $0x98] sm:$0xff]
        %v3369 = vld [vmem:[#allocation4 + $0xa0] sm:$0xff]
        %v3370 = vld [vmem:[#allocation4 + $0xa8] sm:$0xff]
        %v3371 = vld [vmem:[#allocation4 + $0xb0] sm:$0xff]
        %v3372 = vld [vmem:[#allocation4 + $0xb8] sm:$0xff]
        %v3373 = vld [vmem:[#allocation4 + $0xc0] sm:$0xff]
        %v3374 = vld [vmem:[#allocation4 + $0xc8] sm:$0xff]
        %v3375 = vld [vmem:[#allocation4 + $0xd0] sm:$0xff]
        %v3376 = vld [vmem:[#allocation4 + $0xd8] sm:$0xff]
        %v3377 = vld [vmem:[#allocation4 + $0xe0] sm:$0xff]
        %v3378 = vld [vmem:[#allocation4 + $0xe8] sm:$0xff]
        %v3379 = vld [vmem:[#allocation4 + $0xf0] sm:$0xff]
        %v3380 = vld [vmem:[#allocation4 + $0xf8] sm:$0xff]
        %v3381 = vld [vmem:[#allocation4 + $0x100] sm:$0xff]
        %v3382 = vld [vmem:[#allocation4 + $0x108] sm:$0xff]
        %v3383 = vld [vmem:[#allocation4 + $0x110] sm:$0xff]
        %v3384 = vld [vmem:[#allocation4 + $0x118] sm:$0xff]
        %v3385 = vld [vmem:[#allocation4 + $0x120] sm:$0xff]
        %v3386 = vld [vmem:[#allocation4 + $0x128] sm:$0xff]
        %v3387 = vld [vmem:[#allocation4 + $0x130] sm:$0xff]
        %v3388 = vld [vmem:[#allocation4 + $0x138] sm:$0xff]
        %v3389 = vld [vmem:[#allocation4 + $0x140] sm:$0xff]
        %v3390 = vld [vmem:[#allocation4 + $0x148] sm:$0xff]
        %v3391 = vld [vmem:[#allocation4 + $0x150] sm:$0xff]
        %v3392 = vld [vmem:[#allocation4 + $0x158] sm:$0xff]
        %v3393 = vld [vmem:[#allocation4 + $0x160] sm:$0xff]
        %v3394 = vld [vmem:[#allocation4 + $0x168] sm:$0xff]
        %v3395 = vld [vmem:[#allocation4 + $0x170] sm:$0xff]
        %v3396 = vld [vmem:[#allocation4 + $0x178] sm:$0xff]
        %v3397 = vld [vmem:[#allocation4 + $0x180] sm:$0xff]
        %v3398 = vld [vmem:[#allocation4 + $0x188] sm:$0xff]
        %v3399 = vld [vmem:[#allocation4 + $0x190] sm:$0xff]
        %v3400 = vld [vmem:[#allocation4 + $0x198] sm:$0xff]
        %v3401 = vld [vmem:[#allocation4 + $0x1a0] sm:$0xff]
        %v3402 = vld [vmem:[#allocation4 + $0x1a8] sm:$0xff]
        %v3403 = vld [vmem:[#allocation4 + $0x1b0] sm:$0xff]
        %v3404 = vld [vmem:[#allocation4 + $0x1b8] sm:$0xff]
        %v3405 = vld [vmem:[#allocation4 + $0x1c0] sm:$0xff]
        %v3406 = vld [vmem:[#allocation4 + $0x1c8] sm:$0xff]
        %v3407 = vld [vmem:[#allocation4 + $0x1d0] sm:$0xff]
        %v3408 = vld [vmem:[#allocation4 + $0x1d8] sm:$0xff]
        %v3409 = vld [vmem:[#allocation4 + $0x1e0] sm:$0xff]
        %v3410 = vld [vmem:[#allocation4 + $0x1e8] sm:$0xff]
        %v3411 = vld [vmem:[#allocation4 + $0x1f0] sm:$0xff]
        %v3412 = vld [vmem:[#allocation4 + $0x1f8] sm:$0xff]
        %v3413 = vld [vmem:[#allocation4 + $0x200] sm:$0xff]
        %v3414 = vld [vmem:[#allocation4 + $0x208] sm:$0xff]
        %v3415 = vld [vmem:[#allocation4 + $0x210] sm:$0xff]
        %v3416 = vld [vmem:[#allocation4 + $0x218] sm:$0xff]
        %v3417 = vld [vmem:[#allocation4 + $0x220] sm:$0xff]
        %v3418 = vld [vmem:[#allocation4 + $0x228] sm:$0xff]
        %v3419 = vld [vmem:[#allocation4 + $0x230] sm:$0xff]
        %v3420 = vld [vmem:[#allocation4 + $0x238] sm:$0xff]
        %v3421 = vld [vmem:[#allocation4 + $0x240] sm:$0xff]
        %v3422 = vld [vmem:[#allocation4 + $0x248] sm:$0xff]
        %v3423 = vld [vmem:[#allocation4 + $0x250] sm:$0xff]
        %v3424 = vld [vmem:[#allocation4 + $0x258] sm:$0xff]
        %v3425 = vld [vmem:[#allocation4 + $0x260] sm:$0xff]
        %v3426 = vld [vmem:[#allocation4 + $0x268] sm:$0xff]
        %v3427 = vld [vmem:[#allocation4 + $0x270] sm:$0xff]
        %v3428 = vld [vmem:[#allocation4 + $0x278] sm:$0xff]
        %v3429 = vld [vmem:[#allocation4 + $0x280] sm:$0xff]
        %v3430 = vld [vmem:[#allocation4 + $0x288] sm:$0xff]
        %v3431 = vld [vmem:[#allocation4 + $0x290] sm:$0xff]
        %v3432 = vld [vmem:[#allocation4 + $0x298] sm:$0xff]
        %v3433 = vld [vmem:[#allocation4 + $0x2a0] sm:$0xff]
        %v3434 = vld [vmem:[#allocation4 + $0x2a8] sm:$0xff]
        %v3435 = vld [vmem:[#allocation4 + $0x2b0] sm:$0xff]
        %v3436 = vld [vmem:[#allocation4 + $0x2b8] sm:$0xff]
        %v3437 = vld [vmem:[#allocation4 + $0x2c0] sm:$0xff]
        %v3438 = vld [vmem:[#allocation4 + $0x2c8] sm:$0xff]
        %v3439 = vld [vmem:[#allocation4 + $0x2d0] sm:$0xff]
        %v3440 = vld [vmem:[#allocation4 + $0x2d8] sm:$0xff]
        %v3441 = vld [vmem:[#allocation4 + $0x2e0] sm:$0xff]
        %v3442 = vld [vmem:[#allocation4 + $0x2e8] sm:$0xff]
        %v3443 = vld [vmem:[#allocation4 + $0x2f0] sm:$0xff]
        %v3444 = vld [vmem:[#allocation4 + $0x2f8] sm:$0xff]
        %v3445 = vld [vmem:[#allocation4 + $0x300] sm:$0xff]
        %v3446 = vld [vmem:[#allocation4 + $0x308] sm:$0xff]
        %v3447 = vld [vmem:[#allocation4 + $0x310] sm:$0xff]
        %v3448 = vld [vmem:[#allocation4 + $0x318] sm:$0xff]
        %v3449 = vld [vmem:[#allocation4 + $0x320] sm:$0xff]
        %v3450 = vld [vmem:[#allocation4 + $0x328] sm:$0xff]
        %v3451 = vld [vmem:[#allocation4 + $0x330] sm:$0xff]
        %v3452 = vld [vmem:[#allocation4 + $0x338] sm:$0xff]
        %v3453 = vld [vmem:[#allocation4 + $0x340] sm:$0xff]
        %v3454 = vld [vmem:[#allocation4 + $0x348] sm:$0xff]
        %v3455 = vld [vmem:[#allocation4 + $0x350] sm:$0xff]
        %v3456 = vld [vmem:[#allocation4 + $0x358] sm:$0xff]
        %v3457 = vld [vmem:[#allocation4 + $0x360] sm:$0xff]
        %v3458 = vld [vmem:[#allocation4 + $0x368] sm:$0xff]
        %v3459 = vld [vmem:[#allocation4 + $0x370] sm:$0xff]
        %v3460 = vld [vmem:[#allocation4 + $0x378] sm:$0xff]
        %v3461 = vld [vmem:[#allocation4 + $0x380] sm:$0xff]
        %v3462 = vld [vmem:[#allocation4 + $0x388] sm:$0xff]
        %v3463 = vld [vmem:[#allocation4 + $0x390] sm:$0xff]
        %v3464 = vld [vmem:[#allocation4 + $0x398] sm:$0xff]
        %v3465 = vld [vmem:[#allocation4 + $0x3a0] sm:$0xff]
        %v3466 = vld [vmem:[#allocation4 + $0x3a8] sm:$0xff]
        %v3467 = vld [vmem:[#allocation4 + $0x3b0] sm:$0xff]
        %v3468 = vld [vmem:[#allocation4 + $0x3b8] sm:$0xff]
        %v3469 = vld [vmem:[#allocation4 + $0x3c0] sm:$0xff]
        %v3470 = vld [vmem:[#allocation4 + $0x3c8] sm:$0xff]
        %v3471 = vld [vmem:[#allocation4 + $0x3d0] sm:$0xff]
        %v3472 = vld [vmem:[#allocation4 + $0x3d8] sm:$0xff]
        %v3473 = vld [vmem:[#allocation4 + $0x3e0] sm:$0xff]
        %v3474 = vld [vmem:[#allocation4 + $0x3e8] sm:$0xff]
        %v3475 = vld [vmem:[#allocation4 + $0x3f0] sm:$0xff]
        %v3476 = vld [vmem:[#allocation4 + $0x3f8] sm:$0xff]
        %v3477 = vld [vmem:[#allocation4 + $0x400] sm:$0xff]
        %v3478 = vld [vmem:[#allocation4 + $0x408] sm:$0xff]
        %v3479 = vld [vmem:[#allocation4 + $0x410] sm:$0xff]
        %v3480 = vld [vmem:[#allocation4 + $0x418] sm:$0xff]
        %v3481 = vld [vmem:[#allocation4 + $0x420] sm:$0xff]
        %v3482 = vld [vmem:[#allocation4 + $0x428] sm:$0xff]
        %v3483 = vld [vmem:[#allocation4 + $0x430] sm:$0xff]
        %v3484 = vld [vmem:[#allocation4 + $0x438] sm:$0xff]
        %v3485 = vld [vmem:[#allocation4 + $0x440] sm:$0xff]
        %v3486 = vld [vmem:[#allocation4 + $0x448] sm:$0xff]
        %v3487 = vld [vmem:[#allocation4 + $0x450] sm:$0xff]
        %v3488 = vld [vmem:[#allocation4 + $0x458] sm:$0xff]
        %v3489 = vld [vmem:[#allocation4 + $0x460] sm:$0xff]
        %v3490 = vld [vmem:[#allocation4 + $0x468] sm:$0xff]
        %v3491 = vld [vmem:[#allocation4 + $0x470] sm:$0xff]
        %v3492 = vld [vmem:[#allocation4 + $0x478] sm:$0xff]
        %v3493 = vld [vmem:[%s4] sm:$0x1]
        %v3495 = vlaneseq
        %v3496 = vshrl.u32 %v3495, 7
        %v3497 = vsub.s32 0, %v3496
        %v3498 = vrot.slane %v3493, %v3497
        %3500 = vmatprep.subr.mxu0 0.0
        %3501 = vmatpush1.msra.mxu0 %v3349
        %3502 = vmatprep.subr.mxu0 0.0
        %3503 = vmatpush1.msra.mxu0 %v3350
        %3504 = vmatprep.subr.mxu0 0.0
        %3505 = vmatpush1.msra.mxu0 %v3351
        %3506 = vmatprep.subr.mxu0 0.0
        %3507 = vmatpush1.msra.mxu0 %v3352
        %3508 = vmatprep.subr.mxu0 0.0
        %3509 = vmatpush1.msra.mxu0 %v3353
        %3510 = vmatprep.subr.mxu0 0.0
        %3511 = vmatpush1.msra.mxu0 %v3354
        %3512 = vmatprep.subr.mxu0 0.0
        %3513 = vmatpush1.msra.mxu0 %v3355
        %3514 = vmatprep.subr.mxu0 0.0
        %3515 = vmatpush1.msra.mxu0 %v3356
        %3516 = vmatprep.subr.mxu0 0.0
        %3517 = vmatpush1.msra.mxu0 %v3357
        %3518 = vmatprep.subr.mxu0 0.0
        %3519 = vmatpush1.msra.mxu0 %v3358
        %3520 = vmatprep.subr.mxu0 0.0
        %3521 = vmatpush1.msra.mxu0 %v3359
        %3522 = vmatprep.subr.mxu0 0.0
        %3523 = vmatpush1.msra.mxu0 %v3360
        %3524 = vmatprep.subr.mxu0 0.0
        %3525 = vmatpush1.msra.mxu0 %v3361
        %3526 = vmatprep.subr.mxu0 0.0
        %3527 = vmatpush1.msra.mxu0 %v3362
        %3528 = vmatprep.subr.mxu0 0.0
        %3529 = vmatpush1.msra.mxu0 %v3363
        %3530 = vmatprep.subr.mxu0 0.0
        %3531 = vmatpush1.msra.mxu0 %v3364
        %3532 = vmatprep.subr.mxu0 0.0
        %3533 = vmatpush1.msra.mxu0 %v3365
        %3534 = vmatprep.subr.mxu0 0.0
        %3535 = vmatpush1.msra.mxu0 %v3366
        %3536 = vmatprep.subr.mxu0 0.0
        %3537 = vmatpush1.msra.mxu0 %v3367
        %3538 = vmatprep.subr.mxu0 0.0
        %3539 = vmatpush1.msra.mxu0 %v3368
        %3540 = vmatprep.subr.mxu0 0.0
        %3541 = vmatpush1.msra.mxu0 %v3369
        %3542 = vmatprep.subr.mxu0 0.0
        %3543 = vmatpush1.msra.mxu0 %v3370
        %3544 = vmatprep.subr.mxu0 0.0
        %3545 = vmatpush1.msra.mxu0 %v3371
        %3546 = vmatprep.subr.mxu0 0.0
        %3547 = vmatpush1.msra.mxu0 %v3372
        %3548 = vmatprep.subr.mxu0 0.0
        %3549 = vmatpush1.msra.mxu0 %v3373
        %3550 = vmatprep.subr.mxu0 0.0
        %3551 = vmatpush1.msra.mxu0 %v3374
        %3552 = vmatprep.subr.mxu0 0.0
        %3553 = vmatpush1.msra.mxu0 %v3375
        %3554 = vmatprep.subr.mxu0 0.0
        %3555 = vmatpush1.msra.mxu0 %v3376
        %3556 = vmatprep.subr.mxu0 0.0
        %3557 = vmatpush1.msra.mxu0 %v3377
        %3558 = vmatprep.subr.mxu0 0.0
        %3559 = vmatpush1.msra.mxu0 %v3378
        %3560 = vmatprep.subr.mxu0 0.0
        %3561 = vmatpush1.msra.mxu0 %v3379
        %3562 = vmatprep.subr.mxu0 0.0
        %3563 = vmatpush1.msra.mxu0 %v3380
        %3564 = vmatprep.mubr.f32.mxu0 %v3062
        %3565 = vmatmul.mubr.f32.gmra.mrb[0].mxu0 %v3061
        %v3566 = vpop.f32.mrb[0].mxu0
        %v3567 = vadd.f32 %v3498, %v3566
        %v3568 = vpop.f32.mrb[0].mxu0
        %3569 = vmatprep.mubr.f32.mxu0 %v3071
        %3570 = vmatmul.mubr.f32.gmra.mrb[0].mxu0 %v3070
        %v3571 = vpop.f32.mrb[0].mxu0
        %v3572 = vadd.f32 %v3498, %v3571
        %v3573 = vpop.f32.mrb[0].mxu0
        %3574 = vmatprep.mubr.f32.mxu0 %v3080
        %3575 = vmatmul.mubr.f32.gmra.mrb[0].mxu0 %v3079
        %v3576 = vpop.f32.mrb[0].mxu0
        %v3577 = vadd.f32 %v3498, %v3576
        %v3578 = vpop.f32.mrb[0].mxu0
        %3579 = vmatprep.mubr.f32.mxu0 %v3089
        %3580 = vmatmul.mubr.f32.gmra.mrb[0].mxu0 %v3088
        %v3581 = vpop.f32.mrb[0].mxu0
        %v3582 = vadd.f32 %v3498, %v3581
        %v3583 = vpop.f32.mrb[0].mxu0
        %3584 = vmatprep.mubr.f32.mxu0 %v3098
        %3585 = vmatmul.mubr.f32.gmra.mrb[0].mxu0 %v3097
        %v3586 = vpop.f32.mrb[0].mxu0
        %v3587 = vadd.f32 %v3498, %v3586
        %v3588 = vpop.f32.mrb[0].mxu0
        %3589 = vmatprep.mubr.f32.mxu0 %v3107
        %3590 = vmatmul.mubr.f32.gmra.mrb[0].mxu0 %v3106
        %v3591 = vpop.f32.mrb[0].mxu0
        %v3592 = vadd.f32 %v3498, %v3591
        %v3593 = vpop.f32.mrb[0].mxu0
        %3594 = vmatprep.mubr.f32.mxu0 %v3116
        %3595 = vmatmul.mubr.f32.gmra.mrb[0].mxu0 %v3115
        %v3596 = vpop.f32.mrb[0].mxu0
        %v3597 = vadd.f32 %v3498, %v3596
        %v3598 = vpop.f32.mrb[0].mxu0
        %3599 = vmatprep.mubr.f32.mxu0 %v3125
        %3600 = vmatmul.mubr.f32.gmra.mrb[0].mxu0 %v3124
        %v3601 = vpop.f32.mrb[0].mxu0
        %v3602 = vadd.f32 %v3498, %v3601
        %v3603 = vpop.f32.mrb[0].mxu0
        %3604 = vmatprep.mubr.f32.mxu0 %v3134
        %3605 = vmatmul.mubr.f32.gmra.mrb[0].mxu0 %v3133
        %v3606 = vpop.f32.mrb[0].mxu0
        %v3607 = vadd.f32 %v3498, %v3606
        %v3608 = vpop.f32.mrb[0].mxu0
        %3609 = vmatprep.mubr.f32.mxu0 %v3143
        %3610 = vmatmul.mubr.f32.gmra.mrb[0].mxu0 %v3142
        %v3611 = vpop.f32.mrb[0].mxu0
        %v3612 = vadd.f32 %v3498, %v3611
        %v3613 = vpop.f32.mrb[0].mxu0
        %3614 = vmatprep.mubr.f32.mxu0 %v3152
        %3615 = vmatmul.mubr.f32.gmra.mrb[0].mxu0 %v3151
        %v3616 = vpop.f32.mrb[0].mxu0
        %v3617 = vadd.f32 %v3498, %v3616
        %v3618 = vpop.f32.mrb[0].mxu0
        %3619 = vmatprep.mubr.f32.mxu0 %v3161
        %3620 = vmatmul.mubr.f32.gmra.mrb[0].mxu0 %v3160
        %v3621 = vpop.f32.mrb[0].mxu0
        %v3622 = vadd.f32 %v3498, %v3621
        %v3623 = vpop.f32.mrb[0].mxu0
        %3624 = vmatprep.mubr.f32.mxu0 %v3170
        %3625 = vmatmul.mubr.f32.gmra.mrb[0].mxu0 %v3169
        %v3626 = vpop.f32.mrb[0].mxu0
        %v3627 = vadd.f32 %v3498, %v3626
        %v3628 = vpop.f32.mrb[0].mxu0
        %3629 = vmatprep.mubr.f32.mxu0 %v3179
        %3630 = vmatmul.mubr.f32.gmra.mrb[0].mxu0 %v3178
        %v3631 = vpop.f32.mrb[0].mxu0
        %v3632 = vadd.f32 %v3498, %v3631
        %v3633 = vpop.f32.mrb[0].mxu0
        %3634 = vmatprep.mubr.f32.mxu0 %v3188
        %3635 = vmatmul.mubr.f32.gmra.mrb[0].mxu0 %v3187
        %v3636 = vpop.f32.mrb[0].mxu0
        %v3637 = vadd.f32 %v3498, %v3636
        %v3638 = vpop.f32.mrb[0].mxu0
        %3639 = vmatprep.mubr.f32.mxu0 %v3197
        %3640 = vmatmul.mubr.f32.gmra.mrb[0].mxu0 %v3196
        %v3641 = vpop.f32.mrb[0].mxu0
        %v3642 = vadd.f32 %v3498, %v3641
        %v3643 = vpop.f32.mrb[0].mxu0
        %3644 = vmatprep.mubr.f32.mxu0 %v3206
        %3645 = vmatmul.mubr.f32.gmra.mrb[0].mxu0 %v3205
        %v3646 = vpop.f32.mrb[0].mxu0
        %v3647 = vadd.f32 %v3498, %v3646
        %v3648 = vpop.f32.mrb[0].mxu0
        %3649 = vmatprep.mubr.f32.mxu0 %v3215
        %3650 = vmatmul.mubr.f32.gmra.mrb[0].mxu0 %v3214
        %v3651 = vpop.f32.mrb[0].mxu0
        %v3652 = vadd.f32 %v3498, %v3651
        %v3653 = vpop.f32.mrb[0].mxu0
        %3654 = vmatprep.mubr.f32.mxu0 %v3224
        %3655 = vmatmul.mubr.f32.gmra.mrb[0].mxu0 %v3223
        %v3656 = vpop.f32.mrb[0].mxu0
        %v3657 = vadd.f32 %v3498, %v3656
        %v3658 = vpop.f32.mrb[0].mxu0
        %3659 = vmatprep.mubr.f32.mxu0 %v3233
        %3660 = vmatmul.mubr.f32.gmra.mrb[0].mxu0 %v3232
        %v3661 = vpop.f32.mrb[0].mxu0
        %v3662 = vadd.f32 %v3498, %v3661
        %v3663 = vpop.f32.mrb[0].mxu0
        %3664 = vmatprep.mubr.f32.mxu0 %v3242
        %3665 = vmatmul.mubr.f32.gmra.mrb[0].mxu0 %v3241
        %v3666 = vpop.f32.mrb[0].mxu0
        %v3667 = vadd.f32 %v3498, %v3666
        %v3668 = vpop.f32.mrb[0].mxu0
        %3669 = vmatprep.mubr.f32.mxu0 %v3251
        %3670 = vmatmul.mubr.f32.gmra.mrb[0].mxu0 %v3250
        %v3671 = vpop.f32.mrb[0].mxu0
        %v3672 = vadd.f32 %v3498, %v3671
        %v3673 = vpop.f32.mrb[0].mxu0
        %3674 = vmatprep.mubr.f32.mxu0 %v3260
        %3675 = vmatmul.mubr.f32.gmra.mrb[0].mxu0 %v3259
        %v3676 = vpop.f32.mrb[0].mxu0
        %v3677 = vadd.f32 %v3498, %v3676
        %v3678 = vpop.f32.mrb[0].mxu0
        %3679 = vmatprep.mubr.f32.mxu0 %v3269
        %3680 = vmatmul.mubr.f32.gmra.mrb[0].mxu0 %v3268
        %v3681 = vpop.f32.mrb[0].mxu0
        %v3682 = vadd.f32 %v3498, %v3681
        %v3683 = vpop.f32.mrb[0].mxu0
        %3684 = vmatprep.mubr.f32.mxu0 %v3278
        %3685 = vmatmul.mubr.f32.gmra.mrb[0].mxu0 %v3277
        %v3686 = vpop.f32.mrb[0].mxu0
        %v3687 = vadd.f32 %v3498, %v3686
        %v3688 = vpop.f32.mrb[0].mxu0
        %3689 = vmatprep.mubr.f32.mxu0 %v3287
        %3690 = vmatmul.mubr.f32.gmra.mrb[0].mxu0 %v3286
        %v3691 = vpop.f32.mrb[0].mxu0
        %v3692 = vadd.f32 %v3498, %v3691
        %v3693 = vpop.f32.mrb[0].mxu0
        %3694 = vmatprep.mubr.f32.mxu0 %v3296
        %3695 = vmatmul.mubr.f32.gmra.mrb[0].mxu0 %v3295
        %v3696 = vpop.f32.mrb[0].mxu0
        %v3697 = vadd.f32 %v3498, %v3696
        %v3698 = vpop.f32.mrb[0].mxu0
        %3699 = vmatprep.mubr.f32.mxu0 %v3305
        %3700 = vmatmul.mubr.f32.gmra.mrb[0].mxu0 %v3304
        %v3701 = vpop.f32.mrb[0].mxu0
        %v3702 = vadd.f32 %v3498, %v3701
        %v3703 = vpop.f32.mrb[0].mxu0
        %3704 = vmatprep.mubr.f32.mxu0 %v3314
        %3705 = vmatmul.mubr.f32.gmra.mrb[0].mxu0 %v3313
        %v3706 = vpop.f32.mrb[0].mxu0
        %v3707 = vadd.f32 %v3498, %v3706
        %v3708 = vpop.f32.mrb[0].mxu0
        %3709 = vmatprep.mubr.f32.mxu0 %v3323
        %3710 = vmatmul.mubr.f32.gmra.mrb[0].mxu0 %v3322
        %v3711 = vpop.f32.mrb[0].mxu0
        %v3712 = vadd.f32 %v3498, %v3711
        %v3713 = vpop.f32.mrb[0].mxu0
        %3714 = vmatprep.mubr.f32.mxu0 %v3332
        %3715 = vmatmul.mubr.f32.gmra.mrb[0].mxu0 %v3331
        %v3716 = vpop.f32.mrb[0].mxu0
        %v3717 = vadd.f32 %v3498, %v3716
        %v3718 = vpop.f32.mrb[0].mxu0
        %3719 = vmatprep.mubr.f32.mxu0 %v3341
        %3720 = vmatmul.mubr.f32.gmra.mrb[0].mxu0 %v3340
        %v3721 = vpop.f32.mrb[0].mxu0
        %v3722 = vadd.f32 %v3498, %v3721
        %v3723 = vpop.f32.mrb[0].mxu0
        %3724 = vdwg.mxu0
        %3725 = vmatprep.subr.mxu0 0.0
        %3726 = vmatpush1.msra.mxu0 %v3381
        %3727 = vmatprep.subr.mxu0 0.0
        %3728 = vmatpush1.msra.mxu0 %v3382
        %3729 = vmatprep.subr.mxu0 0.0
        %3730 = vmatpush1.msra.mxu0 %v3383
        %3731 = vmatprep.subr.mxu0 0.0
        %3732 = vmatpush1.msra.mxu0 %v3384
        %3733 = vmatprep.subr.mxu0 0.0
        %3734 = vmatpush1.msra.mxu0 %v3385
        %3735 = vmatprep.subr.mxu0 0.0
        %3736 = vmatpush1.msra.mxu0 %v3386
        %3737 = vmatprep.subr.mxu0 0.0
        %3738 = vmatpush1.msra.mxu0 %v3387
        %3739 = vmatprep.subr.mxu0 0.0
        %3740 = vmatpush1.msra.mxu0 %v3388
        %3741 = vmatprep.subr.mxu0 0.0
        %3742 = vmatpush1.msra.mxu0 %v3389
        %3743 = vmatprep.subr.mxu0 0.0
        %3744 = vmatpush1.msra.mxu0 %v3390
        %3745 = vmatprep.subr.mxu0 0.0
        %3746 = vmatpush1.msra.mxu0 %v3391
        %3747 = vmatprep.subr.mxu0 0.0
        %3748 = vmatpush1.msra.mxu0 %v3392
        %3749 = vmatprep.subr.mxu0 0.0
        %3750 = vmatpush1.msra.mxu0 %v3393
        %3751 = vmatprep.subr.mxu0 0.0
        %3752 = vmatpush1.msra.mxu0 %v3394
        %3753 = vmatprep.subr.mxu0 0.0
        %3754 = vmatpush1.msra.mxu0 %v3395
        %3755 = vmatprep.subr.mxu0 0.0
        %3756 = vmatpush1.msra.mxu0 %v3396
        %3757 = vmatprep.subr.mxu0 0.0
        %3758 = vmatpush1.msra.mxu0 %v3397
        %3759 = vmatprep.subr.mxu0 0.0
        %3760 = vmatpush1.msra.mxu0 %v3398
        %3761 = vmatprep.subr.mxu0 0.0
        %3762 = vmatpush1.msra.mxu0 %v3399
        %3763 = vmatprep.subr.mxu0 0.0
        %3764 = vmatpush1.msra.mxu0 %v3400
        %3765 = vmatprep.subr.mxu0 0.0
        %3766 = vmatpush1.msra.mxu0 %v3401
        %3767 = vmatprep.subr.mxu0 0.0
        %3768 = vmatpush1.msra.mxu0 %v3402
        %3769 = vmatprep.subr.mxu0 0.0
        %3770 = vmatpush1.msra.mxu0 %v3403
        %3771 = vmatprep.subr.mxu0 0.0
        %3772 = vmatpush1.msra.mxu0 %v3404
        %3773 = vmatprep.subr.mxu0 0.0
        %3774 = vmatpush1.msra.mxu0 %v3405
        %3775 = vmatprep.subr.mxu0 0.0
        %3776 = vmatpush1.msra.mxu0 %v3406
        %3777 = vmatprep.subr.mxu0 0.0
        %3778 = vmatpush1.msra.mxu0 %v3407
        %3779 = vmatprep.subr.mxu0 0.0
        %3780 = vmatpush1.msra.mxu0 %v3408
        %3781 = vmatprep.subr.mxu0 0.0
        %3782 = vmatpush1.msra.mxu0 %v3409
        %3783 = vmatprep.subr.mxu0 0.0
        %3784 = vmatpush1.msra.mxu0 %v3410
        %3785 = vmatprep.subr.mxu0 0.0
        %3786 = vmatpush1.msra.mxu0 %v3411
        %3787 = vmatprep.subr.mxu0 0.0
        %3788 = vmatpush1.msra.mxu0 %v3412
        %3789 = vmatprep.mubr.f32.mxu0 %v3064
        %3790 = vmatmul.mubr.f32.gmra.mrb[0].mxu0 %v3063
        %v3791 = vpop.f32.mrb[0].mxu0
        %v3792 = vadd.f32 %v3567, %v3791
        %v3793 = vpop.f32.mrb[0].mxu0
        %3794 = vmatprep.mubr.f32.mxu0 %v3073
        %3795 = vmatmul.mubr.f32.gmra.mrb[0].mxu0 %v3072
        %v3796 = vpop.f32.mrb[0].mxu0
        %v3797 = vadd.f32 %v3572, %v3796
        %v3798 = vpop.f32.mrb[0].mxu0
        %3799 = vmatprep.mubr.f32.mxu0 %v3082
        %3800 = vmatmul.mubr.f32.gmra.mrb[0].mxu0 %v3081
        %v3801 = vpop.f32.mrb[0].mxu0
        %v3802 = vadd.f32 %v3577, %v3801
        %v3803 = vpop.f32.mrb[0].mxu0
        %3804 = vmatprep.mubr.f32.mxu0 %v3091
        %3805 = vmatmul.mubr.f32.gmra.mrb[0].mxu0 %v3090
        %v3806 = vpop.f32.mrb[0].mxu0
        %v3807 = vadd.f32 %v3582, %v3806
        %v3808 = vpop.f32.mrb[0].mxu0
        %3809 = vmatprep.mubr.f32.mxu0 %v3100
        %3810 = vmatmul.mubr.f32.gmra.mrb[0].mxu0 %v3099
        %v3811 = vpop.f32.mrb[0].mxu0
        %v3812 = vadd.f32 %v3587, %v3811
        %v3813 = vpop.f32.mrb[0].mxu0
        %3814 = vmatprep.mubr.f32.mxu0 %v3109
        %3815 = vmatmul.mubr.f32.gmra.mrb[0].mxu0 %v3108
        %v3816 = vpop.f32.mrb[0].mxu0
        %v3817 = vadd.f32 %v3592, %v3816
        %v3818 = vpop.f32.mrb[0].mxu0
        %3819 = vmatprep.mubr.f32.mxu0 %v3118
        %3820 = vmatmul.mubr.f32.gmra.mrb[0].mxu0 %v3117
        %v3821 = vpop.f32.mrb[0].mxu0
        %v3822 = vadd.f32 %v3597, %v3821
        %v3823 = vpop.f32.mrb[0].mxu0
        %3824 = vmatprep.mubr.f32.mxu0 %v3127
        %3825 = vmatmul.mubr.f32.gmra.mrb[0].mxu0 %v3126
        %v3826 = vpop.f32.mrb[0].mxu0
        %v3827 = vadd.f32 %v3602, %v3826
        %v3828 = vpop.f32.mrb[0].mxu0
        %3829 = vmatprep.mubr.f32.mxu0 %v3136
        %3830 = vmatmul.mubr.f32.gmra.mrb[0].mxu0 %v3135
        %v3831 = vpop.f32.mrb[0].mxu0
        %v3832 = vadd.f32 %v3607, %v3831
        %v3833 = vpop.f32.mrb[0].mxu0
        %3834 = vmatprep.mubr.f32.mxu0 %v3145
        %3835 = vmatmul.mubr.f32.gmra.mrb[0].mxu0 %v3144
        %v3836 = vpop.f32.mrb[0].mxu0
        %v3837 = vadd.f32 %v3612, %v3836
        %v3838 = vpop.f32.mrb[0].mxu0
        %3839 = vmatprep.mubr.f32.mxu0 %v3154
        %3840 = vmatmul.mubr.f32.gmra.mrb[0].mxu0 %v3153
        %v3841 = vpop.f32.mrb[0].mxu0
        %v3842 = vadd.f32 %v3617, %v3841
        %v3843 = vpop.f32.mrb[0].mxu0
        %3844 = vmatprep.mubr.f32.mxu0 %v3163
        %3845 = vmatmul.mubr.f32.gmra.mrb[0].mxu0 %v3162
        %v3846 = vpop.f32.mrb[0].mxu0
        %v3847 = vadd.f32 %v3622, %v3846
        %v3848 = vpop.f32.mrb[0].mxu0
        %3849 = vmatprep.mubr.f32.mxu0 %v3172
        %3850 = vmatmul.mubr.f32.gmra.mrb[0].mxu0 %v3171
        %v3851 = vpop.f32.mrb[0].mxu0
        %v3852 = vadd.f32 %v3627, %v3851
        %v3853 = vpop.f32.mrb[0].mxu0
        %3854 = vmatprep.mubr.f32.mxu0 %v3181
        %3855 = vmatmul.mubr.f32.gmra.mrb[0].mxu0 %v3180
        %v3856 = vpop.f32.mrb[0].mxu0
        %v3857 = vadd.f32 %v3632, %v3856
        %v3858 = vpop.f32.mrb[0].mxu0
        %3859 = vmatprep.mubr.f32.mxu0 %v3190
        %3860 = vmatmul.mubr.f32.gmra.mrb[0].mxu0 %v3189
        %v3861 = vpop.f32.mrb[0].mxu0
        %v3862 = vadd.f32 %v3637, %v3861
        %v3863 = vpop.f32.mrb[0].mxu0
        %3864 = vmatprep.mubr.f32.mxu0 %v3199
        %3865 = vmatmul.mubr.f32.gmra.mrb[0].mxu0 %v3198
        %v3866 = vpop.f32.mrb[0].mxu0
        %v3867 = vadd.f32 %v3642, %v3866
        %v3868 = vpop.f32.mrb[0].mxu0
        %3869 = vmatprep.mubr.f32.mxu0 %v3208
        %3870 = vmatmul.mubr.f32.gmra.mrb[0].mxu0 %v3207
        %v3871 = vpop.f32.mrb[0].mxu0
        %v3872 = vadd.f32 %v3647, %v3871
        %v3873 = vpop.f32.mrb[0].mxu0
        %3874 = vmatprep.mubr.f32.mxu0 %v3217
        %3875 = vmatmul.mubr.f32.gmra.mrb[0].mxu0 %v3216
        %v3876 = vpop.f32.mrb[0].mxu0
        %v3877 = vadd.f32 %v3652, %v3876
        %v3878 = vpop.f32.mrb[0].mxu0
        %3879 = vmatprep.mubr.f32.mxu0 %v3226
        %3880 = vmatmul.mubr.f32.gmra.mrb[0].mxu0 %v3225
        %v3881 = vpop.f32.mrb[0].mxu0
        %v3882 = vadd.f32 %v3657, %v3881
        %v3883 = vpop.f32.mrb[0].mxu0
        %3884 = vmatprep.mubr.f32.mxu0 %v3235
        %3885 = vmatmul.mubr.f32.gmra.mrb[0].mxu0 %v3234
        %v3886 = vpop.f32.mrb[0].mxu0
        %v3887 = vadd.f32 %v3662, %v3886
        %v3888 = vpop.f32.mrb[0].mxu0
        %3889 = vmatprep.mubr.f32.mxu0 %v3244
        %3890 = vmatmul.mubr.f32.gmra.mrb[0].mxu0 %v3243
        %v3891 = vpop.f32.mrb[0].mxu0
        %v3892 = vadd.f32 %v3667, %v3891
        %v3893 = vpop.f32.mrb[0].mxu0
        %3894 = vmatprep.mubr.f32.mxu0 %v3253
        %3895 = vmatmul.mubr.f32.gmra.mrb[0].mxu0 %v3252
        %v3896 = vpop.f32.mrb[0].mxu0
        %v3897 = vadd.f32 %v3672, %v3896
        %v3898 = vpop.f32.mrb[0].mxu0
        %3899 = vmatprep.mubr.f32.mxu0 %v3262
        %3900 = vmatmul.mubr.f32.gmra.mrb[0].mxu0 %v3261
        %v3901 = vpop.f32.mrb[0].mxu0
        %v3902 = vadd.f32 %v3677, %v3901
        %v3903 = vpop.f32.mrb[0].mxu0
        %3904 = vmatprep.mubr.f32.mxu0 %v3271
        %3905 = vmatmul.mubr.f32.gmra.mrb[0].mxu0 %v3270
        %v3906 = vpop.f32.mrb[0].mxu0
        %v3907 = vadd.f32 %v3682, %v3906
        %v3908 = vpop.f32.mrb[0].mxu0
        %3909 = vmatprep.mubr.f32.mxu0 %v3280
        %3910 = vmatmul.mubr.f32.gmra.mrb[0].mxu0 %v3279
        %v3911 = vpop.f32.mrb[0].mxu0
        %v3912 = vadd.f32 %v3687, %v3911
        %v3913 = vpop.f32.mrb[0].mxu0
        %3914 = vmatprep.mubr.f32.mxu0 %v3289
        %3915 = vmatmul.mubr.f32.gmra.mrb[0].mxu0 %v3288
        %v3916 = vpop.f32.mrb[0].mxu0
        %v3917 = vadd.f32 %v3692, %v3916
        %v3918 = vpop.f32.mrb[0].mxu0
        %3919 = vmatprep.mubr.f32.mxu0 %v3298
        %3920 = vmatmul.mubr.f32.gmra.mrb[0].mxu0 %v3297
        %v3921 = vpop.f32.mrb[0].mxu0
        %v3922 = vadd.f32 %v3697, %v3921
        %v3923 = vpop.f32.mrb[0].mxu0
        %3924 = vmatprep.mubr.f32.mxu0 %v3307
        %3925 = vmatmul.mubr.f32.gmra.mrb[0].mxu0 %v3306
        %v3926 = vpop.f32.mrb[0].mxu0
        %v3927 = vadd.f32 %v3702, %v3926
        %v3928 = vpop.f32.mrb[0].mxu0
        %3929 = vmatprep.mubr.f32.mxu0 %v3316
        %3930 = vmatmul.mubr.f32.gmra.mrb[0].mxu0 %v3315
        %v3931 = vpop.f32.mrb[0].mxu0
        %v3932 = vadd.f32 %v3707, %v3931
        %v3933 = vpop.f32.mrb[0].mxu0
        %3934 = vmatprep.mubr.f32.mxu0 %v3325
        %3935 = vmatmul.mubr.f32.gmra.mrb[0].mxu0 %v3324
        %v3936 = vpop.f32.mrb[0].mxu0
        %v3937 = vadd.f32 %v3712, %v3936
        %v3938 = vpop.f32.mrb[0].mxu0
        %3939 = vmatprep.mubr.f32.mxu0 %v3334
        %3940 = vmatmul.mubr.f32.gmra.mrb[0].mxu0 %v3333
        %v3941 = vpop.f32.mrb[0].mxu0
        %v3942 = vadd.f32 %v3717, %v3941
        %v3943 = vpop.f32.mrb[0].mxu0
        %3944 = vmatprep.mubr.f32.mxu0 %v3343
        %3945 = vmatmul.mubr.f32.gmra.mrb[0].mxu0 %v3342
        %v3946 = vpop.f32.mrb[0].mxu0
        %v3947 = vadd.f32 %v3722, %v3946
        %v3948 = vpop.f32.mrb[0].mxu0
        %3949 = vdwg.mxu0
        %3950 = vmatprep.subr.mxu0 0.0
        %3951 = vmatpush1.msra.mxu0 %v3413
        %3952 = vmatprep.subr.mxu0 0.0
        %3953 = vmatpush1.msra.mxu0 %v3414
        %3954 = vmatprep.subr.mxu0 0.0
        %3955 = vmatpush1.msra.mxu0 %v3415
        %3956 = vmatprep.subr.mxu0 0.0
        %3957 = vmatpush1.msra.mxu0 %v3416
        %3958 = vmatprep.subr.mxu0 0.0
        %3959 = vmatpush1.msra.mxu0 %v3417
        %3960 = vmatprep.subr.mxu0 0.0
        %3961 = vmatpush1.msra.mxu0 %v3418
        %3962 = vmatprep.subr.mxu0 0.0
        %3963 = vmatpush1.msra.mxu0 %v3419
        %3964 = vmatprep.subr.mxu0 0.0
        %3965 = vmatpush1.msra.mxu0 %v3420
        %3966 = vmatprep.subr.mxu0 0.0
        %3967 = vmatpush1.msra.mxu0 %v3421
        %3968 = vmatprep.subr.mxu0 0.0
        %3969 = vmatpush1.msra.mxu0 %v3422
        %3970 = vmatprep.subr.mxu0 0.0
        %3971 = vmatpush1.msra.mxu0 %v3423
        %3972 = vmatprep.subr.mxu0 0.0
        %3973 = vmatpush1.msra.mxu0 %v3424
        %3974 = vmatprep.subr.mxu0 0.0
        %3975 = vmatpush1.msra.mxu0 %v3425
        %3976 = vmatprep.subr.mxu0 0.0
        %3977 = vmatpush1.msra.mxu0 %v3426
        %3978 = vmatprep.subr.mxu0 0.0
        %3979 = vmatpush1.msra.mxu0 %v3427
        %3980 = vmatprep.subr.mxu0 0.0
        %3981 = vmatpush1.msra.mxu0 %v3428
        %3982 = vmatprep.subr.mxu0 0.0
        %3983 = vmatpush1.msra.mxu0 %v3429
        %3984 = vmatprep.subr.mxu0 0.0
        %3985 = vmatpush1.msra.mxu0 %v3430
        %3986 = vmatprep.subr.mxu0 0.0
        %3987 = vmatpush1.msra.mxu0 %v3431
        %3988 = vmatprep.subr.mxu0 0.0
        %3989 = vmatpush1.msra.mxu0 %v3432
        %3990 = vmatprep.subr.mxu0 0.0
        %3991 = vmatpush1.msra.mxu0 %v3433
        %3992 = vmatprep.subr.mxu0 0.0
        %3993 = vmatpush1.msra.mxu0 %v3434
        %3994 = vmatprep.subr.mxu0 0.0
        %3995 = vmatpush1.msra.mxu0 %v3435
        %3996 = vmatprep.subr.mxu0 0.0
        %3997 = vmatpush1.msra.mxu0 %v3436
        %3998 = vmatprep.subr.mxu0 0.0
        %3999 = vmatpush1.msra.mxu0 %v3437
        %4000 = vmatprep.subr.mxu0 0.0
        %4001 = vmatpush1.msra.mxu0 %v3438
        %4002 = vmatprep.subr.mxu0 0.0
        %4003 = vmatpush1.msra.mxu0 %v3439
        %4004 = vmatprep.subr.mxu0 0.0
        %4005 = vmatpush1.msra.mxu0 %v3440
        %4006 = vmatprep.subr.mxu0 0.0
        %4007 = vmatpush1.msra.mxu0 %v3441
        %4008 = vmatprep.subr.mxu0 0.0
        %4009 = vmatpush1.msra.mxu0 %v3442
        %4010 = vmatprep.subr.mxu0 0.0
        %4011 = vmatpush1.msra.mxu0 %v3443
        %4012 = vmatprep.subr.mxu0 0.0
        %4013 = vmatpush1.msra.mxu0 %v3444
        %4014 = vmatprep.mubr.f32.mxu0 %v3066
        %4015 = vmatmul.mubr.f32.gmra.mrb[0].mxu0 %v3065
        %v4016 = vpop.f32.mrb[0].mxu0
        %v4017 = vadd.f32 %v3792, %v4016
        %v4018 = vpop.f32.mrb[0].mxu0
        %4019 = vmatprep.mubr.f32.mxu0 %v3075
        %4020 = vmatmul.mubr.f32.gmra.mrb[0].mxu0 %v3074
        %v4021 = vpop.f32.mrb[0].mxu0
        %v4022 = vadd.f32 %v3797, %v4021
        %v4023 = vpop.f32.mrb[0].mxu0
        %4024 = vmatprep.mubr.f32.mxu0 %v3084
        %4025 = vmatmul.mubr.f32.gmra.mrb[0].mxu0 %v3083
        %v4026 = vpop.f32.mrb[0].mxu0
        %v4027 = vadd.f32 %v3802, %v4026
        %v4028 = vpop.f32.mrb[0].mxu0
        %4029 = vmatprep.mubr.f32.mxu0 %v3093
        %4030 = vmatmul.mubr.f32.gmra.mrb[0].mxu0 %v3092
        %v4031 = vpop.f32.mrb[0].mxu0
        %v4032 = vadd.f32 %v3807, %v4031
        %v4033 = vpop.f32.mrb[0].mxu0
        %4034 = vmatprep.mubr.f32.mxu0 %v3102
        %4035 = vmatmul.mubr.f32.gmra.mrb[0].mxu0 %v3101
        %v4036 = vpop.f32.mrb[0].mxu0
        %v4037 = vadd.f32 %v3812, %v4036
        %v4038 = vpop.f32.mrb[0].mxu0
        %4039 = vmatprep.mubr.f32.mxu0 %v3111
        %4040 = vmatmul.mubr.f32.gmra.mrb[0].mxu0 %v3110
        %v4041 = vpop.f32.mrb[0].mxu0
        %v4042 = vadd.f32 %v3817, %v4041
        %v4043 = vpop.f32.mrb[0].mxu0
        %4044 = vmatprep.mubr.f32.mxu0 %v3120
        %4045 = vmatmul.mubr.f32.gmra.mrb[0].mxu0 %v3119
        %v4046 = vpop.f32.mrb[0].mxu0
        %v4047 = vadd.f32 %v3822, %v4046
        %v4048 = vpop.f32.mrb[0].mxu0
        %4049 = vmatprep.mubr.f32.mxu0 %v3129
        %4050 = vmatmul.mubr.f32.gmra.mrb[0].mxu0 %v3128
        %v4051 = vpop.f32.mrb[0].mxu0
        %v4052 = vadd.f32 %v3827, %v4051
        %v4053 = vpop.f32.mrb[0].mxu0
        %4054 = vmatprep.mubr.f32.mxu0 %v3138
        %4055 = vmatmul.mubr.f32.gmra.mrb[0].mxu0 %v3137
        %v4056 = vpop.f32.mrb[0].mxu0
        %v4057 = vadd.f32 %v3832, %v4056
        %v4058 = vpop.f32.mrb[0].mxu0
        %4059 = vmatprep.mubr.f32.mxu0 %v3147
        %4060 = vmatmul.mubr.f32.gmra.mrb[0].mxu0 %v3146
        %v4061 = vpop.f32.mrb[0].mxu0
        %v4062 = vadd.f32 %v3837, %v4061
        %v4063 = vpop.f32.mrb[0].mxu0
        %4064 = vmatprep.mubr.f32.mxu0 %v3156
        %4065 = vmatmul.mubr.f32.gmra.mrb[0].mxu0 %v3155
        %v4066 = vpop.f32.mrb[0].mxu0
        %v4067 = vadd.f32 %v3842, %v4066
        %v4068 = vpop.f32.mrb[0].mxu0
        %4069 = vmatprep.mubr.f32.mxu0 %v3165
        %4070 = vmatmul.mubr.f32.gmra.mrb[0].mxu0 %v3164
        %v4071 = vpop.f32.mrb[0].mxu0
        %v4072 = vadd.f32 %v3847, %v4071
        %v4073 = vpop.f32.mrb[0].mxu0
        %4074 = vmatprep.mubr.f32.mxu0 %v3174
        %4075 = vmatmul.mubr.f32.gmra.mrb[0].mxu0 %v3173
        %v4076 = vpop.f32.mrb[0].mxu0
        %v4077 = vadd.f32 %v3852, %v4076
        %v4078 = vpop.f32.mrb[0].mxu0
        %4079 = vmatprep.mubr.f32.mxu0 %v3183
        %4080 = vmatmul.mubr.f32.gmra.mrb[0].mxu0 %v3182
        %v4081 = vpop.f32.mrb[0].mxu0
        %v4082 = vadd.f32 %v3857, %v4081
        %v4083 = vpop.f32.mrb[0].mxu0
        %4084 = vmatprep.mubr.f32.mxu0 %v3192
        %4085 = vmatmul.mubr.f32.gmra.mrb[0].mxu0 %v3191
        %v4086 = vpop.f32.mrb[0].mxu0
        %v4087 = vadd.f32 %v3862, %v4086
        %v4088 = vpop.f32.mrb[0].mxu0
        %4089 = vmatprep.mubr.f32.mxu0 %v3201
        %4090 = vmatmul.mubr.f32.gmra.mrb[0].mxu0 %v3200
        %v4091 = vpop.f32.mrb[0].mxu0
        %v4092 = vadd.f32 %v3867, %v4091
        %v4093 = vpop.f32.mrb[0].mxu0
        %4094 = vmatprep.mubr.f32.mxu0 %v3210
        %4095 = vmatmul.mubr.f32.gmra.mrb[0].mxu0 %v3209
        %v4096 = vpop.f32.mrb[0].mxu0
        %v4097 = vadd.f32 %v3872, %v4096
        %v4098 = vpop.f32.mrb[0].mxu0
        %4099 = vmatprep.mubr.f32.mxu0 %v3219
        %4100 = vmatmul.mubr.f32.gmra.mrb[0].mxu0 %v3218
        %v4101 = vpop.f32.mrb[0].mxu0
        %v4102 = vadd.f32 %v3877, %v4101
        %v4103 = vpop.f32.mrb[0].mxu0
        %4104 = vmatprep.mubr.f32.mxu0 %v3228
        %4105 = vmatmul.mubr.f32.gmra.mrb[0].mxu0 %v3227
        %v4106 = vpop.f32.mrb[0].mxu0
        %v4107 = vadd.f32 %v3882, %v4106
        %v4108 = vpop.f32.mrb[0].mxu0
        %4109 = vmatprep.mubr.f32.mxu0 %v3237
        %4110 = vmatmul.mubr.f32.gmra.mrb[0].mxu0 %v3236
        %v4111 = vpop.f32.mrb[0].mxu0
        %v4112 = vadd.f32 %v3887, %v4111
        %v4113 = vpop.f32.mrb[0].mxu0
        %4114 = vmatprep.mubr.f32.mxu0 %v3246
        %4115 = vmatmul.mubr.f32.gmra.mrb[0].mxu0 %v3245
        %v4116 = vpop.f32.mrb[0].mxu0
        %v4117 = vadd.f32 %v3892, %v4116
        %v4118 = vpop.f32.mrb[0].mxu0
        %4119 = vmatprep.mubr.f32.mxu0 %v3255
        %4120 = vmatmul.mubr.f32.gmra.mrb[0].mxu0 %v3254
        %v4121 = vpop.f32.mrb[0].mxu0
        %v4122 = vadd.f32 %v3897, %v4121
        %v4123 = vpop.f32.mrb[0].mxu0
        %4124 = vmatprep.mubr.f32.mxu0 %v3264
        %4125 = vmatmul.mubr.f32.gmra.mrb[0].mxu0 %v3263
        %v4126 = vpop.f32.mrb[0].mxu0
        %v4127 = vadd.f32 %v3902, %v4126
        %v4128 = vpop.f32.mrb[0].mxu0
        %4129 = vmatprep.mubr.f32.mxu0 %v3273
        %4130 = vmatmul.mubr.f32.gmra.mrb[0].mxu0 %v3272
        %v4131 = vpop.f32.mrb[0].mxu0
        %v4132 = vadd.f32 %v3907, %v4131
        %v4133 = vpop.f32.mrb[0].mxu0
        %4134 = vmatprep.mubr.f32.mxu0 %v3282
        %4135 = vmatmul.mubr.f32.gmra.mrb[0].mxu0 %v3281
        %v4136 = vpop.f32.mrb[0].mxu0
        %v4137 = vadd.f32 %v3912, %v4136
        %v4138 = vpop.f32.mrb[0].mxu0
        %4139 = vmatprep.mubr.f32.mxu0 %v3291
        %4140 = vmatmul.mubr.f32.gmra.mrb[0].mxu0 %v3290
        %v4141 = vpop.f32.mrb[0].mxu0
        %v4142 = vadd.f32 %v3917, %v4141
        %v4143 = vpop.f32.mrb[0].mxu0
        %4144 = vmatprep.mubr.f32.mxu0 %v3300
        %4145 = vmatmul.mubr.f32.gmra.mrb[0].mxu0 %v3299
        %v4146 = vpop.f32.mrb[0].mxu0
        %v4147 = vadd.f32 %v3922, %v4146
        %v4148 = vpop.f32.mrb[0].mxu0
        %4149 = vmatprep.mubr.f32.mxu0 %v3309
        %4150 = vmatmul.mubr.f32.gmra.mrb[0].mxu0 %v3308
        %v4151 = vpop.f32.mrb[0].mxu0
        %v4152 = vadd.f32 %v3927, %v4151
        %v4153 = vpop.f32.mrb[0].mxu0
        %4154 = vmatprep.mubr.f32.mxu0 %v3318
        %4155 = vmatmul.mubr.f32.gmra.mrb[0].mxu0 %v3317
        %v4156 = vpop.f32.mrb[0].mxu0
        %v4157 = vadd.f32 %v3932, %v4156
        %v4158 = vpop.f32.mrb[0].mxu0
        %4159 = vmatprep.mubr.f32.mxu0 %v3327
        %4160 = vmatmul.mubr.f32.gmra.mrb[0].mxu0 %v3326
        %v4161 = vpop.f32.mrb[0].mxu0
        %v4162 = vadd.f32 %v3937, %v4161
        %v4163 = vpop.f32.mrb[0].mxu0
        %4164 = vmatprep.mubr.f32.mxu0 %v3336
        %4165 = vmatmul.mubr.f32.gmra.mrb[0].mxu0 %v3335
        %v4166 = vpop.f32.mrb[0].mxu0
        %v4167 = vadd.f32 %v3942, %v4166
        %v4168 = vpop.f32.mrb[0].mxu0
        %4169 = vmatprep.mubr.f32.mxu0 %v3345
        %4170 = vmatmul.mubr.f32.gmra.mrb[0].mxu0 %v3344
        %v4171 = vpop.f32.mrb[0].mxu0
        %v4172 = vadd.f32 %v3947, %v4171
        %v4173 = vpop.f32.mrb[0].mxu0
        %4174 = vdwg.mxu0
        %4175 = vmatprep.subr.mxu0 0.0
        %4176 = vmatpush1.msra.mxu0 %v3445
        %4177 = vmatprep.subr.mxu0 0.0
        %4178 = vmatpush1.msra.mxu0 %v3446
        %4179 = vmatprep.subr.mxu0 0.0
        %4180 = vmatpush1.msra.mxu0 %v3447
        %4181 = vmatprep.subr.mxu0 0.0
        %4182 = vmatpush1.msra.mxu0 %v3448
        %4183 = vmatprep.subr.mxu0 0.0
        %4184 = vmatpush1.msra.mxu0 %v3449
        %4185 = vmatprep.subr.mxu0 0.0
        %4186 = vmatpush1.msra.mxu0 %v3450
        %4187 = vmatprep.subr.mxu0 0.0
        %4188 = vmatpush1.msra.mxu0 %v3451
        %4189 = vmatprep.subr.mxu0 0.0
        %4190 = vmatpush1.msra.mxu0 %v3452
        %4191 = vmatprep.subr.mxu0 0.0
        %4192 = vmatpush1.msra.mxu0 %v3453
        %4193 = vmatprep.subr.mxu0 0.0
        %4194 = vmatpush1.msra.mxu0 %v3454
        %4195 = vmatprep.subr.mxu0 0.0
        %4196 = vmatpush1.msra.mxu0 %v3455
        %4197 = vmatprep.subr.mxu0 0.0
        %4198 = vmatpush1.msra.mxu0 %v3456
        %4199 = vmatprep.subr.mxu0 0.0
        %4200 = vmatpush1.msra.mxu0 %v3457
        %4201 = vmatprep.subr.mxu0 0.0
        %4202 = vmatpush1.msra.mxu0 %v3458
        %4203 = vmatprep.subr.mxu0 0.0
        %4204 = vmatpush1.msra.mxu0 %v3459
        %4205 = vmatprep.subr.mxu0 0.0
        %4206 = vmatpush1.msra.mxu0 %v3460
        %4207 = vmatprep.subr.mxu0 0.0
        %4208 = vmatpush1.msra.mxu0 %v3461
        %4209 = vmatprep.subr.mxu0 0.0
        %4210 = vmatpush1.msra.mxu0 %v3462
        %4211 = vmatprep.subr.mxu0 0.0
        %4212 = vmatpush1.msra.mxu0 %v3463
        %4213 = vmatprep.subr.mxu0 0.0
        %4214 = vmatpush1.msra.mxu0 %v3464
        %4215 = vmatprep.subr.mxu0 0.0
        %4216 = vmatpush1.msra.mxu0 %v3465
        %4217 = vmatprep.subr.mxu0 0.0
        %4218 = vmatpush1.msra.mxu0 %v3466
        %4219 = vmatprep.subr.mxu0 0.0
        %4220 = vmatpush1.msra.mxu0 %v3467
        %4221 = vmatprep.subr.mxu0 0.0
        %4222 = vmatpush1.msra.mxu0 %v3468
        %4223 = vmatprep.subr.mxu0 0.0
        %4224 = vmatpush1.msra.mxu0 %v3469
        %4225 = vmatprep.subr.mxu0 0.0
        %4226 = vmatpush1.msra.mxu0 %v3470
        %4227 = vmatprep.subr.mxu0 0.0
        %4228 = vmatpush1.msra.mxu0 %v3471
        %4229 = vmatprep.subr.mxu0 0.0
        %4230 = vmatpush1.msra.mxu0 %v3472
        %4231 = vmatprep.subr.mxu0 0.0
        %4232 = vmatpush1.msra.mxu0 %v3473
        %4233 = vmatprep.subr.mxu0 0.0
        %4234 = vmatpush1.msra.mxu0 %v3474
        %4235 = vmatprep.subr.mxu0 0.0
        %4236 = vmatpush1.msra.mxu0 %v3475
        %4237 = vmatprep.subr.mxu0 0.0
        %4238 = vmatpush1.msra.mxu0 %v3476
        %4239 = vmatprep.mubr.f32.mxu0 %v3068
        %4240 = vmatmul.mubr.f32.gmra.mrb[0].mxu0 %v3067
        %v4241 = vpop.f32.mrb[0].mxu0
        %v4242 = vadd.f32 %v4017, %v4241
        %v4243 = vpop.f32.mrb[0].mxu0
        %4244 = vmatprep.mubr.f32.mxu0 %v3077
        %4245 = vmatmul.mubr.f32.gmra.mrb[0].mxu0 %v3076
        %v4246 = vpop.f32.mrb[0].mxu0
        %v4247 = vadd.f32 %v4022, %v4246
        %v4248 = vpop.f32.mrb[0].mxu0
        %4249 = vmatprep.mubr.f32.mxu0 %v3086
        %4250 = vmatmul.mubr.f32.gmra.mrb[0].mxu0 %v3085
        %v4251 = vpop.f32.mrb[0].mxu0
        %v4252 = vadd.f32 %v4027, %v4251
        %v4253 = vpop.f32.mrb[0].mxu0
        %4254 = vmatprep.mubr.f32.mxu0 %v3095
        %4255 = vmatmul.mubr.f32.gmra.mrb[0].mxu0 %v3094
        %v4256 = vpop.f32.mrb[0].mxu0
        %v4257 = vadd.f32 %v4032, %v4256
        %v4258 = vpop.f32.mrb[0].mxu0
        %4259 = vmatprep.mubr.f32.mxu0 %v3104
        %4260 = vmatmul.mubr.f32.gmra.mrb[0].mxu0 %v3103
        %v4261 = vpop.f32.mrb[0].mxu0
        %v4262 = vadd.f32 %v4037, %v4261
        %v4263 = vpop.f32.mrb[0].mxu0
        %4264 = vmatprep.mubr.f32.mxu0 %v3113
        %4265 = vmatmul.mubr.f32.gmra.mrb[0].mxu0 %v3112
        %v4266 = vpop.f32.mrb[0].mxu0
        %v4267 = vadd.f32 %v4042, %v4266
        %v4268 = vpop.f32.mrb[0].mxu0
        %4269 = vmatprep.mubr.f32.mxu0 %v3122
        %4270 = vmatmul.mubr.f32.gmra.mrb[0].mxu0 %v3121
        %v4271 = vpop.f32.mrb[0].mxu0
        %v4272 = vadd.f32 %v4047, %v4271
        %v4273 = vpop.f32.mrb[0].mxu0
        %4274 = vmatprep.mubr.f32.mxu0 %v3131
        %4275 = vmatmul.mubr.f32.gmra.mrb[0].mxu0 %v3130
        %v4276 = vpop.f32.mrb[0].mxu0
        %v4277 = vadd.f32 %v4052, %v4276
        %v4278 = vpop.f32.mrb[0].mxu0
        %4279 = vmatprep.mubr.f32.mxu0 %v3140
        %4280 = vmatmul.mubr.f32.gmra.mrb[0].mxu0 %v3139
        %v4281 = vpop.f32.mrb[0].mxu0
        %v4282 = vadd.f32 %v4057, %v4281
        %v4283 = vpop.f32.mrb[0].mxu0
        %4284 = vmatprep.mubr.f32.mxu0 %v3149
        %4285 = vmatmul.mubr.f32.gmra.mrb[0].mxu0 %v3148
        %v4286 = vpop.f32.mrb[0].mxu0
        %v4287 = vadd.f32 %v4062, %v4286
        %v4288 = vpop.f32.mrb[0].mxu0
        %4289 = vmatprep.mubr.f32.mxu0 %v3158
        %4290 = vmatmul.mubr.f32.gmra.mrb[0].mxu0 %v3157
        %v4291 = vpop.f32.mrb[0].mxu0
        %v4292 = vadd.f32 %v4067, %v4291
        %v4293 = vpop.f32.mrb[0].mxu0
        %4294 = vmatprep.mubr.f32.mxu0 %v3167
        %4295 = vmatmul.mubr.f32.gmra.mrb[0].mxu0 %v3166
        %v4296 = vpop.f32.mrb[0].mxu0
        %v4297 = vadd.f32 %v4072, %v4296
        %v4298 = vpop.f32.mrb[0].mxu0
        %4299 = vmatprep.mubr.f32.mxu0 %v3176
        %4300 = vmatmul.mubr.f32.gmra.mrb[0].mxu0 %v3175
        %v4301 = vpop.f32.mrb[0].mxu0
        %v4302 = vadd.f32 %v4077, %v4301
        %v4303 = vpop.f32.mrb[0].mxu0
        %4304 = vmatprep.mubr.f32.mxu0 %v3185
        %4305 = vmatmul.mubr.f32.gmra.mrb[0].mxu0 %v3184
        %v4306 = vpop.f32.mrb[0].mxu0
        %v4307 = vadd.f32 %v4082, %v4306
        %v4308 = vpop.f32.mrb[0].mxu0
        %4309 = vmatprep.mubr.f32.mxu0 %v3194
        %4310 = vmatmul.mubr.f32.gmra.mrb[0].mxu0 %v3193
        %v4311 = vpop.f32.mrb[0].mxu0
        %v4312 = vadd.f32 %v4087, %v4311
        %v4313 = vpop.f32.mrb[0].mxu0
        %4314 = vmatprep.mubr.f32.mxu0 %v3203
        %4315 = vmatmul.mubr.f32.gmra.mrb[0].mxu0 %v3202
        %v4316 = vpop.f32.mrb[0].mxu0
        %v4317 = vadd.f32 %v4092, %v4316
        %v4318 = vpop.f32.mrb[0].mxu0
        %4319 = vmatprep.mubr.f32.mxu0 %v3212
        %4320 = vmatmul.mubr.f32.gmra.mrb[0].mxu0 %v3211
        %v4321 = vpop.f32.mrb[0].mxu0
        %v4322 = vadd.f32 %v4097, %v4321
        %v4323 = vpop.f32.mrb[0].mxu0
        %4324 = vmatprep.mubr.f32.mxu0 %v3221
        %4325 = vmatmul.mubr.f32.gmra.mrb[0].mxu0 %v3220
        %v4326 = vpop.f32.mrb[0].mxu0
        %v4327 = vadd.f32 %v4102, %v4326
        %v4328 = vpop.f32.mrb[0].mxu0
        %4329 = vmatprep.mubr.f32.mxu0 %v3230
        %4330 = vmatmul.mubr.f32.gmra.mrb[0].mxu0 %v3229
        %v4331 = vpop.f32.mrb[0].mxu0
        %v4332 = vadd.f32 %v4107, %v4331
        %v4333 = vpop.f32.mrb[0].mxu0
        %4334 = vmatprep.mubr.f32.mxu0 %v3239
        %4335 = vmatmul.mubr.f32.gmra.mrb[0].mxu0 %v3238
        %v4336 = vpop.f32.mrb[0].mxu0
        %v4337 = vadd.f32 %v4112, %v4336
        %v4338 = vpop.f32.mrb[0].mxu0
        %4339 = vmatprep.mubr.f32.mxu0 %v3248
        %4340 = vmatmul.mubr.f32.gmra.mrb[0].mxu0 %v3247
        %v4341 = vpop.f32.mrb[0].mxu0
        %v4342 = vadd.f32 %v4117, %v4341
        %v4343 = vpop.f32.mrb[0].mxu0
        %4344 = vmatprep.mubr.f32.mxu0 %v3257
        %4345 = vmatmul.mubr.f32.gmra.mrb[0].mxu0 %v3256
        %v4346 = vpop.f32.mrb[0].mxu0
        %v4347 = vadd.f32 %v4122, %v4346
        %v4348 = vpop.f32.mrb[0].mxu0
        %4349 = vmatprep.mubr.f32.mxu0 %v3266
        %4350 = vmatmul.mubr.f32.gmra.mrb[0].mxu0 %v3265
        %v4351 = vpop.f32.mrb[0].mxu0
        %v4352 = vadd.f32 %v4127, %v4351
        %v4353 = vpop.f32.mrb[0].mxu0
        %4354 = vmatprep.mubr.f32.mxu0 %v3275
        %4355 = vmatmul.mubr.f32.gmra.mrb[0].mxu0 %v3274
        %v4356 = vpop.f32.mrb[0].mxu0
        %v4357 = vadd.f32 %v4132, %v4356
        %v4358 = vpop.f32.mrb[0].mxu0
        %4359 = vmatprep.mubr.f32.mxu0 %v3284
        %4360 = vmatmul.mubr.f32.gmra.mrb[0].mxu0 %v3283
        %v4361 = vpop.f32.mrb[0].mxu0
        %v4362 = vadd.f32 %v4137, %v4361
        %v4363 = vpop.f32.mrb[0].mxu0
        %4364 = vmatprep.mubr.f32.mxu0 %v3293
        %4365 = vmatmul.mubr.f32.gmra.mrb[0].mxu0 %v3292
        %v4366 = vpop.f32.mrb[0].mxu0
        %v4367 = vadd.f32 %v4142, %v4366
        %v4368 = vpop.f32.mrb[0].mxu0
        %4369 = vmatprep.mubr.f32.mxu0 %v3302
        %4370 = vmatmul.mubr.f32.gmra.mrb[0].mxu0 %v3301
        %v4371 = vpop.f32.mrb[0].mxu0
        %v4372 = vadd.f32 %v4147, %v4371
        %v4373 = vpop.f32.mrb[0].mxu0
        %4374 = vmatprep.mubr.f32.mxu0 %v3311
        %4375 = vmatmul.mubr.f32.gmra.mrb[0].mxu0 %v3310
        %v4376 = vpop.f32.mrb[0].mxu0
        %v4377 = vadd.f32 %v4152, %v4376
        %v4378 = vpop.f32.mrb[0].mxu0
        %4379 = vmatprep.mubr.f32.mxu0 %v3320
        %4380 = vmatmul.mubr.f32.gmra.mrb[0].mxu0 %v3319
        %v4381 = vpop.f32.mrb[0].mxu0
        %v4382 = vadd.f32 %v4157, %v4381
        %v4383 = vpop.f32.mrb[0].mxu0
        %4384 = vmatprep.mubr.f32.mxu0 %v3329
        %4385 = vmatmul.mubr.f32.gmra.mrb[0].mxu0 %v3328
        %v4386 = vpop.f32.mrb[0].mxu0
        %v4387 = vadd.f32 %v4162, %v4386
        %v4388 = vpop.f32.mrb[0].mxu0
        %4389 = vmatprep.mubr.f32.mxu0 %v3338
        %4390 = vmatmul.mubr.f32.gmra.mrb[0].mxu0 %v3337
        %v4391 = vpop.f32.mrb[0].mxu0
        %v4392 = vadd.f32 %v4167, %v4391
        %v4393 = vpop.f32.mrb[0].mxu0
        %4394 = vmatprep.mubr.f32.mxu0 %v3347
        %4395 = vmatmul.mubr.f32.gmra.mrb[0].mxu0 %v3346
        %v4396 = vpop.f32.mrb[0].mxu0
        %v4397 = vadd.f32 %v4172, %v4396
        %v4398 = vpop.f32.mrb[0].mxu0
        %4399 = vdwg.mxu0
        %4400 = vmatprep.subr.mxu0 0.0
        %4401 = vmatpush1.msra.mxu0 %v3477
        %4402 = vmatprep.subr.mxu0 0.0
        %4403 = vmatpush1.msra.mxu0 %v3478
        %4404 = vmatprep.subr.mxu0 0.0
        %4405 = vmatpush1.msra.mxu0 %v3479
        %4406 = vmatprep.subr.mxu0 0.0
        %4407 = vmatpush1.msra.mxu0 %v3480
        %4408 = vmatprep.subr.mxu0 0.0
        %4409 = vmatpush1.msra.mxu0 %v3481
        %4410 = vmatprep.subr.mxu0 0.0
        %4411 = vmatpush1.msra.mxu0 %v3482
        %4412 = vmatprep.subr.mxu0 0.0
        %4413 = vmatpush1.msra.mxu0 %v3483
        %4414 = vmatprep.subr.mxu0 0.0
        %4415 = vmatpush1.msra.mxu0 %v3484
        %4416 = vmatprep.subr.mxu0 0.0
        %4417 = vmatpush1.msra.mxu0 %v3485
        %4418 = vmatprep.subr.mxu0 0.0
        %4419 = vmatpush1.msra.mxu0 %v3486
        %4420 = vmatprep.subr.mxu0 0.0
        %4421 = vmatpush1.msra.mxu0 %v3487
        %4422 = vmatprep.subr.mxu0 0.0
        %4423 = vmatpush1.msra.mxu0 %v3488
        %4424 = vmatprep.subr.mxu0 0.0
        %4425 = vmatpush1.msra.mxu0 %v3489
        %4426 = vmatprep.subr.mxu0 0.0
        %4427 = vmatpush1.msra.mxu0 %v3490
        %4428 = vmatprep.subr.mxu0 0.0
        %4429 = vmatpush1.msra.mxu0 %v3491
        %4430 = vmatprep.subr.mxu0 0.0
        %4431 = vmatpush1.msra.mxu0 %v3492
        %4432 = vmatprep.subr.mxu0 0.0
        %4433 = vmatpush1.msra.mxu0 0.0
        %4434 = vmatprep.subr.mxu0 0.0
        %4435 = vmatpush1.msra.mxu0 0.0
        %4436 = vmatprep.subr.mxu0 0.0
        %4437 = vmatpush1.msra.mxu0 0.0
        %4438 = vmatprep.subr.mxu0 0.0
        %4439 = vmatpush1.msra.mxu0 0.0
        %4440 = vmatprep.subr.mxu0 0.0
        %4441 = vmatpush1.msra.mxu0 0.0
        %4442 = vmatprep.subr.mxu0 0.0
        %4443 = vmatpush1.msra.mxu0 0.0
        %4444 = vmatprep.subr.mxu0 0.0
        %4445 = vmatpush1.msra.mxu0 0.0
        %4446 = vmatprep.subr.mxu0 0.0
        %4447 = vmatpush1.msra.mxu0 0.0
        %4448 = vmatprep.subr.mxu0 0.0
        %4449 = vmatpush1.msra.mxu0 0.0
        %4450 = vmatprep.subr.mxu0 0.0
        %4451 = vmatpush1.msra.mxu0 0.0
        %4452 = vmatprep.subr.mxu0 0.0
        %4453 = vmatpush1.msra.mxu0 0.0
        %4454 = vmatprep.subr.mxu0 0.0
        %4455 = vmatpush1.msra.mxu0 0.0
        %4456 = vmatprep.subr.mxu0 0.0
        %4457 = vmatpush1.msra.mxu0 0.0
        %4458 = vmatprep.subr.mxu0 0.0
        %4459 = vmatpush1.msra.mxu0 0.0
        %4460 = vmatprep.subr.mxu0 0.0
        %4461 = vmatpush1.msra.mxu0 0.0
        %4462 = vmatprep.subr.mxu0 0.0
        %4463 = vmatpush1.msra.mxu0 0.0
        %4464 = vmatprep.mubr.f32.mxu0 0.0
        %4465 = vmatmul.mubr.f32.gmra.mrb[0].mxu0 %v3069
        %v4466 = vpop.f32.mrb[0].mxu0
        %v4467 = vadd.f32 %v4242, %v4466
        %v4468 = vpop.f32.mrb[0].mxu0
        %4469 = vmatprep.mubr.f32.mxu0 0.0
        %4470 = vmatmul.mubr.f32.gmra.mrb[0].mxu0 %v3078
        %v4471 = vpop.f32.mrb[0].mxu0
        %v4472 = vadd.f32 %v4247, %v4471
        %v4473 = vpop.f32.mrb[0].mxu0
        %4474 = vmatprep.mubr.f32.mxu0 0.0
        %4475 = vmatmul.mubr.f32.gmra.mrb[0].mxu0 %v3087
        %v4476 = vpop.f32.mrb[0].mxu0
        %v4477 = vadd.f32 %v4252, %v4476
        %v4478 = vpop.f32.mrb[0].mxu0
        %4479 = vmatprep.mubr.f32.mxu0 0.0
        %4480 = vmatmul.mubr.f32.gmra.mrb[0].mxu0 %v3096
        %v4481 = vpop.f32.mrb[0].mxu0
        %v4482 = vadd.f32 %v4257, %v4481
        %v4483 = vpop.f32.mrb[0].mxu0
        %4484 = vmatprep.mubr.f32.mxu0 0.0
        %4485 = vmatmul.mubr.f32.gmra.mrb[0].mxu0 %v3105
        %v4486 = vpop.f32.mrb[0].mxu0
        %v4487 = vadd.f32 %v4262, %v4486
        %v4488 = vpop.f32.mrb[0].mxu0
        %4489 = vmatprep.mubr.f32.mxu0 0.0
        %4490 = vmatmul.mubr.f32.gmra.mrb[0].mxu0 %v3114
        %v4491 = vpop.f32.mrb[0].mxu0
        %v4492 = vadd.f32 %v4267, %v4491
        %v4493 = vpop.f32.mrb[0].mxu0
        %4494 = vmatprep.mubr.f32.mxu0 0.0
        %4495 = vmatmul.mubr.f32.gmra.mrb[0].mxu0 %v3123
        %v4496 = vpop.f32.mrb[0].mxu0
        %v4497 = vadd.f32 %v4272, %v4496
        %v4498 = vpop.f32.mrb[0].mxu0
        %4499 = vmatprep.mubr.f32.mxu0 0.0
        %4500 = vmatmul.mubr.f32.gmra.mrb[0].mxu0 %v3132
        %v4501 = vpop.f32.mrb[0].mxu0
        %v4502 = vadd.f32 %v4277, %v4501
        %v4503 = vpop.f32.mrb[0].mxu0
        %4504 = vmatprep.mubr.f32.mxu0 0.0
        %4505 = vmatmul.mubr.f32.gmra.mrb[0].mxu0 %v3141
        %v4506 = vpop.f32.mrb[0].mxu0
        %v4507 = vadd.f32 %v4282, %v4506
        %v4508 = vpop.f32.mrb[0].mxu0
        %4509 = vmatprep.mubr.f32.mxu0 0.0
        %4510 = vmatmul.mubr.f32.gmra.mrb[0].mxu0 %v3150
        %v4511 = vpop.f32.mrb[0].mxu0
        %v4512 = vadd.f32 %v4287, %v4511
        %v4513 = vpop.f32.mrb[0].mxu0
        %4514 = vmatprep.mubr.f32.mxu0 0.0
        %4515 = vmatmul.mubr.f32.gmra.mrb[0].mxu0 %v3159
        %v4516 = vpop.f32.mrb[0].mxu0
        %v4517 = vadd.f32 %v4292, %v4516
        %v4518 = vpop.f32.mrb[0].mxu0
        %4519 = vmatprep.mubr.f32.mxu0 0.0
        %4520 = vmatmul.mubr.f32.gmra.mrb[0].mxu0 %v3168
        %v4521 = vpop.f32.mrb[0].mxu0
        %v4522 = vadd.f32 %v4297, %v4521
        %v4523 = vpop.f32.mrb[0].mxu0
        %4524 = vmatprep.mubr.f32.mxu0 0.0
        %4525 = vmatmul.mubr.f32.gmra.mrb[0].mxu0 %v3177
        %v4526 = vpop.f32.mrb[0].mxu0
        %v4527 = vadd.f32 %v4302, %v4526
        %v4528 = vpop.f32.mrb[0].mxu0
        %4529 = vmatprep.mubr.f32.mxu0 0.0
        %4530 = vmatmul.mubr.f32.gmra.mrb[0].mxu0 %v3186
        %v4531 = vpop.f32.mrb[0].mxu0
        %v4532 = vadd.f32 %v4307, %v4531
        %v4533 = vpop.f32.mrb[0].mxu0
        %4534 = vmatprep.mubr.f32.mxu0 0.0
        %4535 = vmatmul.mubr.f32.gmra.mrb[0].mxu0 %v3195
        %v4536 = vpop.f32.mrb[0].mxu0
        %v4537 = vadd.f32 %v4312, %v4536
        %v4538 = vpop.f32.mrb[0].mxu0
        %4539 = vmatprep.mubr.f32.mxu0 0.0
        %4540 = vmatmul.mubr.f32.gmra.mrb[0].mxu0 %v3204
        %v4541 = vpop.f32.mrb[0].mxu0
        %v4542 = vadd.f32 %v4317, %v4541
        %v4543 = vpop.f32.mrb[0].mxu0
        %4544 = vmatprep.mubr.f32.mxu0 0.0
        %4545 = vmatmul.mubr.f32.gmra.mrb[0].mxu0 %v3213
        %v4546 = vpop.f32.mrb[0].mxu0
        %v4547 = vadd.f32 %v4322, %v4546
        %v4548 = vpop.f32.mrb[0].mxu0
        %4549 = vmatprep.mubr.f32.mxu0 0.0
        %4550 = vmatmul.mubr.f32.gmra.mrb[0].mxu0 %v3222
        %v4551 = vpop.f32.mrb[0].mxu0
        %v4552 = vadd.f32 %v4327, %v4551
        %v4553 = vpop.f32.mrb[0].mxu0
        %4554 = vmatprep.mubr.f32.mxu0 0.0
        %4555 = vmatmul.mubr.f32.gmra.mrb[0].mxu0 %v3231
        %v4556 = vpop.f32.mrb[0].mxu0
        %v4557 = vadd.f32 %v4332, %v4556
        %v4558 = vpop.f32.mrb[0].mxu0
        %4559 = vmatprep.mubr.f32.mxu0 0.0
        %4560 = vmatmul.mubr.f32.gmra.mrb[0].mxu0 %v3240
        %v4561 = vpop.f32.mrb[0].mxu0
        %v4562 = vadd.f32 %v4337, %v4561
        %v4563 = vpop.f32.mrb[0].mxu0
        %4564 = vmatprep.mubr.f32.mxu0 0.0
        %4565 = vmatmul.mubr.f32.gmra.mrb[0].mxu0 %v3249
        %v4566 = vpop.f32.mrb[0].mxu0
        %v4567 = vadd.f32 %v4342, %v4566
        %v4568 = vpop.f32.mrb[0].mxu0
        %4569 = vmatprep.mubr.f32.mxu0 0.0
        %4570 = vmatmul.mubr.f32.gmra.mrb[0].mxu0 %v3258
        %v4571 = vpop.f32.mrb[0].mxu0
        %v4572 = vadd.f32 %v4347, %v4571
        %v4573 = vpop.f32.mrb[0].mxu0
        %4574 = vmatprep.mubr.f32.mxu0 0.0
        %4575 = vmatmul.mubr.f32.gmra.mrb[0].mxu0 %v3267
        %v4576 = vpop.f32.mrb[0].mxu0
        %v4577 = vadd.f32 %v4352, %v4576
        %v4578 = vpop.f32.mrb[0].mxu0
        %4579 = vmatprep.mubr.f32.mxu0 0.0
        %4580 = vmatmul.mubr.f32.gmra.mrb[0].mxu0 %v3276
        %v4581 = vpop.f32.mrb[0].mxu0
        %v4582 = vadd.f32 %v4357, %v4581
        %v4583 = vpop.f32.mrb[0].mxu0
        %4584 = vmatprep.mubr.f32.mxu0 0.0
        %4585 = vmatmul.mubr.f32.gmra.mrb[0].mxu0 %v3285
        %v4586 = vpop.f32.mrb[0].mxu0
        %v4587 = vadd.f32 %v4362, %v4586
        %v4588 = vpop.f32.mrb[0].mxu0
        %4589 = vmatprep.mubr.f32.mxu0 0.0
        %4590 = vmatmul.mubr.f32.gmra.mrb[0].mxu0 %v3294
        %v4591 = vpop.f32.mrb[0].mxu0
        %v4592 = vadd.f32 %v4367, %v4591
        %v4593 = vpop.f32.mrb[0].mxu0
        %4594 = vmatprep.mubr.f32.mxu0 0.0
        %4595 = vmatmul.mubr.f32.gmra.mrb[0].mxu0 %v3303
        %v4596 = vpop.f32.mrb[0].mxu0
        %v4597 = vadd.f32 %v4372, %v4596
        %v4598 = vpop.f32.mrb[0].mxu0
        %4599 = vmatprep.mubr.f32.mxu0 0.0
        %4600 = vmatmul.mubr.f32.gmra.mrb[0].mxu0 %v3312
        %v4601 = vpop.f32.mrb[0].mxu0
        %v4602 = vadd.f32 %v4377, %v4601
        %v4603 = vpop.f32.mrb[0].mxu0
        %4604 = vmatprep.mubr.f32.mxu0 0.0
        %4605 = vmatmul.mubr.f32.gmra.mrb[0].mxu0 %v3321
        %v4606 = vpop.f32.mrb[0].mxu0
        %v4607 = vadd.f32 %v4382, %v4606
        %v4608 = vpop.f32.mrb[0].mxu0
        %4609 = vmatprep.mubr.f32.mxu0 0.0
        %4610 = vmatmul.mubr.f32.gmra.mrb[0].mxu0 %v3330
        %v4611 = vpop.f32.mrb[0].mxu0
        %v4612 = vadd.f32 %v4387, %v4611
        %v4613 = vpop.f32.mrb[0].mxu0
        %4614 = vmatprep.mubr.f32.mxu0 0.0
        %4615 = vmatmul.mubr.f32.gmra.mrb[0].mxu0 %v3339
        %v4616 = vpop.f32.mrb[0].mxu0
        %v4617 = vadd.f32 %v4392, %v4616
        %v4618 = vpop.f32.mrb[0].mxu0
        %4619 = vmatprep.mubr.f32.mxu0 0.0
        %4620 = vmatmul.mubr.f32.gmra.mrb[0].mxu0 %v3348
        %v4621 = vpop.f32.mrb[0].mxu0
        %v4622 = vadd.f32 %v4397, %v4621
        %v4623 = vpop.f32.mrb[0].mxu0
        %4624 = vdwg.mxu0
        %v4625 = vld [vmem:[%s430 + $0x1] sm:$0xff]
        %v4626 = vld [vmem:[%s430 + $0x9] sm:$0xff]
        %v4627 = vld [vmem:[%s430 + $0x19] sm:$0xff]
        %v4628 = vld [vmem:[%s430 + $0x21] sm:$0xff]
        %v4629 = vld [vmem:[%s430 + $0x31] sm:$0xff]
        %v4630 = vld [vmem:[%s430 + $0x39] sm:$0xff]
        %v4631 = vld [vmem:[%s430 + $0x49] sm:$0xff]
        %v4632 = vld [vmem:[%s430 + $0x51] sm:$0xff]
        %v4633 = vld [vmem:[%s430 + $0x61] sm:$0xff]
        %v4634 = vld [vmem:[%s430 + $0x69] sm:$0xff]
        %v4635 = vld [vmem:[%s430 + $0x79] sm:$0xff]
        %v4636 = vld [vmem:[%s430 + $0x81] sm:$0xff]
        %v4637 = vld [vmem:[%s430 + $0x91] sm:$0xff]
        %v4638 = vld [vmem:[%s430 + $0x99] sm:$0xff]
        %v4639 = vld [vmem:[%s430 + $0xa9] sm:$0xff]
        %v4640 = vld [vmem:[%s430 + $0xb1] sm:$0xff]
        %v4641 = vld [vmem:[%s430 + $0xc1] sm:$0xff]
        %v4642 = vld [vmem:[%s430 + $0xc9] sm:$0xff]
        %v4643 = vld [vmem:[%s430 + $0xd9] sm:$0xff]
        %v4644 = vld [vmem:[%s430 + $0xe1] sm:$0xff]
        %v4645 = vld [vmem:[%s430 + $0xf1] sm:$0xff]
        %v4646 = vld [vmem:[%s430 + $0xf9] sm:$0xff]
        %v4647 = vld [vmem:[%s430 + $0x109] sm:$0xff]
        %v4648 = vld [vmem:[%s430 + $0x111] sm:$0xff]
        %v4649 = vld [vmem:[%s430 + $0x121] sm:$0xff]
        %v4650 = vld [vmem:[%s430 + $0x129] sm:$0xff]
        %v4651 = vld [vmem:[%s430 + $0x139] sm:$0xff]
        %v4652 = vld [vmem:[%s430 + $0x141] sm:$0xff]
        %v4653 = vld [vmem:[%s430 + $0x151] sm:$0xff]
        %v4654 = vld [vmem:[%s430 + $0x159] sm:$0xff]
        %v4655 = vld [vmem:[%s430 + $0x169] sm:$0xff]
        %v4656 = vld [vmem:[%s430 + $0x171] sm:$0xff]
        %v4657 = vadd.f32 %v4467, %v4625
        %v4658 = vadd.f32 %v4472, %v4626
        %v4659 = vadd.f32 %v4477, %v4627
        %v4660 = vadd.f32 %v4482, %v4628
        %v4661 = vadd.f32 %v4487, %v4629
        %v4662 = vadd.f32 %v4492, %v4630
        %v4663 = vadd.f32 %v4497, %v4631
        %v4664 = vadd.f32 %v4502, %v4632
        %v4665 = vadd.f32 %v4507, %v4633
        %v4666 = vadd.f32 %v4512, %v4634
        %v4667 = vadd.f32 %v4517, %v4635
        %v4668 = vadd.f32 %v4522, %v4636
        %v4669 = vadd.f32 %v4527, %v4637
        %v4670 = vadd.f32 %v4532, %v4638
        %v4671 = vadd.f32 %v4537, %v4639
        %v4672 = vadd.f32 %v4542, %v4640
        %v4673 = vadd.f32 %v4547, %v4641
        %v4674 = vadd.f32 %v4552, %v4642
        %v4675 = vadd.f32 %v4557, %v4643
        %v4676 = vadd.f32 %v4562, %v4644
        %v4677 = vadd.f32 %v4567, %v4645
        %v4678 = vadd.f32 %v4572, %v4646
        %v4679 = vadd.f32 %v4577, %v4647
        %v4680 = vadd.f32 %v4582, %v4648
        %v4681 = vadd.f32 %v4587, %v4649
        %v4682 = vadd.f32 %v4592, %v4650
        %v4683 = vadd.f32 %v4597, %v4651
        %v4684 = vadd.f32 %v4602, %v4652
        %v4685 = vadd.f32 %v4607, %v4653
        %v4686 = vadd.f32 %v4612, %v4654
        %v4687 = vadd.f32 %v4617, %v4655
        %v4688 = vadd.f32 %v4622, %v4656
        %v4689 = vmax.f32 %v4657, 0.0
        %v4690 = vmax.f32 %v4658, 0.0
        %v4691 = vmax.f32 %v4659, 0.0
        %v4692 = vmax.f32 %v4660, 0.0
        %v4693 = vmax.f32 %v4661, 0.0
        %v4694 = vmax.f32 %v4662, 0.0
        %v4695 = vmax.f32 %v4663, 0.0
        %v4696 = vmax.f32 %v4664, 0.0
        %v4697 = vmax.f32 %v4665, 0.0
        %v4698 = vmax.f32 %v4666, 0.0
        %v4699 = vmax.f32 %v4667, 0.0
        %v4700 = vmax.f32 %v4668, 0.0
        %v4701 = vmax.f32 %v4669, 0.0
        %v4702 = vmax.f32 %v4670, 0.0
        %v4703 = vmax.f32 %v4671, 0.0
        %v4704 = vmax.f32 %v4672, 0.0
        %v4705 = vmax.f32 %v4673, 0.0
        %v4706 = vmax.f32 %v4674, 0.0
        %v4707 = vmax.f32 %v4675, 0.0
        %v4708 = vmax.f32 %v4676, 0.0
        %v4709 = vmax.f32 %v4677, 0.0
        %v4710 = vmax.f32 %v4678, 0.0
        %v4711 = vmax.f32 %v4679, 0.0
        %v4712 = vmax.f32 %v4680, 0.0
        %v4713 = vmax.f32 %v4681, 0.0
        %v4714 = vmax.f32 %v4682, 0.0
        %v4715 = vmax.f32 %v4683, 0.0
        %v4716 = vmax.f32 %v4684, 0.0
        %v4717 = vmax.f32 %v4685, 0.0
        %v4718 = vmax.f32 %v4686, 0.0
        %v4719 = vmax.f32 %v4687, 0.0
        %v4720 = vmax.f32 %v4688, 0.0
        %4721 = vst [vmem:[%s232] sm:$0xff] %v4689
        %4722 = vst [vmem:[%s232 + $0x8] sm:$0xff] %v4690
        %4723 = vst [vmem:[%s232 + $0x10] sm:$0xff] %v4691
        %4724 = vst [vmem:[%s232 + $0x18] sm:$0xff] %v4692
        %4725 = vst [vmem:[%s232 + $0x20] sm:$0xff] %v4693
        %4726 = vst [vmem:[%s232 + $0x28] sm:$0xff] %v4694
        %4727 = vst [vmem:[%s232 + $0x30] sm:$0xff] %v4695
        %4728 = vst [vmem:[%s232 + $0x38] sm:$0xff] %v4696
        %4729 = vst [vmem:[%s232 + $0x40] sm:$0xff] %v4697
        %4730 = vst [vmem:[%s232 + $0x48] sm:$0xff] %v4698
        %4731 = vst [vmem:[%s232 + $0x50] sm:$0xff] %v4699
        %4732 = vst [vmem:[%s232 + $0x58] sm:$0xff] %v4700
        %4733 = vst [vmem:[%s232 + $0x60] sm:$0xff] %v4701
        %4734 = vst [vmem:[%s232 + $0x68] sm:$0xff] %v4702
        %4735 = vst [vmem:[%s232 + $0x70] sm:$0xff] %v4703
        %4736 = vst [vmem:[%s232 + $0x78] sm:$0xff] %v4704
        %4737 = vst [vmem:[%s232 + $0x80] sm:$0xff] %v4705
        %4738 = vst [vmem:[%s232 + $0x88] sm:$0xff] %v4706
        %4739 = vst [vmem:[%s232 + $0x90] sm:$0xff] %v4707
        %4740 = vst [vmem:[%s232 + $0x98] sm:$0xff] %v4708
        %4741 = vst [vmem:[%s232 + $0xa0] sm:$0xff] %v4709
        %4742 = vst [vmem:[%s232 + $0xa8] sm:$0xff] %v4710
        %4743 = vst [vmem:[%s232 + $0xb0] sm:$0xff] %v4711
        %4744 = vst [vmem:[%s232 + $0xb8] sm:$0xff] %v4712
        %4745 = vst [vmem:[%s232 + $0xc0] sm:$0xff] %v4713
        %4746 = vst [vmem:[%s232 + $0xc8] sm:$0xff] %v4714
        %4747 = vst [vmem:[%s232 + $0xd0] sm:$0xff] %v4715
        %4748 = vst [vmem:[%s232 + $0xd8] sm:$0xff] %v4716
        %4749 = vst [vmem:[%s232 + $0xe0] sm:$0xff] %v4717
        %4750 = vst [vmem:[%s232 + $0xe8] sm:$0xff] %v4718
        %4751 = vst [vmem:[%s232 + $0xf0] sm:$0xff] %v4719
        %4752 = vst [vmem:[%s232 + $0xf8] sm:$0xff] %v4720
        %s4753 = sand.u32 %s138, 1
        %s4754 = scalar_lea.sflag [#allocation6], %s4753
        %s4755 = sand.u32 %s138, 1
        %s4756 = smul.addr %s4755, 256
        %s4757 = scalar_lea.vmem [#allocation7], %s4756
        // Predicated region
        $region45: #{tpu_custom_call.1} parent=39 // pred_check
          %p4758 = pneg %p148
        $region46: #{tpu_custom_call.1} parent=39 // pred_check_branch
          %4760 = sbr.rel (%p4758) target = $region48
        $region47: #{tpu_custom_call.1} parent=39 // pred_region
          %s4762 = ssub.s32 4096, 4096
          %4763 = vsyncadd %s4754, %s4762
          %s4764 = smul.addr %s20, 32
          %s4765 = smul.addr %s4764, 128
          %s4766 = scalar_lea.hbm %s5, %s4765
          %s4767 = sshll.u32 %s4757, 4
          %s4768 = int_to_ptr.vmem [resolvable:$true] %s4767
          %4773 = dma.vmem_to_hbm [thread:$0]  %s4768, 4096, %s4766, %s4754, 128, 128, 8
        $region48: #{tpu_custom_call.1} parent=39 // pred_fallthru
          _
      $region40: #{tpu_custom_call.1} parent=5 // pred_fallthru
        _
      %p4774 = scmp.le.s32.totalorder 2, %s15
      // Predicated region
      $region49: #{tpu_custom_call.1} parent=5 // pred_check
        %p4775 = pneg %p4774
      $region50: #{tpu_custom_call.1} parent=5 // pred_check_branch
        %4777 = sbr.rel (%p4775) target = $region52
      $region51: #{tpu_custom_call.1} parent=5 // pred_region
        %s4778 = ssub.s32 %s15, 2
        // Predicated region
        $region53: #{tpu_custom_call.1} parent=51 // pred_check
          %p4779 = pneg %p154
        $region54: #{tpu_custom_call.1} parent=51 // pred_check_branch
          %4781 = sbr.rel (%p4779) target = $region56
        $region55: #{tpu_custom_call.1} parent=51 // pred_region
          %s4782 = sand.u32 %s139, 1
          %s4783 = scalar_lea.sflag [#allocation6], %s4782
          %s4784 = sand.u32 %s139, 1
          %s4785 = smul.addr %s4784, 256
          %s4786 = scalar_lea.vmem [#allocation7], %s4785
          %4787 = dma.done %s4783, 4096
        $region56: #{tpu_custom_call.1} parent=51 // pred_fallthru
          _
      $region52: #{tpu_custom_call.1} parent=5 // pred_fallthru
        _
    $region6: #{tpu_custom_call.1} parent=1 // loop_footer
      %s19 = sadd.s32 1, %s15
    $region7: #{tpu_custom_call.1} parent=1 // loop_footer_branch
      %14 = sbr.rel target = $region3
    $region8: #{tpu_custom_call.1} parent=1 // loop_exit
      _
    %4788 = vsyncpa [#allocation5], 1
    %s4789 = scalar_lea.sflag [#allocation5], 1
    %4790 = vsyncpa %s4789, 1
    %4791 = vsyncpa [#allocation6], 1
    %s4792 = scalar_lea.sflag [#allocation6], 1
    %4793 = vsyncpa %s4792, 1

</llo_original>
